<compile_context>
chip_gen: v7x
topology: tpu7x:2x2x1
jax: 0.10.0
libtpu: 0.0.40
codegen_flags: <defaults>
</compile_context>

<pallas_src>
import math

import jax
import jax.numpy as jnp
from jax.experimental import pallas as pl
from jax.experimental.pallas import tpu as pltpu

HIDDEN = 1024      # hidden width fixed by the module architecture
OUT_PAD = 128      # Linear(1024, 1) padded to 128 lanes for dense stores


# ---------------------------------------------------------------------------
# Kernel: 4 matmuls + LeakyReLU + Sigmoid, fused, with manual DMA overlap.
# ---------------------------------------------------------------------------
def discriminator_kernel(x_ref, w1_ref, b1_ref, b2_ref, b3_ref, b4_ref,
                         w2_hbm, w3_hbm, w4_hbm,
                         out_ref,
                         w2_buf, w3_buf, w4_buf, sems):
    # Kick off the layer-2/3/4 weight DMAs so they overlap layer-1 compute.
    cp2 = pltpu.make_async_copy(w2_hbm, w2_buf, sems.at[0])
    cp3 = pltpu.make_async_copy(w3_hbm, w3_buf, sems.at[1])
    cp4 = pltpu.make_async_copy(w4_hbm, w4_buf, sems.at[2])
    cp2.start()
    cp3.start()
    cp4.start()

    slope = jnp.float32(0.2)

    def lrelu(h):
        return jnp.where(h > 0, h, slope * h)

    x = x_ref[...]                                            # (TB, in_dim) bf16

    # Layer 1: Linear -> LeakyReLU   (Dropout == identity in eval mode)
    h = jnp.dot(x, w1_ref[...], preferred_element_type=jnp.float32) + b1_ref[...]
    h = lrelu(h)
    # TODO(synk): training-mode Dropout(0.5) (stochastic masking) would need
    # pltpu.prng_seed + pltpu.prng_random_bits; eval-mode identity implemented.

    # Layer 2: Linear -> LeakyReLU
    cp2.wait()
    h = jnp.dot(h.astype(jnp.bfloat16), w2_buf[...],
                preferred_element_type=jnp.float32) + b2_ref[...]
    h = lrelu(h)

    # Layer 3: Linear -> LeakyReLU
    cp3.wait()
    h = jnp.dot(h.astype(jnp.bfloat16), w3_buf[...],
                preferred_element_type=jnp.float32) + b3_ref[...]
    h = lrelu(h)

    # Output head: Linear (padded to 128 lanes) -> Sigmoid
    cp4.wait()
    logits = jnp.dot(h.astype(jnp.bfloat16), w4_buf[...],
                     preferred_element_type=jnp.float32) + b4_ref[...]
    out_ref[...] = 1.0 / (1.0 + jnp.exp(-logits))


# ---------------------------------------------------------------------------
# Wrapper
# ---------------------------------------------------------------------------
def discriminator_forward(z, img, params):
    """z: (B, latent_dim) f32, img: (B, C, H, W) f32. Returns (B, 1) f32."""
    B = z.shape[0]
    latent_dim = z.shape[1]
    in_dim = latent_dim + math.prod(img.shape[1:])

    # Exact PyTorch semantics: cat of fully-flattened z and img, then view(B,-1).
    x = jnp.concatenate([z.reshape(-1), img.reshape(-1)]).reshape(B, in_dim)
    x = x.astype(jnp.bfloat16)

    # bf16 weights (accumulate f32 in kernel); biases stay f32.
    w1 = params["w1"].astype(jnp.bfloat16)
    w2 = params["w2"].astype(jnp.bfloat16)
    w3 = params["w3"].astype(jnp.bfloat16)
    w4 = jnp.pad(params["w4"],
                 ((0, 0), (0, OUT_PAD - params["w4"].shape[1]))).astype(jnp.bfloat16)
    b1, b2, b3 = params["b1"], params["b2"], params["b3"]
    b4 = jnp.pad(params["b4"], ((0, 0), (0, OUT_PAD - params["b4"].shape[1])))

    # Batch tiling: 128-row tiles for large batches, one padded tile otherwise.
    if B >= 128:
        TB = 128
    else:
        TB = max(8, ((B + 7) // 8) * 8)
    B_pad = pl.cdiv(B, TB) * TB
    if B_pad != B:
        x = jnp.pad(x, ((0, B_pad - B), (0, 0)))
    grid = (B_pad // TB,)

    flops = 2 * B_pad * (in_dim * HIDDEN + 2 * HIDDEN * HIDDEN + HIDDEN * OUT_PAD)
    bytes_accessed = (x.size * 2
                      + 2 * (w1.size + w2.size + w3.size + w4.size)
                      + 4 * (b1.size + b2.size + b3.size + b4.size)
                      + 4 * B_pad * OUT_PAD)

    grid_spec = pltpu.PrefetchScalarGridSpec(
        num_scalar_prefetch=0,
        grid=grid,
        in_specs=[
            pl.BlockSpec((TB, in_dim), lambda i: (i, 0)),       # x (batch tile)
            pl.BlockSpec((in_dim, HIDDEN), lambda i: (0, 0)),   # w1 (replicated)
            pl.BlockSpec((1, HIDDEN), lambda i: (0, 0)),        # b1
            pl.BlockSpec((1, HIDDEN), lambda i: (0, 0)),        # b2
            pl.BlockSpec((1, HIDDEN), lambda i: (0, 0)),        # b3
            pl.BlockSpec((1, OUT_PAD), lambda i: (0, 0)),       # b4
            pl.BlockSpec(memory_space=pl.ANY),                  # w2 (manual DMA)
            pl.BlockSpec(memory_space=pl.ANY),                  # w3 (manual DMA)
            pl.BlockSpec(memory_space=pl.ANY),                  # w4 (manual DMA)
        ],
        out_specs=pl.BlockSpec((TB, OUT_PAD), lambda i: (i, 0)),
        scratch_shapes=[
            pltpu.VMEM((HIDDEN, HIDDEN), jnp.bfloat16),
            pltpu.VMEM((HIDDEN, HIDDEN), jnp.bfloat16),
            pltpu.VMEM((HIDDEN, OUT_PAD), jnp.bfloat16),
            pltpu.SemaphoreType.DMA((3,)),
        ],
    )

    out_padded = pl.pallas_call(
        discriminator_kernel,
        out_shape=jax.ShapeDtypeStruct((B_pad, OUT_PAD), jnp.float32),
        grid_spec=grid_spec,
        compiler_params=pltpu.CompilerParams(
            dimension_semantics=("parallel",)),
        cost_estimate=pl.CostEstimate(
            flops=flops,
            transcendentals=B_pad * OUT_PAD,
            bytes_accessed=bytes_accessed),
    )(x, w1, b1, b2, b3, b4, w2, w3, w4)

    return out_padded[:B, :1]


# ---------------------------------------------------------------------------
# Deterministic parameter init (mirrors nn.Linear default init shapes).
# ---------------------------------------------------------------------------
def init_params(key, in_dim):
    ks = jax.random.split(key, 4)

    def lin(k, fi, fo):
        bound = 1.0 / math.sqrt(fi)
        kw, kb = jax.random.split(k)
        w = jax.random.uniform(kw, (fi, fo), jnp.float32, -bound, bound)
        b = jax.random.uniform(kb, (1, fo), jnp.float32, -bound, bound)
        return w, b

    w1, b1 = lin(ks[0], in_dim, HIDDEN)
    w2, b2 = lin(ks[1], HIDDEN, HIDDEN)
    w3, b3 = lin(ks[2], HIDDEN, HIDDEN)
    w4, b4 = lin(ks[3], HIDDEN, 1)
    return dict(w1=w1, b1=b1, w2=w2, b2=b2, w3=w3, b3=b3, w4=w4, b4=b4)


# Pure-JAX reference with the same bf16 matmul-operand rounding policy.
def reference_forward(z, img, p):
    B = z.shape[0]
    x = jnp.concatenate([z.reshape(-1), img.reshape(-1)]).reshape(B, -1)
    bf = lambda a: a.astype(jnp.bfloat16).astype(jnp.float32)

    def lrelu(h):
        return jnp.where(h > 0, h, 0.2 * h)

    h = lrelu(bf(x) @ bf(p["w1"]) + p["b1"])
    h = lrelu(bf(h) @ bf(p["w2"]) + p["b2"])
    h = lrelu(bf(h) @ bf(p["w3"]) + p["b3"])
    logits = bf(h) @ bf(p["w4"]) + p["b4"]
    return 1.0 / (1.0 + jnp.exp(-logits))


if __name__ == "__main__":
    # Small config consistent with the module: latent_dim=16, img (1, 8, 8).
    latent_dim = 16
    channels, img_size = 1, 8
    batch = 8

    key = jax.random.PRNGKey(0)
    kz, ki, kp = jax.random.split(key, 3)
    z = jax.random.normal(kz, (batch, latent_dim), jnp.float32)
    img = jax.random.normal(ki, (batch, channels, img_size, img_size), jnp.float32)

    in_dim = latent_dim + channels * img_size * img_size
    params = init_params(kp, in_dim)

    validity = discriminator_forward(z, img, params)
    validity = jax.block_until_ready(validity)

    ref = reference_forward(z, img, params)
    assert validity.shape == (batch, 1), validity.shape
    assert jnp.allclose(validity, ref, atol=1e-2, rtol=1e-2), "mismatch vs reference"

    print("KERNEL_OK")
</pallas_src>

<mosaic_0001>
module attributes {stable_mosaic.version = 11 : i64} {
  func.func @discriminator_kernel(%arg0: i32, %arg1: memref<8x80xbf16, #tpu.memory_space<vmem>>, %arg2: memref<80x1024xbf16, #tpu.memory_space<vmem>>, %arg3: memref<1x1024xf32, #tpu.memory_space<vmem>>, %arg4: memref<1x1024xf32, #tpu.memory_space<vmem>>, %arg5: memref<1x1024xf32, #tpu.memory_space<vmem>>, %arg6: memref<1x128xf32, #tpu.memory_space<vmem>>, %arg7: memref<1024x1024xbf16, #tpu.memory_space<any>>, %arg8: memref<1024x1024xbf16, #tpu.memory_space<any>>, %arg9: memref<1024x128xbf16, #tpu.memory_space<any>>, %arg10: memref<8x128xf32, #tpu.memory_space<vmem>>, %arg11: memref<1024x1024xbf16, #tpu.memory_space<vmem>>, %arg12: memref<1024x1024xbf16, #tpu.memory_space<vmem>>, %arg13: memref<1024x128xbf16, #tpu.memory_space<vmem>>, %arg14: memref<3x!tpu.dma_semaphore, #tpu.memory_space<semaphore_mem>>) attributes {dimension_semantics = [#tpu.dimension_semantics<parallel>], iteration_bounds = array<i64: 1>, scalar_prefetch = 0 : i64, scratch_operands = 4 : i64, tpu.core_type = #tpu.core_type<tc>, window_params = [{transform_indices = @transform_0, window_bounds = array<i64: 8, 80>}, {pipeline_mode = #tpu.pipeline_mode<synchronous>, transform_indices = @transform_1, window_bounds = array<i64: 80, 1024>}, {pipeline_mode = #tpu.pipeline_mode<synchronous>, transform_indices = @transform_2, window_bounds = array<i64: 1, 1024>}, {pipeline_mode = #tpu.pipeline_mode<synchronous>, transform_indices = @transform_3, window_bounds = array<i64: 1, 1024>}, {pipeline_mode = #tpu.pipeline_mode<synchronous>, transform_indices = @transform_4, window_bounds = array<i64: 1, 1024>}, {pipeline_mode = #tpu.pipeline_mode<synchronous>, transform_indices = @transform_5, window_bounds = array<i64: 1, 128>}, {}, {}, {}, {transform_indices = @transform_9, window_bounds = array<i64: 8, 128>}]} {
    %c0_i32 = arith.constant 0 : i32
    %0 = tpu.memref_slice %arg14[%c0_i32] : memref<3x!tpu.dma_semaphore, #tpu.memory_space<semaphore_mem>> -> memref<1x!tpu.dma_semaphore, #tpu.memory_space<semaphore_mem>>
    %1 = tpu.memref_squeeze %0 : memref<1x!tpu.dma_semaphore, #tpu.memory_space<semaphore_mem>> -> memref<!tpu.dma_semaphore, #tpu.memory_space<semaphore_mem>>
    tpu.enqueue_dma source(%arg7 : memref<1024x1024xbf16, #tpu.memory_space<any>>) target(%arg11 : memref<1024x1024xbf16, #tpu.memory_space<vmem>>) target_semaphore(%1 : memref<!tpu.dma_semaphore, #tpu.memory_space<semaphore_mem>>)
    %c1_i32 = arith.constant 1 : i32
    %2 = tpu.memref_slice %arg14[%c1_i32] : memref<3x!tpu.dma_semaphore, #tpu.memory_space<semaphore_mem>> -> memref<1x!tpu.dma_semaphore, #tpu.memory_space<semaphore_mem>>
    %3 = tpu.memref_squeeze %2 : memref<1x!tpu.dma_semaphore, #tpu.memory_space<semaphore_mem>> -> memref<!tpu.dma_semaphore, #tpu.memory_space<semaphore_mem>>
    tpu.enqueue_dma source(%arg8 : memref<1024x1024xbf16, #tpu.memory_space<any>>) target(%arg12 : memref<1024x1024xbf16, #tpu.memory_space<vmem>>) target_semaphore(%3 : memref<!tpu.dma_semaphore, #tpu.memory_space<semaphore_mem>>)
    %c2_i32 = arith.constant 2 : i32
    %4 = tpu.memref_slice %arg14[%c2_i32] : memref<3x!tpu.dma_semaphore, #tpu.memory_space<semaphore_mem>> -> memref<1x!tpu.dma_semaphore, #tpu.memory_space<semaphore_mem>>
    %5 = tpu.memref_squeeze %4 : memref<1x!tpu.dma_semaphore, #tpu.memory_space<semaphore_mem>> -> memref<!tpu.dma_semaphore, #tpu.memory_space<semaphore_mem>>
    tpu.enqueue_dma source(%arg9 : memref<1024x128xbf16, #tpu.memory_space<any>>) target(%arg13 : memref<1024x128xbf16, #tpu.memory_space<vmem>>) target_semaphore(%5 : memref<!tpu.dma_semaphore, #tpu.memory_space<semaphore_mem>>)
    %c0 = arith.constant 0 : index
    %c0_0 = arith.constant 0 : index
    %6 = vector.load %arg1[%c0, %c0_0] : memref<8x80xbf16, #tpu.memory_space<vmem>>, vector<8x80xbf16>
    %c0_1 = arith.constant 0 : index
    %c0_2 = arith.constant 0 : index
    %7 = vector.load %arg2[%c0_1, %c0_2] : memref<80x1024xbf16, #tpu.memory_space<vmem>>, vector<80x1024xbf16>
    %cst = arith.constant dense<0.000000e+00> : vector<8x1024xf32>
    %8 = tpu.matmul %6, %7, %cst {dimension_numbers = #tpu.dot_dimension_numbers<[1], [0], [0], [1], [0, 0, 1, 1], [], []>} : vector<8x80xbf16>, vector<80x1024xbf16>, vector<8x1024xf32> -> vector<8x1024xf32>
    %c0_3 = arith.constant 0 : index
    %c0_4 = arith.constant 0 : index
    %9 = vector.load %arg3[%c0_3, %c0_4] : memref<1x1024xf32, #tpu.memory_space<vmem>>, vector<1x1024xf32>
    %10 = vector.broadcast %9 : vector<1x1024xf32> to vector<8x1024xf32>
    %11 = arith.addf %8, %10 : vector<8x1024xf32>
    %cst_5 = arith.constant 0.000000e+00 : f32
    %12 = vector.broadcast %cst_5 : f32 to vector<8x1024xf32>
    %13 = arith.cmpf ogt, %11, %12 : vector<8x1024xf32>
    %cst_6 = arith.constant 2.000000e-01 : f32
    %14 = vector.broadcast %cst_6 : f32 to vector<8x1024xf32>
    %15 = arith.mulf %14, %11 : vector<8x1024xf32>
    %16 = arith.select %13, %11, %15 : vector<8x1024xi1>, vector<8x1024xf32>
    %c0_i32_7 = arith.constant 0 : i32
    %17 = tpu.memref_slice %arg14[%c0_i32_7] : memref<3x!tpu.dma_semaphore, #tpu.memory_space<semaphore_mem>> -> memref<1x!tpu.dma_semaphore, #tpu.memory_space<semaphore_mem>>
    %18 = tpu.memref_squeeze %17 : memref<1x!tpu.dma_semaphore, #tpu.memory_space<semaphore_mem>> -> memref<!tpu.dma_semaphore, #tpu.memory_space<semaphore_mem>>
    tpu.wait_dma2 semaphore(%18 : memref<!tpu.dma_semaphore, #tpu.memory_space<semaphore_mem>>) src(%arg7 : memref<1024x1024xbf16, #tpu.memory_space<any>>) dst(%arg11 : memref<1024x1024xbf16, #tpu.memory_space<vmem>>)
    %19 = arith.truncf %16 : vector<8x1024xf32> to vector<8x1024xbf16>
    %c0_8 = arith.constant 0 : index
    %c0_9 = arith.constant 0 : index
    %20 = vector.load %arg11[%c0_8, %c0_9] : memref<1024x1024xbf16, #tpu.memory_space<vmem>>, vector<1024x1024xbf16>
    %cst_10 = arith.constant dense<0.000000e+00> : vector<8x1024xf32>
    %21 = tpu.matmul %19, %20, %cst_10 {dimension_numbers = #tpu.dot_dimension_numbers<[1], [0], [0], [1], [0, 0, 1, 1], [], []>} : vector<8x1024xbf16>, vector<1024x1024xbf16>, vector<8x1024xf32> -> vector<8x1024xf32>
    %c0_11 = arith.constant 0 : index
    %c0_12 = arith.constant 0 : index
    %22 = vector.load %arg4[%c0_11, %c0_12] : memref<1x1024xf32, #tpu.memory_space<vmem>>, vector<1x1024xf32>
    %23 = vector.broadcast %22 : vector<1x1024xf32> to vector<8x1024xf32>
    %24 = arith.addf %21, %23 : vector<8x1024xf32>
    %cst_13 = arith.constant 0.000000e+00 : f32
    %25 = vector.broadcast %cst_13 : f32 to vector<8x1024xf32>
    %26 = arith.cmpf ogt, %24, %25 : vector<8x1024xf32>
    %cst_14 = arith.constant 2.000000e-01 : f32
    %27 = vector.broadcast %cst_14 : f32 to vector<8x1024xf32>
    %28 = arith.mulf %27, %24 : vector<8x1024xf32>
    %29 = arith.select %26, %24, %28 : vector<8x1024xi1>, vector<8x1024xf32>
    %c1_i32_15 = arith.constant 1 : i32
    %30 = tpu.memref_slice %arg14[%c1_i32_15] : memref<3x!tpu.dma_semaphore, #tpu.memory_space<semaphore_mem>> -> memref<1x!tpu.dma_semaphore, #tpu.memory_space<semaphore_mem>>
    %31 = tpu.memref_squeeze %30 : memref<1x!tpu.dma_semaphore, #tpu.memory_space<semaphore_mem>> -> memref<!tpu.dma_semaphore, #tpu.memory_space<semaphore_mem>>
    tpu.wait_dma2 semaphore(%31 : memref<!tpu.dma_semaphore, #tpu.memory_space<semaphore_mem>>) src(%arg8 : memref<1024x1024xbf16, #tpu.memory_space<any>>) dst(%arg12 : memref<1024x1024xbf16, #tpu.memory_space<vmem>>)
    %32 = arith.truncf %29 : vector<8x1024xf32> to vector<8x1024xbf16>
    %c0_16 = arith.constant 0 : index
    %c0_17 = arith.constant 0 : index
    %33 = vector.load %arg12[%c0_16, %c0_17] : memref<1024x1024xbf16, #tpu.memory_space<vmem>>, vector<1024x1024xbf16>
    %cst_18 = arith.constant dense<0.000000e+00> : vector<8x1024xf32>
    %34 = tpu.matmul %32, %33, %cst_18 {dimension_numbers = #tpu.dot_dimension_numbers<[1], [0], [0], [1], [0, 0, 1, 1], [], []>} : vector<8x1024xbf16>, vector<1024x1024xbf16>, vector<8x1024xf32> -> vector<8x1024xf32>
    %c0_19 = arith.constant 0 : index
    %c0_20 = arith.constant 0 : index
    %35 = vector.load %arg5[%c0_19, %c0_20] : memref<1x1024xf32, #tpu.memory_space<vmem>>, vector<1x1024xf32>
    %36 = vector.broadcast %35 : vector<1x1024xf32> to vector<8x1024xf32>
    %37 = arith.addf %34, %36 : vector<8x1024xf32>
    %cst_21 = arith.constant 0.000000e+00 : f32
    %38 = vector.broadcast %cst_21 : f32 to vector<8x1024xf32>
    %39 = arith.cmpf ogt, %37, %38 : vector<8x1024xf32>
    %cst_22 = arith.constant 2.000000e-01 : f32
    %40 = vector.broadcast %cst_22 : f32 to vector<8x1024xf32>
    %41 = arith.mulf %40, %37 : vector<8x1024xf32>
    %42 = arith.select %39, %37, %41 : vector<8x1024xi1>, vector<8x1024xf32>
    %c2_i32_23 = arith.constant 2 : i32
    %43 = tpu.memref_slice %arg14[%c2_i32_23] : memref<3x!tpu.dma_semaphore, #tpu.memory_space<semaphore_mem>> -> memref<1x!tpu.dma_semaphore, #tpu.memory_space<semaphore_mem>>
    %44 = tpu.memref_squeeze %43 : memref<1x!tpu.dma_semaphore, #tpu.memory_space<semaphore_mem>> -> memref<!tpu.dma_semaphore, #tpu.memory_space<semaphore_mem>>
    tpu.wait_dma2 semaphore(%44 : memref<!tpu.dma_semaphore, #tpu.memory_space<semaphore_mem>>) src(%arg9 : memref<1024x128xbf16, #tpu.memory_space<any>>) dst(%arg13 : memref<1024x128xbf16, #tpu.memory_space<vmem>>)
    %45 = arith.truncf %42 : vector<8x1024xf32> to vector<8x1024xbf16>
    %c0_24 = arith.constant 0 : index
    %c0_25 = arith.constant 0 : index
    %46 = vector.load %arg13[%c0_24, %c0_25] : memref<1024x128xbf16, #tpu.memory_space<vmem>>, vector<1024x128xbf16>
    %cst_26 = arith.constant dense<0.000000e+00> : vector<8x128xf32>
    %47 = tpu.matmul %45, %46, %cst_26 {dimension_numbers = #tpu.dot_dimension_numbers<[1], [0], [0], [1], [0, 0, 1, 1], [], []>} : vector<8x1024xbf16>, vector<1024x128xbf16>, vector<8x128xf32> -> vector<8x128xf32>
    %c0_27 = arith.constant 0 : index
    %c0_28 = arith.constant 0 : index
    %48 = vector.load %arg6[%c0_27, %c0_28] : memref<1x128xf32, #tpu.memory_space<vmem>>, vector<1x128xf32>
    %49 = vector.broadcast %48 : vector<1x128xf32> to vector<8x128xf32>
    %50 = arith.addf %47, %49 : vector<8x128xf32>
    %cst_29 = arith.constant 0.000000e+00 : f32
    %51 = vector.broadcast %cst_29 : f32 to vector<8x128xf32>
    %52 = arith.subf %51, %50 : vector<8x128xf32>
    %53 = math.exp %52 : vector<8x128xf32>
    %cst_30 = arith.constant 1.000000e+00 : f32
    %54 = vector.broadcast %cst_30 : f32 to vector<8x128xf32>
    %55 = arith.addf %54, %53 : vector<8x128xf32>
    %cst_31 = arith.constant 1.000000e+00 : f32
    %56 = vector.broadcast %cst_31 : f32 to vector<8x128xf32>
    %57 = arith.divf %56, %55 : vector<8x128xf32>
    %c0_32 = arith.constant 0 : index
    %c0_33 = arith.constant 0 : index
    %58 = vector.load %arg10[%c0_32, %c0_33] : memref<8x128xf32, #tpu.memory_space<vmem>>, vector<8x128xf32>
    tpu.vector_store %arg10[%c0_32, %c0_33], %57 {strides = array<i32>} : memref<8x128xf32, #tpu.memory_space<vmem>>, vector<8x128xf32>,
    return
  }
  func.func @transform_0(%arg0: i32) -> (i32, i32) {
    %c0_i32 = arith.constant 0 : i32
    %c0_i32_0 = arith.constant 0 : i32
    return %arg0, %c0_i32 : i32, i32
  }
  func.func @transform_1(%arg0: i32) -> (i32, i32) {
    %c0_i32 = arith.constant 0 : i32
    %c0_i32_0 = arith.constant 0 : i32
    %c0_i32_1 = arith.constant 0 : i32
    return %c0_i32, %c0_i32_0 : i32, i32
  }
  func.func @transform_2(%arg0: i32) -> (i32, i32) {
    %c0_i32 = arith.constant 0 : i32
    %c0_i32_0 = arith.constant 0 : i32
    %c0_i32_1 = arith.constant 0 : i32
    return %c0_i32, %c0_i32_0 : i32, i32
  }
  func.func @transform_3(%arg0: i32) -> (i32, i32) {
    %c0_i32 = arith.constant 0 : i32
    %c0_i32_0 = arith.constant 0 : i32
    %c0_i32_1 = arith.constant 0 : i32
    return %c0_i32, %c0_i32_0 : i32, i32
  }
  func.func @transform_4(%arg0: i32) -> (i32, i32) {
    %c0_i32 = arith.constant 0 : i32
    %c0_i32_0 = arith.constant 0 : i32
    %c0_i32_1 = arith.constant 0 : i32
    return %c0_i32, %c0_i32_0 : i32, i32
  }
  func.func @transform_5(%arg0: i32) -> (i32, i32) {
    %c0_i32 = arith.constant 0 : i32
    %c0_i32_0 = arith.constant 0 : i32
    %c0_i32_1 = arith.constant 0 : i32
    return %c0_i32, %c0_i32_0 : i32, i32
  }
  func.func @transform_9(%arg0: i32) -> (i32, i32) {
    %c0_i32 = arith.constant 0 : i32
    %c0_i32_0 = arith.constant 0 : i32
    return %arg0, %c0_i32 : i32, i32
  }
}

</mosaic_0001>

<llo_original>
// kernel: tpu_custom_call.1
$region0: #{tpu_custom_call.1}
  #allocation0 [shape = 'u32[]', space=smem, size = 0x4, offset = 0x4, fixed_abs, tag = 'smem constant byte address 0x4 - core index']
  #allocation1 [shape = 'u32[144,128]{1,0:T(1,128)}', space=vmem, size = 0x12000, scoped, tag = 'internal scratch']
  #allocation2 [shape = 'bf16[1024,1024]{1,0:T(16,128)(2,1)}', space=vmem, size = 0x200000, scoped, tag = 'scratch operand']
  #allocation3 [shape = 'bf16[1024,1024]{1,0:T(16,128)(2,1)}', space=vmem, size = 0x200000, scoped, tag = 'scratch operand']
  #allocation4 [shape = 'bf16[1024,128]{1,0:T(16,128)(2,1)}', space=vmem, size = 0x40000, scoped, tag = 'scratch operand']
  #allocation5 [shape = 's32[3]{0}', space=sflag, size = 0xc, scoped, tag = 'scratch operand']
  #allocation18 [shape = 's32[]', space=sflag, size = 0x4, offset = 0, fixed_abs, tag = 'sflag constant byte address 0x0 - dummy sync flag']
  #allocation20 [shape = 's32[]', space=sflag, size = 0x4, offset = 0, fixed_abs, tag = 'sflag constant byte address 0x0 - dummy sync flag']
  #allocation22 [shape = 's32[]', space=sflag, size = 0x4, offset = 0, fixed_abs, tag = 'sflag constant byte address 0x0 - dummy sync flag']
  #allocation23 [shape = 's32[]', space=sflag, size = 0x4, offset = 0, fixed_abs, tag = 'sflag constant byte address 0x0 - dummy sync flag']
  #allocation24 [shape = 'u32[]', space=smem, size = 0x4, offset = 0x44, fixed_abs, tag = 'smem constant byte address 0x44 - assertion arg 0']
  #allocation25 [shape = 'u32[]', space=smem, size = 0x4, offset = 0x48, fixed_abs, tag = 'smem constant byte address 0x48 - assertion arg 1']
  %s0 = inlined_call_operand.hbm [shape: bf16[8,80], index: 0, kind: input, shape index: {}]
  %s1 = inlined_call_operand.hbm [shape: bf16[80,1024], index: 1, kind: input, shape index: {}]
  %s2 = inlined_call_operand.hbm [shape: f32[1,1024], index: 2, kind: input, shape index: {}]
  %s3 = inlined_call_operand.hbm [shape: f32[1,1024], index: 3, kind: input, shape index: {}]
  %s4 = inlined_call_operand.hbm [shape: f32[1,1024], index: 4, kind: input, shape index: {}]
  %s5 = inlined_call_operand.hbm [shape: f32[1,128], index: 5, kind: input, shape index: {}]
  %s6 = inlined_call_operand.hbm [shape: bf16[1024,1024], index: 6, kind: input, shape index: {}]
  %s7 = inlined_call_operand.hbm [shape: bf16[1024,1024], index: 7, kind: input, shape index: {}]
  %s8 = inlined_call_operand.hbm [shape: bf16[1024,128], index: 8, kind: input, shape index: {}]
  %s9 = inlined_call_operand.hbm [shape: f32[8,128], index: 9, kind: output, shape index: {}]
  %s10 = sld [smem:[#allocation0]]
  $region62: #{tpu_custom_call.1} parent=0
    _
  %s12 = ssub.s32 1, %s10
  %s13 = scalar_select 0, %s12, %s10
  $region1: #{tpu_custom_call.1} parent=0
    #allocation6 [shape = 'u8[2048]{0}', space=vmem, size = 0x800, scoped, tag = 'input window, operand 0, single buffered']
    #allocation7 [shape = 's32[1]{0}', space=sflag, size = 0x4, scoped, tag = 'scoped memory for tpu_custom_call.1']
    #allocation8 [shape = 's32[1]{0}', space=sflag, size = 0x4, scoped, tag = 'scoped memory for tpu_custom_call.1']
    #allocation9 [shape = 'u8[163840]{0}', space=vmem, size = 0x28000, scoped, tag = 'input window, operand 1, single buffered']
    #allocation10 [shape = 's32[1]{0}', space=sflag, size = 0x4, scoped, tag = 'scoped memory for tpu_custom_call.1']
    #allocation11 [shape = 'u8[4096]{0}', space=vmem, size = 0x1000, scoped, tag = 'input window, operand 2, single buffered']
    #allocation12 [shape = 'u8[4096]{0}', space=vmem, size = 0x1000, scoped, tag = 'input window, operand 3, single buffered']
    #allocation13 [shape = 's32[1]{0}', space=sflag, size = 0x4, scoped, tag = 'scoped memory for tpu_custom_call.1']
    #allocation14 [shape = 'u8[4096]{0}', space=vmem, size = 0x1000, scoped, tag = 'input window, operand 4, single buffered']
    #allocation15 [shape = 'u8[512]{0}', space=vmem, size = 0x400, scoped, tag = 'input window, operand 5, single buffered']
    #allocation16 [shape = 's32[1]{0}', space=sflag, size = 0x4, scoped, tag = 'scoped memory for tpu_custom_call.1']
    #allocation17 [shape = 'u8[4096]{0}', space=vmem, size = 0x1000, scoped, tag = 'output window, operand 0, single buffered']
    #allocation19 [shape = 'u32[9]{0}', space=smem, size = 0x24, scoped, tag = 'DMA stride descriptor']
    #allocation21 [shape = 'u32[9]{0}', space=smem, size = 0x24, scoped, tag = 'DMA stride descriptor']
    %14 = vsyncpa [#allocation7], 0
    %15 = vsyncpa [#allocation10], 0
    %16 = vsyncpa [#allocation13], 0
    %17 = vsyncpa [#allocation16], 0
    %18 = vsyncpa [#allocation8], 0
    // Predicated region
    $region2: #{tpu_custom_call.1} parent=1 // pred_check
      _
    $region3: #{tpu_custom_call.1} parent=1 // pred_check_branch
      %20 = sbr.rel (0) target = $region5
    $region4: #{tpu_custom_call.1} parent=1 // pred_region
      %s22 = ssub.s32 64, 64
      %23 = vsyncadd [#allocation7], %s22
      %s25 = sshll.u32 [#allocation6], 4
      %s26 = int_to_ptr.vmem [resolvable:$true] %s25
      %28 = dma.hbm_to_vmem [thread:$0]  %s0, 64, %s26, [#allocation7]
    $region5: #{tpu_custom_call.1} parent=1 // pred_fallthru
      _
    // Predicated region
    $region6: #{tpu_custom_call.1} parent=1 // pred_check
      _
    $region7: #{tpu_custom_call.1} parent=1 // pred_check_branch
      %30 = sbr.rel (0) target = $region9
    $region8: #{tpu_custom_call.1} parent=1 // pred_region
      %s32 = ssub.s32 5120, 5120
      %33 = vsyncadd [#allocation10], %s32
      %s34 = sshll.u32 [#allocation9], 4
      %s35 = int_to_ptr.vmem [resolvable:$true] %s34
      %40 = dma.hbm_to_vmem [thread:$0]  %s1, 5120, %s35, [#allocation10], 512, 512, 32
    $region9: #{tpu_custom_call.1} parent=1 // pred_fallthru
      _
    // Predicated region
    $region10: #{tpu_custom_call.1} parent=1 // pred_check
      _
    $region11: #{tpu_custom_call.1} parent=1 // pred_check_branch
      %42 = sbr.rel (0) target = $region13
    $region12: #{tpu_custom_call.1} parent=1 // pred_region
      %s44 = ssub.s32 128, 128
      %45 = vsyncadd [#allocation10], %s44
      %s47 = sshll.u32 [#allocation11], 4
      %s48 = int_to_ptr.vmem [resolvable:$true] %s47
      %50 = dma.hbm_to_vmem [thread:$0]  %s2, 128, %s48, [#allocation10]
    $region13: #{tpu_custom_call.1} parent=1 // pred_fallthru
      _
    // Predicated region
    $region14: #{tpu_custom_call.1} parent=1 // pred_check
      _
    $region15: #{tpu_custom_call.1} parent=1 // pred_check_branch
      %52 = sbr.rel (0) target = $region17
    $region16: #{tpu_custom_call.1} parent=1 // pred_region
      %s54 = ssub.s32 128, 128
      %55 = vsyncadd [#allocation13], %s54
      %s57 = sshll.u32 [#allocation12], 4
      %s58 = int_to_ptr.vmem [resolvable:$true] %s57
      %60 = dma.hbm_to_vmem [thread:$0]  %s3, 128, %s58, [#allocation13]
    $region17: #{tpu_custom_call.1} parent=1 // pred_fallthru
      _
    // Predicated region
    $region18: #{tpu_custom_call.1} parent=1 // pred_check
      _
    $region19: #{tpu_custom_call.1} parent=1 // pred_check_branch
      %62 = sbr.rel (0) target = $region21
    $region20: #{tpu_custom_call.1} parent=1 // pred_region
      %s64 = ssub.s32 128, 128
      %65 = vsyncadd [#allocation13], %s64
      %s67 = sshll.u32 [#allocation14], 4
      %s68 = int_to_ptr.vmem [resolvable:$true] %s67
      %70 = dma.hbm_to_vmem [thread:$0]  %s4, 128, %s68, [#allocation13]
    $region21: #{tpu_custom_call.1} parent=1 // pred_fallthru
      _
    // Predicated region
    $region22: #{tpu_custom_call.1} parent=1 // pred_check
      _
    $region23: #{tpu_custom_call.1} parent=1 // pred_check_branch
      %72 = sbr.rel (0) target = $region25
    $region24: #{tpu_custom_call.1} parent=1 // pred_region
      %s74 = ssub.s32 16, 16
      %75 = vsyncadd [#allocation16], %s74
      %s77 = sshll.u32 [#allocation15], 4
      %s78 = int_to_ptr.vmem [resolvable:$true] %s77
      %80 = dma.hbm_to_vmem [thread:$0]  %s5, 16, %s78, [#allocation16]
    $region25: #{tpu_custom_call.1} parent=1 // pred_fallthru
      _
    // Predicated region
    $region26: #{tpu_custom_call.1} parent=1 // pred_check
      _
    $region27: #{tpu_custom_call.1} parent=1 // pred_check_branch
      %82 = sbr.rel (0) target = $region29
    $region28: #{tpu_custom_call.1} parent=1 // pred_region
      %83 = dma.done [#allocation7], 64
    $region29: #{tpu_custom_call.1} parent=1 // pred_fallthru
      _
    // Predicated region
    $region30: #{tpu_custom_call.1} parent=1 // pred_check
      _
    $region31: #{tpu_custom_call.1} parent=1 // pred_check_branch
      %85 = sbr.rel (0) target = $region33
    $region32: #{tpu_custom_call.1} parent=1 // pred_region
      %86 = dma.done [#allocation10], 5120
    $region33: #{tpu_custom_call.1} parent=1 // pred_fallthru
      _
    // Predicated region
    $region34: #{tpu_custom_call.1} parent=1 // pred_check
      _
    $region35: #{tpu_custom_call.1} parent=1 // pred_check_branch
      %88 = sbr.rel (0) target = $region37
    $region36: #{tpu_custom_call.1} parent=1 // pred_region
      %89 = dma.done [#allocation10], 128
    $region37: #{tpu_custom_call.1} parent=1 // pred_fallthru
      _
    // Predicated region
    $region38: #{tpu_custom_call.1} parent=1 // pred_check
      _
    $region39: #{tpu_custom_call.1} parent=1 // pred_check_branch
      %91 = sbr.rel (0) target = $region41
    $region40: #{tpu_custom_call.1} parent=1 // pred_region
      %92 = dma.done [#allocation13], 128
    $region41: #{tpu_custom_call.1} parent=1 // pred_fallthru
      _
    // Predicated region
    $region42: #{tpu_custom_call.1} parent=1 // pred_check
      _
    $region43: #{tpu_custom_call.1} parent=1 // pred_check_branch
      %94 = sbr.rel (0) target = $region45
    $region44: #{tpu_custom_call.1} parent=1 // pred_region
      %95 = dma.done [#allocation13], 128
    $region45: #{tpu_custom_call.1} parent=1 // pred_fallthru
      _
    // Predicated region
    $region46: #{tpu_custom_call.1} parent=1 // pred_check
      _
    $region47: #{tpu_custom_call.1} parent=1 // pred_check_branch
      %97 = sbr.rel (0) target = $region49
    $region48: #{tpu_custom_call.1} parent=1 // pred_region
      %98 = dma.done [#allocation16], 16
    $region49: #{tpu_custom_call.1} parent=1 // pred_fallthru
      _
    %s101 = sshll.u32 1, 14
    %s102 = sxor.u32 4294967295, %s101
    %s104 = sld [smem:[#allocation0]]
    %s105 = sadd.s32 2, %s104
    %s107 = sshll.u32 7, 26
    %s108 = sxor.u32 4294967295, %s107
    %s109 = sand.u32 0, %s108
    %s110 = sshll.u32 %s105, 26
    %s111 = sor.u32 %s109, %s110
    %s112 = sshll.u32 [#allocation2], 4
    %s113 = int_to_ptr.vmem [resolvable:$true] %s112
    %116 = sst [smem:[#allocation19]] 1024
    %s117 = scalar_lea.smem [#allocation19], 1
    %118 = sst [smem:[%s117]] 1024
    %s119 = scalar_lea.smem [#allocation19], 2
    %120 = sst [smem:[%s119]] 8
    %s121 = scalar_lea.smem [#allocation19], 3
    %122 = sst [smem:[%s121]] 64
    %s123 = scalar_lea.smem [#allocation19], 4
    %124 = sst [smem:[%s123]] 128
    %s125 = scalar_lea.smem [#allocation19], 5
    %126 = sst [smem:[%s125]] 2
    %s127 = scalar_lea.smem [#allocation19], 6
    %128 = sst [smem:[%s127]] 512
    %s129 = scalar_lea.smem [#allocation19], 7
    %130 = sst [smem:[%s129]] 64
    %s131 = scalar_lea.smem [#allocation19], 8
    %132 = sst [smem:[%s131]] 4
    %134 = dma.general %s6, 65536, %s113, [#allocation5], [#allocation18], [#allocation19], %s111, 0
    %s135 = scalar_lea.sflag [#allocation5], 1
    %s137 = sshll.u32 1, 14
    %s138 = sxor.u32 4294967295, %s137
    %s140 = sadd.s32 2, %s104
    %s142 = sshll.u32 7, 26
    %s143 = sxor.u32 4294967295, %s142
    %s144 = sand.u32 0, %s143
    %s145 = sshll.u32 %s140, 26
    %s146 = sor.u32 %s144, %s145
    %s147 = sshll.u32 [#allocation3], 4
    %s148 = int_to_ptr.vmem [resolvable:$true] %s147
    %151 = sst [smem:[#allocation21]] 1024
    %s152 = scalar_lea.smem [#allocation21], 1
    %153 = sst [smem:[%s152]] 1024
    %s154 = scalar_lea.smem [#allocation21], 2
    %155 = sst [smem:[%s154]] 8
    %s156 = scalar_lea.smem [#allocation21], 3
    %157 = sst [smem:[%s156]] 64
    %s158 = scalar_lea.smem [#allocation21], 4
    %159 = sst [smem:[%s158]] 128
    %s160 = scalar_lea.smem [#allocation21], 5
    %161 = sst [smem:[%s160]] 2
    %s162 = scalar_lea.smem [#allocation21], 6
    %163 = sst [smem:[%s162]] 512
    %s164 = scalar_lea.smem [#allocation21], 7
    %165 = sst [smem:[%s164]] 64
    %s166 = scalar_lea.smem [#allocation21], 8
    %167 = sst [smem:[%s166]] 4
    %169 = dma.general %s7, 65536, %s148, %s135, [#allocation20], [#allocation21], %s146, 0
    %s170 = scalar_lea.sflag [#allocation5], 2
    // Predicated region
    $region50: #{tpu_custom_call.1} parent=1 // pred_check
      _
    $region51: #{tpu_custom_call.1} parent=1 // pred_check_branch
      %172 = sbr.rel target = $region53
    $region52: #{tpu_custom_call.1} parent=1 // pred_region
      %173 = sst [smem:[#allocation24]] [#allocation23]
      %174 = sst [smem:[#allocation25]] [#allocation22]
    $region53: #{tpu_custom_call.1} parent=1 // pred_fallthru
      _
    %176 = shalt.err (0)
    %s178 = sshll.u32 [#allocation4], 4
    %s179 = int_to_ptr.vmem [resolvable:$true] %s178
    %181 = dma.hbm_to_vmem [thread:$0]  %s8, 8192, %s179, %s170
    %v182 = vld [vmem:[#allocation6] sm:$0xf]
    %v183 = vld [vmem:[#allocation9] sm:$0xff]
    %v184 = vld [vmem:[#allocation9 + $0x8] sm:$0xff]
    %v185 = vld [vmem:[#allocation9 + $0x10] sm:$0xff]
    %v186 = vld [vmem:[#allocation9 + $0x18] sm:$0xff]
    %v187 = vld [vmem:[#allocation9 + $0x20] sm:$0xff]
    %v188 = vld [vmem:[#allocation9 + $0x28] sm:$0xff]
    %v189 = vld [vmem:[#allocation9 + $0x30] sm:$0xff]
    %v190 = vld [vmem:[#allocation9 + $0x38] sm:$0xff]
    %v191 = vld [vmem:[#allocation9 + $0x40] sm:$0xff]
    %v192 = vld [vmem:[#allocation9 + $0x48] sm:$0xff]
    %v193 = vld [vmem:[#allocation9 + $0x50] sm:$0xff]
    %v194 = vld [vmem:[#allocation9 + $0x58] sm:$0xff]
    %v195 = vld [vmem:[#allocation9 + $0x60] sm:$0xff]
    %v196 = vld [vmem:[#allocation9 + $0x68] sm:$0xff]
    %v197 = vld [vmem:[#allocation9 + $0x70] sm:$0xff]
    %v198 = vld [vmem:[#allocation9 + $0x78] sm:$0xff]
    %v199 = vld [vmem:[#allocation9 + $0x80] sm:$0xff]
    %v200 = vld [vmem:[#allocation9 + $0x88] sm:$0xff]
    %v201 = vld [vmem:[#allocation9 + $0x90] sm:$0xff]
    %v202 = vld [vmem:[#allocation9 + $0x98] sm:$0xff]
    %v203 = vld [vmem:[#allocation9 + $0xa0] sm:$0xff]
    %v204 = vld [vmem:[#allocation9 + $0xa8] sm:$0xff]
    %v205 = vld [vmem:[#allocation9 + $0xb0] sm:$0xff]
    %v206 = vld [vmem:[#allocation9 + $0xb8] sm:$0xff]
    %v207 = vld [vmem:[#allocation9 + $0xc0] sm:$0xff]
    %v208 = vld [vmem:[#allocation9 + $0xc8] sm:$0xff]
    %v209 = vld [vmem:[#allocation9 + $0xd0] sm:$0xff]
    %v210 = vld [vmem:[#allocation9 + $0xd8] sm:$0xff]
    %v211 = vld [vmem:[#allocation9 + $0xe0] sm:$0xff]
    %v212 = vld [vmem:[#allocation9 + $0xe8] sm:$0xff]
    %v213 = vld [vmem:[#allocation9 + $0xf0] sm:$0xff]
    %v214 = vld [vmem:[#allocation9 + $0xf8] sm:$0xff]
    %v215 = vld [vmem:[#allocation9 + $0x100] sm:$0xff]
    %v216 = vld [vmem:[#allocation9 + $0x108] sm:$0xff]
    %v217 = vld [vmem:[#allocation9 + $0x110] sm:$0xff]
    %v218 = vld [vmem:[#allocation9 + $0x118] sm:$0xff]
    %v219 = vld [vmem:[#allocation9 + $0x120] sm:$0xff]
    %v220 = vld [vmem:[#allocation9 + $0x128] sm:$0xff]
    %v221 = vld [vmem:[#allocation9 + $0x130] sm:$0xff]
    %v222 = vld [vmem:[#allocation9 + $0x138] sm:$0xff]
    %v223 = vld [vmem:[#allocation11] sm:$0xff]
    %v225 = vlaneseq
    %v226 = vshrl.u32 %v225, 7
    %v227 = vsub.s32 0, %v226
    %v228 = vrot.slane %v223, %v227
    %v229 = vlaneseq
    %v230 = vshrl.u32 %v229, 7
    %v231 = vsub.s32 1, %v230
    %v232 = vrot.slane %v223, %v231
    %v233 = vlaneseq
    %v234 = vshrl.u32 %v233, 7
    %v235 = vsub.s32 2, %v234
    %v236 = vrot.slane %v223, %v235
    %v237 = vlaneseq
    %v238 = vshrl.u32 %v237, 7
    %v239 = vsub.s32 3, %v238
    %v240 = vrot.slane %v223, %v239
    %v241 = vlaneseq
    %v242 = vshrl.u32 %v241, 7
    %v243 = vsub.s32 4, %v242
    %v244 = vrot.slane %v223, %v243
    %v245 = vlaneseq
    %v246 = vshrl.u32 %v245, 7
    %v247 = vsub.s32 5, %v246
    %v248 = vrot.slane %v223, %v247
    %v249 = vlaneseq
    %v250 = vshrl.u32 %v249, 7
    %v251 = vsub.s32 6, %v250
    %v252 = vrot.slane %v223, %v251
    %v253 = vlaneseq
    %v254 = vshrl.u32 %v253, 7
    %v255 = vsub.s32 7, %v254
    %v256 = vrot.slane %v223, %v255
    %v305 = vunpack.c.l.b16 %v183
    %v306 = vunpack.c.h.b16 %v183
    %v307 = vunpack.c.l.b16 %v184
    %v308 = vunpack.c.h.b16 %v184
    %v309 = vunpack.c.l.b16 %v185
    %v310 = vunpack.c.h.b16 %v185
    %v311 = vunpack.c.l.b16 %v186
    %v312 = vunpack.c.h.b16 %v186
    %v313 = vunpack.c.l.b16 %v187
    %v314 = vunpack.c.h.b16 %v187
    %v315 = vunpack.c.l.b16 %v188
    %v316 = vunpack.c.h.b16 %v188
    %v317 = vunpack.c.l.b16 %v189
    %v318 = vunpack.c.h.b16 %v189
    %v319 = vunpack.c.l.b16 %v190
    %v320 = vunpack.c.h.b16 %v190
    %v321 = vunpack.c.l.b16 %v191
    %v322 = vunpack.c.h.b16 %v191
    %v323 = vunpack.c.l.b16 %v192
    %v324 = vunpack.c.h.b16 %v192
    %v325 = vunpack.c.l.b16 %v193
    %v326 = vunpack.c.h.b16 %v193
    %v327 = vunpack.c.l.b16 %v194
    %v328 = vunpack.c.h.b16 %v194
    %v329 = vunpack.c.l.b16 %v195
    %v330 = vunpack.c.h.b16 %v195
    %v331 = vunpack.c.l.b16 %v196
    %v332 = vunpack.c.h.b16 %v196
    %v333 = vunpack.c.l.b16 %v197
    %v334 = vunpack.c.h.b16 %v197
    %v335 = vunpack.c.l.b16 %v198
    %v336 = vunpack.c.h.b16 %v198
    %v337 = vunpack.c.l.b16 %v199
    %v338 = vunpack.c.h.b16 %v199
    %v339 = vunpack.c.l.b16 %v200
    %v340 = vunpack.c.h.b16 %v200
    %v341 = vunpack.c.l.b16 %v201
    %v342 = vunpack.c.h.b16 %v201
    %v343 = vunpack.c.l.b16 %v202
    %v344 = vunpack.c.h.b16 %v202
    %v345 = vunpack.c.l.b16 %v203
    %v346 = vunpack.c.h.b16 %v203
    %v347 = vunpack.c.l.b16 %v204
    %v348 = vunpack.c.h.b16 %v204
    %v349 = vunpack.c.l.b16 %v205
    %v350 = vunpack.c.h.b16 %v205
    %v351 = vunpack.c.l.b16 %v206
    %v352 = vunpack.c.h.b16 %v206
    %v353 = vunpack.c.l.b16 %v207
    %v354 = vunpack.c.h.b16 %v207
    %v355 = vunpack.c.l.b16 %v208
    %v356 = vunpack.c.h.b16 %v208
    %v357 = vunpack.c.l.b16 %v209
    %v358 = vunpack.c.h.b16 %v209
    %v359 = vunpack.c.l.b16 %v210
    %v360 = vunpack.c.h.b16 %v210
    %v361 = vunpack.c.l.b16 %v211
    %v362 = vunpack.c.h.b16 %v211
    %v363 = vunpack.c.l.b16 %v212
    %v364 = vunpack.c.h.b16 %v212
    %v365 = vunpack.c.l.b16 %v213
    %v366 = vunpack.c.h.b16 %v213
    %v367 = vunpack.c.l.b16 %v214
    %v368 = vunpack.c.h.b16 %v214
    %v369 = vunpack.c.l.b16 %v215
    %v370 = vunpack.c.h.b16 %v215
    %v371 = vunpack.c.l.b16 %v216
    %v372 = vunpack.c.h.b16 %v216
    %v373 = vunpack.c.l.b16 %v217
    %v374 = vunpack.c.h.b16 %v217
    %v375 = vunpack.c.l.b16 %v218
    %v376 = vunpack.c.h.b16 %v218
    %v377 = vunpack.c.l.b16 %v219
    %v378 = vunpack.c.h.b16 %v219
    %v379 = vunpack.c.l.b16 %v220
    %v380 = vunpack.c.h.b16 %v220
    %v381 = vunpack.c.l.b16 %v221
    %v382 = vunpack.c.h.b16 %v221
    %v383 = vunpack.c.l.b16 %v222
    %v384 = vunpack.c.h.b16 %v222
    %v385 = vpack.c.b16 %v313, %v305
    %v386 = vpack.c.b16 %v314, %v306
    %v387 = vpack.c.b16 %v315, %v307
    %v388 = vpack.c.b16 %v316, %v308
    %v389 = vpack.c.b16 %v317, %v309
    %v390 = vpack.c.b16 %v318, %v310
    %v391 = vpack.c.b16 %v319, %v311
    %v392 = vpack.c.b16 %v320, %v312
    %v393 = vpack.c.b16 %v329, %v321
    %v394 = vpack.c.b16 %v330, %v322
    %v395 = vpack.c.b16 %v331, %v323
    %v396 = vpack.c.b16 %v332, %v324
    %v397 = vpack.c.b16 %v333, %v325
    %v398 = vpack.c.b16 %v334, %v326
    %v399 = vpack.c.b16 %v335, %v327
    %v400 = vpack.c.b16 %v336, %v328
    %v401 = vpack.c.b16 %v345, %v337
    %v402 = vpack.c.b16 %v346, %v338
    %v403 = vpack.c.b16 %v347, %v339
    %v404 = vpack.c.b16 %v348, %v340
    %v405 = vpack.c.b16 %v349, %v341
    %v406 = vpack.c.b16 %v350, %v342
    %v407 = vpack.c.b16 %v351, %v343
    %v408 = vpack.c.b16 %v352, %v344
    %v409 = vpack.c.b16 %v361, %v353
    %v410 = vpack.c.b16 %v362, %v354
    %v411 = vpack.c.b16 %v363, %v355
    %v412 = vpack.c.b16 %v364, %v356
    %v413 = vpack.c.b16 %v365, %v357
    %v414 = vpack.c.b16 %v366, %v358
    %v415 = vpack.c.b16 %v367, %v359
    %v416 = vpack.c.b16 %v368, %v360
    %v417 = vpack.c.b16 %v377, %v369
    %v418 = vpack.c.b16 %v378, %v370
    %v419 = vpack.c.b16 %v379, %v371
    %v420 = vpack.c.b16 %v380, %v372
    %v421 = vpack.c.b16 %v381, %v373
    %v422 = vpack.c.b16 %v382, %v374
    %v423 = vpack.c.b16 %v383, %v375
    %v424 = vpack.c.b16 %v384, %v376
    %vm465 = vcmask 654336
    %v467 = vsel %vm465, %v182, 0
    %469 = vmatprep.subr.bf16.mxu0 %v386
    %470 = vmatpush1.bf16.msra.mxu0 %v385
    %471 = vmatprep.subr.bf16.mxu0 %v394
    %472 = vmatpush1.bf16.msra.mxu0 %v393
    %473 = vmatprep.subr.bf16.mxu0 %v402
    %474 = vmatpush1.bf16.msra.mxu0 %v401
    %475 = vmatprep.subr.bf16.mxu0 %v410
    %476 = vmatpush1.bf16.msra.mxu0 %v409
    %477 = vmatprep.subr.bf16.mxu0 %v418
    %478 = vmatpush1.bf16.msra.mxu0 %v417
    %479 = vmatprep.subr.bf16.mxu0 0
    %480 = vmatpush1.bf16.msra.mxu0 0
    %481 = vmatprep.subr.bf16.mxu0 0
    %482 = vmatpush1.bf16.msra.mxu0 0
    %483 = vmatprep.subr.bf16.mxu0 0
    %484 = vmatpush1.bf16.msra.mxu0 0
    %485 = vmatprep.subr.bf16.mxu0 0
    %486 = vmatpush1.bf16.msra.mxu0 0
    %487 = vmatprep.subr.bf16.mxu0 0
    %488 = vmatpush1.bf16.msra.mxu0 0
    %489 = vmatprep.subr.bf16.mxu0 0
    %490 = vmatpush1.bf16.msra.mxu0 0
    %491 = vmatprep.subr.bf16.mxu0 0
    %492 = vmatpush1.bf16.msra.mxu0 0
    %493 = vmatprep.subr.bf16.mxu0 0
    %494 = vmatpush1.bf16.msra.mxu0 0
    %495 = vmatprep.subr.bf16.mxu0 0
    %496 = vmatpush1.bf16.msra.mxu0 0
    %497 = vmatprep.subr.bf16.mxu0 0
    %498 = vmatpush1.bf16.msra.mxu0 0
    %499 = vmatprep.subr.bf16.mxu0 0
    %500 = vmatpush1.bf16.msra.mxu0 0
    %501 = vmatprep.mubr.bf16.mxu0 0
    %502 = vmatmul.mubr.bf16.gmra.mrb[0].mxu0 %v467
    %v503 = vpop.f32.mrb[0].mxu0
    %v504 = vadd.f32 %v228, %v503
    %v505 = vpop.f32.mrb[0].mxu0
    %v506 = vadd.f32 %v232, %v505
    %v507 = vpop.f32.mrb[0].mxu0
    %v508 = vpop.f32.mrb[0].mxu0
    %509 = vdwg.mxu0
    %510 = vmatprep.subr.bf16.mxu0 %v388
    %511 = vmatpush1.bf16.msra.mxu0 %v387
    %512 = vmatprep.subr.bf16.mxu0 %v396
    %513 = vmatpush1.bf16.msra.mxu0 %v395
    %514 = vmatprep.subr.bf16.mxu0 %v404
    %515 = vmatpush1.bf16.msra.mxu0 %v403
    %516 = vmatprep.subr.bf16.mxu0 %v412
    %517 = vmatpush1.bf16.msra.mxu0 %v411
    %518 = vmatprep.subr.bf16.mxu0 %v420
    %519 = vmatpush1.bf16.msra.mxu0 %v419
    %520 = vmatprep.subr.bf16.mxu0 0
    %521 = vmatpush1.bf16.msra.mxu0 0
    %522 = vmatprep.subr.bf16.mxu0 0
    %523 = vmatpush1.bf16.msra.mxu0 0
    %524 = vmatprep.subr.bf16.mxu0 0
    %525 = vmatpush1.bf16.msra.mxu0 0
    %526 = vmatprep.subr.bf16.mxu0 0
    %527 = vmatpush1.bf16.msra.mxu0 0
    %528 = vmatprep.subr.bf16.mxu0 0
    %529 = vmatpush1.bf16.msra.mxu0 0
    %530 = vmatprep.subr.bf16.mxu0 0
    %531 = vmatpush1.bf16.msra.mxu0 0
    %532 = vmatprep.subr.bf16.mxu0 0
    %533 = vmatpush1.bf16.msra.mxu0 0
    %534 = vmatprep.subr.bf16.mxu0 0
    %535 = vmatpush1.bf16.msra.mxu0 0
    %536 = vmatprep.subr.bf16.mxu0 0
    %537 = vmatpush1.bf16.msra.mxu0 0
    %538 = vmatprep.subr.bf16.mxu0 0
    %539 = vmatpush1.bf16.msra.mxu0 0
    %540 = vmatprep.subr.bf16.mxu0 0
    %541 = vmatpush1.bf16.msra.mxu0 0
    %542 = vmatprep.mubr.bf16.mxu0 0
    %543 = vmatmul.mubr.bf16.gmra.mrb[0].mxu0 %v467
    %v544 = vpop.f32.mrb[0].mxu0
    %v545 = vadd.f32 %v236, %v544
    %v546 = vpop.f32.mrb[0].mxu0
    %v547 = vadd.f32 %v240, %v546
    %v548 = vpop.f32.mrb[0].mxu0
    %v549 = vpop.f32.mrb[0].mxu0
    %550 = vdwg.mxu0
    %551 = vmatprep.subr.bf16.mxu0 %v390
    %552 = vmatpush1.bf16.msra.mxu0 %v389
    %553 = vmatprep.subr.bf16.mxu0 %v398
    %554 = vmatpush1.bf16.msra.mxu0 %v397
    %555 = vmatprep.subr.bf16.mxu0 %v406
    %556 = vmatpush1.bf16.msra.mxu0 %v405
    %557 = vmatprep.subr.bf16.mxu0 %v414
    %558 = vmatpush1.bf16.msra.mxu0 %v413
    %559 = vmatprep.subr.bf16.mxu0 %v422
    %560 = vmatpush1.bf16.msra.mxu0 %v421
    %561 = vmatprep.subr.bf16.mxu0 0
    %562 = vmatpush1.bf16.msra.mxu0 0
    %563 = vmatprep.subr.bf16.mxu0 0
    %564 = vmatpush1.bf16.msra.mxu0 0
    %565 = vmatprep.subr.bf16.mxu0 0
    %566 = vmatpush1.bf16.msra.mxu0 0
    %567 = vmatprep.subr.bf16.mxu0 0
    %568 = vmatpush1.bf16.msra.mxu0 0
    %569 = vmatprep.subr.bf16.mxu0 0
    %570 = vmatpush1.bf16.msra.mxu0 0
    %571 = vmatprep.subr.bf16.mxu0 0
    %572 = vmatpush1.bf16.msra.mxu0 0
    %573 = vmatprep.subr.bf16.mxu0 0
    %574 = vmatpush1.bf16.msra.mxu0 0
    %575 = vmatprep.subr.bf16.mxu0 0
    %576 = vmatpush1.bf16.msra.mxu0 0
    %577 = vmatprep.subr.bf16.mxu0 0
    %578 = vmatpush1.bf16.msra.mxu0 0
    %579 = vmatprep.subr.bf16.mxu0 0
    %580 = vmatpush1.bf16.msra.mxu0 0
    %581 = vmatprep.subr.bf16.mxu0 0
    %582 = vmatpush1.bf16.msra.mxu0 0
    %583 = vmatprep.mubr.bf16.mxu0 0
    %584 = vmatmul.mubr.bf16.gmra.mrb[0].mxu0 %v467
    %v585 = vpop.f32.mrb[0].mxu0
    %v586 = vadd.f32 %v244, %v585
    %v587 = vpop.f32.mrb[0].mxu0
    %v588 = vadd.f32 %v248, %v587
    %v589 = vpop.f32.mrb[0].mxu0
    %v590 = vpop.f32.mrb[0].mxu0
    %591 = vdwg.mxu0
    %592 = vmatprep.subr.bf16.mxu0 %v392
    %593 = vmatpush1.bf16.msra.mxu0 %v391
    %594 = vmatprep.subr.bf16.mxu0 %v400
    %595 = vmatpush1.bf16.msra.mxu0 %v399
    %596 = vmatprep.subr.bf16.mxu0 %v408
    %597 = vmatpush1.bf16.msra.mxu0 %v407
    %598 = vmatprep.subr.bf16.mxu0 %v416
    %599 = vmatpush1.bf16.msra.mxu0 %v415
    %600 = vmatprep.subr.bf16.mxu0 %v424
    %601 = vmatpush1.bf16.msra.mxu0 %v423
    %602 = vmatprep.subr.bf16.mxu0 0
    %603 = vmatpush1.bf16.msra.mxu0 0
    %604 = vmatprep.subr.bf16.mxu0 0
    %605 = vmatpush1.bf16.msra.mxu0 0
    %606 = vmatprep.subr.bf16.mxu0 0
    %607 = vmatpush1.bf16.msra.mxu0 0
    %608 = vmatprep.subr.bf16.mxu0 0
    %609 = vmatpush1.bf16.msra.mxu0 0
    %610 = vmatprep.subr.bf16.mxu0 0
    %611 = vmatpush1.bf16.msra.mxu0 0
    %612 = vmatprep.subr.bf16.mxu0 0
    %613 = vmatpush1.bf16.msra.mxu0 0
    %614 = vmatprep.subr.bf16.mxu0 0
    %615 = vmatpush1.bf16.msra.mxu0 0
    %616 = vmatprep.subr.bf16.mxu0 0
    %617 = vmatpush1.bf16.msra.mxu0 0
    %618 = vmatprep.subr.bf16.mxu0 0
    %619 = vmatpush1.bf16.msra.mxu0 0
    %620 = vmatprep.subr.bf16.mxu0 0
    %621 = vmatpush1.bf16.msra.mxu0 0
    %622 = vmatprep.subr.bf16.mxu0 0
    %623 = vmatpush1.bf16.msra.mxu0 0
    %624 = vmatprep.mubr.bf16.mxu0 0
    %625 = vmatmul.mubr.bf16.gmra.mrb[0].mxu0 %v467
    %v626 = vpop.f32.mrb[0].mxu0
    %v627 = vadd.f32 %v252, %v626
    %v628 = vpop.f32.mrb[0].mxu0
    %v629 = vadd.f32 %v256, %v628
    %v630 = vpop.f32.mrb[0].mxu0
    %v631 = vpop.f32.mrb[0].mxu0
    %632 = vdwg.mxu0
    %vm633 = vcmp.gt.f32.partialorder %v504, 0.0
    %vm634 = vcmp.gt.f32.partialorder %v506, 0.0
    %vm635 = vcmp.gt.f32.partialorder %v545, 0.0
    %vm636 = vcmp.gt.f32.partialorder %v547, 0.0
    %vm637 = vcmp.gt.f32.partialorder %v586, 0.0
    %vm638 = vcmp.gt.f32.partialorder %v588, 0.0
    %vm639 = vcmp.gt.f32.partialorder %v627, 0.0
    %vm640 = vcmp.gt.f32.partialorder %v629, 0.0
    %v641 = vmul.f32 %v504, 0.2
    %v642 = vmul.f32 %v506, 0.2
    %v643 = vmul.f32 %v545, 0.2
    %v644 = vmul.f32 %v547, 0.2
    %v645 = vmul.f32 %v586, 0.2
    %v646 = vmul.f32 %v588, 0.2
    %v647 = vmul.f32 %v627, 0.2
    %v648 = vmul.f32 %v629, 0.2
    %v649 = vsel %vm633, %v504, %v641
    %v650 = vsel %vm634, %v506, %v642
    %v651 = vsel %vm635, %v545, %v643
    %v652 = vsel %vm636, %v547, %v644
    %v653 = vsel %vm637, %v586, %v645
    %v654 = vsel %vm638, %v588, %v646
    %v655 = vsel %vm639, %v627, %v647
    %v656 = vsel %vm640, %v629, %v648
    %s657 = smul.u32 4, 128
    %s658 = smul.u32 %s657, 8
    %s659 = sshll.u32 %s658, 4
    %660 = dma.done [#allocation5], %s659
    %v661 = vpack.c.bf16 %v649, %v649
    %v662 = vpack.c.bf16 %v650, %v650
    %v663 = vpack.c.bf16 %v651, %v651
    %v664 = vpack.c.bf16 %v652, %v652
    %v665 = vpack.c.bf16 %v653, %v653
    %v666 = vpack.c.bf16 %v654, %v654
    %v667 = vpack.c.bf16 %v655, %v655
    %v668 = vpack.c.bf16 %v656, %v656
    %v669 = vld [vmem:[#allocation2] sm:$0xff]
    %v670 = vld [vmem:[#allocation2 + $0x8] sm:$0xff]
    %v671 = vld [vmem:[#allocation2 + $0x10] sm:$0xff]
    %v672 = vld [vmem:[#allocation2 + $0x18] sm:$0xff]
    %v673 = vld [vmem:[#allocation2 + $0x20] sm:$0xff]
    %v674 = vld [vmem:[#allocation2 + $0x28] sm:$0xff]
    %v675 = vld [vmem:[#allocation2 + $0x30] sm:$0xff]
    %v676 = vld [vmem:[#allocation2 + $0x38] sm:$0xff]
    %v677 = vld [vmem:[#allocation2 + $0x40] sm:$0xff]
    %v678 = vld [vmem:[#allocation2 + $0x48] sm:$0xff]
    %v679 = vld [vmem:[#allocation2 + $0x50] sm:$0xff]
    %v680 = vld [vmem:[#allocation2 + $0x58] sm:$0xff]
    %v681 = vld [vmem:[#allocation2 + $0x60] sm:$0xff]
    %v682 = vld [vmem:[#allocation2 + $0x68] sm:$0xff]
    %v683 = vld [vmem:[#allocation2 + $0x70] sm:$0xff]
    %v684 = vld [vmem:[#allocation2 + $0x78] sm:$0xff]
    %v685 = vld [vmem:[#allocation2 + $0x80] sm:$0xff]
    %v686 = vld [vmem:[#allocation2 + $0x88] sm:$0xff]
    %v687 = vld [vmem:[#allocation2 + $0x90] sm:$0xff]
    %v688 = vld [vmem:[#allocation2 + $0x98] sm:$0xff]
    %v689 = vld [vmem:[#allocation2 + $0xa0] sm:$0xff]
    %v690 = vld [vmem:[#allocation2 + $0xa8] sm:$0xff]
    %v691 = vld [vmem:[#allocation2 + $0xb0] sm:$0xff]
    %v692 = vld [vmem:[#allocation2 + $0xb8] sm:$0xff]
    %v693 = vld [vmem:[#allocation2 + $0xc0] sm:$0xff]
    %v694 = vld [vmem:[#allocation2 + $0xc8] sm:$0xff]
    %v695 = vld [vmem:[#allocation2 + $0xd0] sm:$0xff]
    %v696 = vld [vmem:[#allocation2 + $0xd8] sm:$0xff]
    %v697 = vld [vmem:[#allocation2 + $0xe0] sm:$0xff]
    %v698 = vld [vmem:[#allocation2 + $0xe8] sm:$0xff]
    %v699 = vld [vmem:[#allocation2 + $0xf0] sm:$0xff]
    %v700 = vld [vmem:[#allocation2 + $0xf8] sm:$0xff]
    %v701 = vld [vmem:[#allocation2 + $0x100] sm:$0xff]
    %v702 = vld [vmem:[#allocation2 + $0x108] sm:$0xff]
    %v703 = vld [vmem:[#allocation2 + $0x110] sm:$0xff]
    %v704 = vld [vmem:[#allocation2 + $0x118] sm:$0xff]
    %v705 = vld [vmem:[#allocation2 + $0x120] sm:$0xff]
    %v706 = vld [vmem:[#allocation2 + $0x128] sm:$0xff]
    %v707 = vld [vmem:[#allocation2 + $0x130] sm:$0xff]
    %v708 = vld [vmem:[#allocation2 + $0x138] sm:$0xff]
    %v709 = vld [vmem:[#allocation2 + $0x140] sm:$0xff]
    %v710 = vld [vmem:[#allocation2 + $0x148] sm:$0xff]
    %v711 = vld [vmem:[#allocation2 + $0x150] sm:$0xff]
    %v712 = vld [vmem:[#allocation2 + $0x158] sm:$0xff]
    %v713 = vld [vmem:[#allocation2 + $0x160] sm:$0xff]
    %v714 = vld [vmem:[#allocation2 + $0x168] sm:$0xff]
    %v715 = vld [vmem:[#allocation2 + $0x170] sm:$0xff]
    %v716 = vld [vmem:[#allocation2 + $0x178] sm:$0xff]
    %v717 = vld [vmem:[#allocation2 + $0x180] sm:$0xff]
    %v718 = vld [vmem:[#allocation2 + $0x188] sm:$0xff]
    %v719 = vld [vmem:[#allocation2 + $0x190] sm:$0xff]
    %v720 = vld [vmem:[#allocation2 + $0x198] sm:$0xff]
    %v721 = vld [vmem:[#allocation2 + $0x1a0] sm:$0xff]
    %v722 = vld [vmem:[#allocation2 + $0x1a8] sm:$0xff]
    %v723 = vld [vmem:[#allocation2 + $0x1b0] sm:$0xff]
    %v724 = vld [vmem:[#allocation2 + $0x1b8] sm:$0xff]
    %v725 = vld [vmem:[#allocation2 + $0x1c0] sm:$0xff]
    %v726 = vld [vmem:[#allocation2 + $0x1c8] sm:$0xff]
    %v727 = vld [vmem:[#allocation2 + $0x1d0] sm:$0xff]
    %v728 = vld [vmem:[#allocation2 + $0x1d8] sm:$0xff]
    %v729 = vld [vmem:[#allocation2 + $0x1e0] sm:$0xff]
    %v730 = vld [vmem:[#allocation2 + $0x1e8] sm:$0xff]
    %v731 = vld [vmem:[#allocation2 + $0x1f0] sm:$0xff]
    %v732 = vld [vmem:[#allocation2 + $0x1f8] sm:$0xff]
    %v733 = vld [vmem:[#allocation2 + $0x200] sm:$0xff]
    %v734 = vld [vmem:[#allocation2 + $0x208] sm:$0xff]
    %v735 = vld [vmem:[#allocation2 + $0x210] sm:$0xff]
    %v736 = vld [vmem:[#allocation2 + $0x218] sm:$0xff]
    %v737 = vld [vmem:[#allocation2 + $0x220] sm:$0xff]
    %v738 = vld [vmem:[#allocation2 + $0x228] sm:$0xff]
    %v739 = vld [vmem:[#allocation2 + $0x230] sm:$0xff]
    %v740 = vld [vmem:[#allocation2 + $0x238] sm:$0xff]
    %v741 = vld [vmem:[#allocation2 + $0x240] sm:$0xff]
    %v742 = vld [vmem:[#allocation2 + $0x248] sm:$0xff]
    %v743 = vld [vmem:[#allocation2 + $0x250] sm:$0xff]
    %v744 = vld [vmem:[#allocation2 + $0x258] sm:$0xff]
    %v745 = vld [vmem:[#allocation2 + $0x260] sm:$0xff]
    %v746 = vld [vmem:[#allocation2 + $0x268] sm:$0xff]
    %v747 = vld [vmem:[#allocation2 + $0x270] sm:$0xff]
    %v748 = vld [vmem:[#allocation2 + $0x278] sm:$0xff]
    %v749 = vld [vmem:[#allocation2 + $0x280] sm:$0xff]
    %v750 = vld [vmem:[#allocation2 + $0x288] sm:$0xff]
    %v751 = vld [vmem:[#allocation2 + $0x290] sm:$0xff]
    %v752 = vld [vmem:[#allocation2 + $0x298] sm:$0xff]
    %v753 = vld [vmem:[#allocation2 + $0x2a0] sm:$0xff]
    %v754 = vld [vmem:[#allocation2 + $0x2a8] sm:$0xff]
    %v755 = vld [vmem:[#allocation2 + $0x2b0] sm:$0xff]
    %v756 = vld [vmem:[#allocation2 + $0x2b8] sm:$0xff]
    %v757 = vld [vmem:[#allocation2 + $0x2c0] sm:$0xff]
    %v758 = vld [vmem:[#allocation2 + $0x2c8] sm:$0xff]
    %v759 = vld [vmem:[#allocation2 + $0x2d0] sm:$0xff]
    %v760 = vld [vmem:[#allocation2 + $0x2d8] sm:$0xff]
    %v761 = vld [vmem:[#allocation2 + $0x2e0] sm:$0xff]
    %v762 = vld [vmem:[#allocation2 + $0x2e8] sm:$0xff]
    %v763 = vld [vmem:[#allocation2 + $0x2f0] sm:$0xff]
    %v764 = vld [vmem:[#allocation2 + $0x2f8] sm:$0xff]
    %v765 = vld [vmem:[#allocation2 + $0x300] sm:$0xff]
    %v766 = vld [vmem:[#allocation2 + $0x308] sm:$0xff]
    %v767 = vld [vmem:[#allocation2 + $0x310] sm:$0xff]
    %v768 = vld [vmem:[#allocation2 + $0x318] sm:$0xff]
    %v769 = vld [vmem:[#allocation2 + $0x320] sm:$0xff]
    %v770 = vld [vmem:[#allocation2 + $0x328] sm:$0xff]
    %v771 = vld [vmem:[#allocation2 + $0x330] sm:$0xff]
    %v772 = vld [vmem:[#allocation2 + $0x338] sm:$0xff]
    %v773 = vld [vmem:[#allocation2 + $0x340] sm:$0xff]
    %v774 = vld [vmem:[#allocation2 + $0x348] sm:$0xff]
    %v775 = vld [vmem:[#allocation2 + $0x350] sm:$0xff]
    %v776 = vld [vmem:[#allocation2 + $0x358] sm:$0xff]
    %v777 = vld [vmem:[#allocation2 + $0x360] sm:$0xff]
    %v778 = vld [vmem:[#allocation2 + $0x368] sm:$0xff]
    %v779 = vld [vmem:[#allocation2 + $0x370] sm:$0xff]
    %v780 = vld [vmem:[#allocation2 + $0x378] sm:$0xff]
    %v781 = vld [vmem:[#allocation2 + $0x380] sm:$0xff]
    %v782 = vld [vmem:[#allocation2 + $0x388] sm:$0xff]
    %v783 = vld [vmem:[#allocation2 + $0x390] sm:$0xff]
    %v784 = vld [vmem:[#allocation2 + $0x398] sm:$0xff]
    %v785 = vld [vmem:[#allocation2 + $0x3a0] sm:$0xff]
    %v786 = vld [vmem:[#allocation2 + $0x3a8] sm:$0xff]
    %v787 = vld [vmem:[#allocation2 + $0x3b0] sm:$0xff]
    %v788 = vld [vmem:[#allocation2 + $0x3b8] sm:$0xff]
    %v789 = vld [vmem:[#allocation2 + $0x3c0] sm:$0xff]
    %v790 = vld [vmem:[#allocation2 + $0x3c8] sm:$0xff]
    %v791 = vld [vmem:[#allocation2 + $0x3d0] sm:$0xff]
    %v792 = vld [vmem:[#allocation2 + $0x3d8] sm:$0xff]
    %v793 = vld [vmem:[#allocation2 + $0x3e0] sm:$0xff]
    %v794 = vld [vmem:[#allocation2 + $0x3e8] sm:$0xff]
    %v795 = vld [vmem:[#allocation2 + $0x3f0] sm:$0xff]
    %v796 = vld [vmem:[#allocation2 + $0x3f8] sm:$0xff]
    %v797 = vld [vmem:[#allocation2 + $0x400] sm:$0xff]
    %v798 = vld [vmem:[#allocation2 + $0x408] sm:$0xff]
    %v799 = vld [vmem:[#allocation2 + $0x410] sm:$0xff]
    %v800 = vld [vmem:[#allocation2 + $0x418] sm:$0xff]
    %v801 = vld [vmem:[#allocation2 + $0x420] sm:$0xff]
    %v802 = vld [vmem:[#allocation2 + $0x428] sm:$0xff]
    %v803 = vld [vmem:[#allocation2 + $0x430] sm:$0xff]
    %v804 = vld [vmem:[#allocation2 + $0x438] sm:$0xff]
    %v805 = vld [vmem:[#allocation2 + $0x440] sm:$0xff]
    %v806 = vld [vmem:[#allocation2 + $0x448] sm:$0xff]
    %v807 = vld [vmem:[#allocation2 + $0x450] sm:$0xff]
    %v808 = vld [vmem:[#allocation2 + $0x458] sm:$0xff]
    %v809 = vld [vmem:[#allocation2 + $0x460] sm:$0xff]
    %v810 = vld [vmem:[#allocation2 + $0x468] sm:$0xff]
    %v811 = vld [vmem:[#allocation2 + $0x470] sm:$0xff]
    %v812 = vld [vmem:[#allocation2 + $0x478] sm:$0xff]
    %v813 = vld [vmem:[#allocation2 + $0x480] sm:$0xff]
    %v814 = vld [vmem:[#allocation2 + $0x488] sm:$0xff]
    %v815 = vld [vmem:[#allocation2 + $0x490] sm:$0xff]
    %v816 = vld [vmem:[#allocation2 + $0x498] sm:$0xff]
    %v817 = vld [vmem:[#allocation2 + $0x4a0] sm:$0xff]
    %v818 = vld [vmem:[#allocation2 + $0x4a8] sm:$0xff]
    %v819 = vld [vmem:[#allocation2 + $0x4b0] sm:$0xff]
    %v820 = vld [vmem:[#allocation2 + $0x4b8] sm:$0xff]
    %v821 = vld [vmem:[#allocation2 + $0x4c0] sm:$0xff]
    %v822 = vld [vmem:[#allocation2 + $0x4c8] sm:$0xff]
    %v823 = vld [vmem:[#allocation2 + $0x4d0] sm:$0xff]
    %v824 = vld [vmem:[#allocation2 + $0x4d8] sm:$0xff]
    %v825 = vld [vmem:[#allocation2 + $0x4e0] sm:$0xff]
    %v826 = vld [vmem:[#allocation2 + $0x4e8] sm:$0xff]
    %v827 = vld [vmem:[#allocation2 + $0x4f0] sm:$0xff]
    %v828 = vld [vmem:[#allocation2 + $0x4f8] sm:$0xff]
    %v829 = vld [vmem:[#allocation2 + $0x500] sm:$0xff]
    %v830 = vld [vmem:[#allocation2 + $0x508] sm:$0xff]
    %v831 = vld [vmem:[#allocation2 + $0x510] sm:$0xff]
    %v832 = vld [vmem:[#allocation2 + $0x518] sm:$0xff]
    %v833 = vld [vmem:[#allocation2 + $0x520] sm:$0xff]
    %v834 = vld [vmem:[#allocation2 + $0x528] sm:$0xff]
    %v835 = vld [vmem:[#allocation2 + $0x530] sm:$0xff]
    %v836 = vld [vmem:[#allocation2 + $0x538] sm:$0xff]
    %v837 = vld [vmem:[#allocation2 + $0x540] sm:$0xff]
    %v838 = vld [vmem:[#allocation2 + $0x548] sm:$0xff]
    %v839 = vld [vmem:[#allocation2 + $0x550] sm:$0xff]
    %v840 = vld [vmem:[#allocation2 + $0x558] sm:$0xff]
    %v841 = vld [vmem:[#allocation2 + $0x560] sm:$0xff]
    %v842 = vld [vmem:[#allocation2 + $0x568] sm:$0xff]
    %v843 = vld [vmem:[#allocation2 + $0x570] sm:$0xff]
    %v844 = vld [vmem:[#allocation2 + $0x578] sm:$0xff]
    %v845 = vld [vmem:[#allocation2 + $0x580] sm:$0xff]
    %v846 = vld [vmem:[#allocation2 + $0x588] sm:$0xff]
    %v847 = vld [vmem:[#allocation2 + $0x590] sm:$0xff]
    %v848 = vld [vmem:[#allocation2 + $0x598] sm:$0xff]
    %v849 = vld [vmem:[#allocation2 + $0x5a0] sm:$0xff]
    %v850 = vld [vmem:[#allocation2 + $0x5a8] sm:$0xff]
    %v851 = vld [vmem:[#allocation2 + $0x5b0] sm:$0xff]
    %v852 = vld [vmem:[#allocation2 + $0x5b8] sm:$0xff]
    %v853 = vld [vmem:[#allocation2 + $0x5c0] sm:$0xff]
    %v854 = vld [vmem:[#allocation2 + $0x5c8] sm:$0xff]
    %v855 = vld [vmem:[#allocation2 + $0x5d0] sm:$0xff]
    %v856 = vld [vmem:[#allocation2 + $0x5d8] sm:$0xff]
    %v857 = vld [vmem:[#allocation2 + $0x5e0] sm:$0xff]
    %v858 = vld [vmem:[#allocation2 + $0x5e8] sm:$0xff]
    %v859 = vld [vmem:[#allocation2 + $0x5f0] sm:$0xff]
    %v860 = vld [vmem:[#allocation2 + $0x5f8] sm:$0xff]
    %v861 = vld [vmem:[#allocation2 + $0x600] sm:$0xff]
    %v862 = vld [vmem:[#allocation2 + $0x608] sm:$0xff]
    %v863 = vld [vmem:[#allocation2 + $0x610] sm:$0xff]
    %v864 = vld [vmem:[#allocation2 + $0x618] sm:$0xff]
    %v865 = vld [vmem:[#allocation2 + $0x620] sm:$0xff]
    %v866 = vld [vmem:[#allocation2 + $0x628] sm:$0xff]
    %v867 = vld [vmem:[#allocation2 + $0x630] sm:$0xff]
    %v868 = vld [vmem:[#allocation2 + $0x638] sm:$0xff]
    %v869 = vld [vmem:[#allocation2 + $0x640] sm:$0xff]
    %v870 = vld [vmem:[#allocation2 + $0x648] sm:$0xff]
    %v871 = vld [vmem:[#allocation2 + $0x650] sm:$0xff]
    %v872 = vld [vmem:[#allocation2 + $0x658] sm:$0xff]
    %v873 = vld [vmem:[#allocation2 + $0x660] sm:$0xff]
    %v874 = vld [vmem:[#allocation2 + $0x668] sm:$0xff]
    %v875 = vld [vmem:[#allocation2 + $0x670] sm:$0xff]
    %v876 = vld [vmem:[#allocation2 + $0x678] sm:$0xff]
    %v877 = vld [vmem:[#allocation2 + $0x680] sm:$0xff]
    %v878 = vld [vmem:[#allocation2 + $0x688] sm:$0xff]
    %v879 = vld [vmem:[#allocation2 + $0x690] sm:$0xff]
    %v880 = vld [vmem:[#allocation2 + $0x698] sm:$0xff]
    %v881 = vld [vmem:[#allocation2 + $0x6a0] sm:$0xff]
    %v882 = vld [vmem:[#allocation2 + $0x6a8] sm:$0xff]
    %v883 = vld [vmem:[#allocation2 + $0x6b0] sm:$0xff]
    %v884 = vld [vmem:[#allocation2 + $0x6b8] sm:$0xff]
    %v885 = vld [vmem:[#allocation2 + $0x6c0] sm:$0xff]
    %v886 = vld [vmem:[#allocation2 + $0x6c8] sm:$0xff]
    %v887 = vld [vmem:[#allocation2 + $0x6d0] sm:$0xff]
    %v888 = vld [vmem:[#allocation2 + $0x6d8] sm:$0xff]
    %v889 = vld [vmem:[#allocation2 + $0x6e0] sm:$0xff]
    %v890 = vld [vmem:[#allocation2 + $0x6e8] sm:$0xff]
    %v891 = vld [vmem:[#allocation2 + $0x6f0] sm:$0xff]
    %v892 = vld [vmem:[#allocation2 + $0x6f8] sm:$0xff]
    %v893 = vld [vmem:[#allocation2 + $0x700] sm:$0xff]
    %v894 = vld [vmem:[#allocation2 + $0x708] sm:$0xff]
    %v895 = vld [vmem:[#allocation2 + $0x710] sm:$0xff]
    %v896 = vld [vmem:[#allocation2 + $0x718] sm:$0xff]
    %v897 = vld [vmem:[#allocation2 + $0x720] sm:$0xff]
    %v898 = vld [vmem:[#allocation2 + $0x728] sm:$0xff]
    %v899 = vld [vmem:[#allocation2 + $0x730] sm:$0xff]
    %v900 = vld [vmem:[#allocation2 + $0x738] sm:$0xff]
    %v901 = vld [vmem:[#allocation2 + $0x740] sm:$0xff]
    %v902 = vld [vmem:[#allocation2 + $0x748] sm:$0xff]
    %v903 = vld [vmem:[#allocation2 + $0x750] sm:$0xff]
    %v904 = vld [vmem:[#allocation2 + $0x758] sm:$0xff]
    %v905 = vld [vmem:[#allocation2 + $0x760] sm:$0xff]
    %v906 = vld [vmem:[#allocation2 + $0x768] sm:$0xff]
    %v907 = vld [vmem:[#allocation2 + $0x770] sm:$0xff]
    %v908 = vld [vmem:[#allocation2 + $0x778] sm:$0xff]
    %v909 = vld [vmem:[#allocation2 + $0x780] sm:$0xff]
    %v910 = vld [vmem:[#allocation2 + $0x788] sm:$0xff]
    %v911 = vld [vmem:[#allocation2 + $0x790] sm:$0xff]
    %v912 = vld [vmem:[#allocation2 + $0x798] sm:$0xff]
    %v913 = vld [vmem:[#allocation2 + $0x7a0] sm:$0xff]
    %v914 = vld [vmem:[#allocation2 + $0x7a8] sm:$0xff]
    %v915 = vld [vmem:[#allocation2 + $0x7b0] sm:$0xff]
    %v916 = vld [vmem:[#allocation2 + $0x7b8] sm:$0xff]
    %v917 = vld [vmem:[#allocation2 + $0x7c0] sm:$0xff]
    %v918 = vld [vmem:[#allocation2 + $0x7c8] sm:$0xff]
    %v919 = vld [vmem:[#allocation2 + $0x7d0] sm:$0xff]
    %v920 = vld [vmem:[#allocation2 + $0x7d8] sm:$0xff]
    %v921 = vld [vmem:[#allocation2 + $0x7e0] sm:$0xff]
    %v922 = vld [vmem:[#allocation2 + $0x7e8] sm:$0xff]
    %v923 = vld [vmem:[#allocation2 + $0x7f0] sm:$0xff]
    %v924 = vld [vmem:[#allocation2 + $0x7f8] sm:$0xff]
    %v925 = vld [vmem:[#allocation2 + $0x800] sm:$0xff]
    %v926 = vld [vmem:[#allocation2 + $0x808] sm:$0xff]
    %v927 = vld [vmem:[#allocation2 + $0x810] sm:$0xff]
    %v928 = vld [vmem:[#allocation2 + $0x818] sm:$0xff]
    %v929 = vld [vmem:[#allocation2 + $0x820] sm:$0xff]
    %v930 = vld [vmem:[#allocation2 + $0x828] sm:$0xff]
    %v931 = vld [vmem:[#allocation2 + $0x830] sm:$0xff]
    %v932 = vld [vmem:[#allocation2 + $0x838] sm:$0xff]
    %v933 = vld [vmem:[#allocation2 + $0x840] sm:$0xff]
    %v934 = vld [vmem:[#allocation2 + $0x848] sm:$0xff]
    %v935 = vld [vmem:[#allocation2 + $0x850] sm:$0xff]
    %v936 = vld [vmem:[#allocation2 + $0x858] sm:$0xff]
    %v937 = vld [vmem:[#allocation2 + $0x860] sm:$0xff]
    %v938 = vld [vmem:[#allocation2 + $0x868] sm:$0xff]
    %v939 = vld [vmem:[#allocation2 + $0x870] sm:$0xff]
    %v940 = vld [vmem:[#allocation2 + $0x878] sm:$0xff]
    %v941 = vld [vmem:[#allocation2 + $0x880] sm:$0xff]
    %v942 = vld [vmem:[#allocation2 + $0x888] sm:$0xff]
    %v943 = vld [vmem:[#allocation2 + $0x890] sm:$0xff]
    %v944 = vld [vmem:[#allocation2 + $0x898] sm:$0xff]
    %v945 = vld [vmem:[#allocation2 + $0x8a0] sm:$0xff]
    %v946 = vld [vmem:[#allocation2 + $0x8a8] sm:$0xff]
    %v947 = vld [vmem:[#allocation2 + $0x8b0] sm:$0xff]
    %v948 = vld [vmem:[#allocation2 + $0x8b8] sm:$0xff]
    %v949 = vld [vmem:[#allocation2 + $0x8c0] sm:$0xff]
    %v950 = vld [vmem:[#allocation2 + $0x8c8] sm:$0xff]
    %v951 = vld [vmem:[#allocation2 + $0x8d0] sm:$0xff]
    %v952 = vld [vmem:[#allocation2 + $0x8d8] sm:$0xff]
    %v953 = vld [vmem:[#allocation2 + $0x8e0] sm:$0xff]
    %v954 = vld [vmem:[#allocation2 + $0x8e8] sm:$0xff]
    %v955 = vld [vmem:[#allocation2 + $0x8f0] sm:$0xff]
    %v956 = vld [vmem:[#allocation2 + $0x8f8] sm:$0xff]
    %v957 = vld [vmem:[#allocation2 + $0x900] sm:$0xff]
    %v958 = vld [vmem:[#allocation2 + $0x908] sm:$0xff]
    %v959 = vld [vmem:[#allocation2 + $0x910] sm:$0xff]
    %v960 = vld [vmem:[#allocation2 + $0x918] sm:$0xff]
    %v961 = vld [vmem:[#allocation2 + $0x920] sm:$0xff]
    %v962 = vld [vmem:[#allocation2 + $0x928] sm:$0xff]
    %v963 = vld [vmem:[#allocation2 + $0x930] sm:$0xff]
    %v964 = vld [vmem:[#allocation2 + $0x938] sm:$0xff]
    %v965 = vld [vmem:[#allocation2 + $0x940] sm:$0xff]
    %v966 = vld [vmem:[#allocation2 + $0x948] sm:$0xff]
    %v967 = vld [vmem:[#allocation2 + $0x950] sm:$0xff]
    %v968 = vld [vmem:[#allocation2 + $0x958] sm:$0xff]
    %v969 = vld [vmem:[#allocation2 + $0x960] sm:$0xff]
    %v970 = vld [vmem:[#allocation2 + $0x968] sm:$0xff]
    %v971 = vld [vmem:[#allocation2 + $0x970] sm:$0xff]
    %v972 = vld [vmem:[#allocation2 + $0x978] sm:$0xff]
    %v973 = vld [vmem:[#allocation2 + $0x980] sm:$0xff]
    %v974 = vld [vmem:[#allocation2 + $0x988] sm:$0xff]
    %v975 = vld [vmem:[#allocation2 + $0x990] sm:$0xff]
    %v976 = vld [vmem:[#allocation2 + $0x998] sm:$0xff]
    %v977 = vld [vmem:[#allocation2 + $0x9a0] sm:$0xff]
    %v978 = vld [vmem:[#allocation2 + $0x9a8] sm:$0xff]
    %v979 = vld [vmem:[#allocation2 + $0x9b0] sm:$0xff]
    %v980 = vld [vmem:[#allocation2 + $0x9b8] sm:$0xff]
    %v981 = vld [vmem:[#allocation2 + $0x9c0] sm:$0xff]
    %v982 = vld [vmem:[#allocation2 + $0x9c8] sm:$0xff]
    %v983 = vld [vmem:[#allocation2 + $0x9d0] sm:$0xff]
    %v984 = vld [vmem:[#allocation2 + $0x9d8] sm:$0xff]
    %v985 = vld [vmem:[#allocation2 + $0x9e0] sm:$0xff]
    %v986 = vld [vmem:[#allocation2 + $0x9e8] sm:$0xff]
    %v987 = vld [vmem:[#allocation2 + $0x9f0] sm:$0xff]
    %v988 = vld [vmem:[#allocation2 + $0x9f8] sm:$0xff]
    %v989 = vld [vmem:[#allocation2 + $0xa00] sm:$0xff]
    %v990 = vld [vmem:[#allocation2 + $0xa08] sm:$0xff]
    %v991 = vld [vmem:[#allocation2 + $0xa10] sm:$0xff]
    %v992 = vld [vmem:[#allocation2 + $0xa18] sm:$0xff]
    %v993 = vld [vmem:[#allocation2 + $0xa20] sm:$0xff]
    %v994 = vld [vmem:[#allocation2 + $0xa28] sm:$0xff]
    %v995 = vld [vmem:[#allocation2 + $0xa30] sm:$0xff]
    %v996 = vld [vmem:[#allocation2 + $0xa38] sm:$0xff]
    %v997 = vld [vmem:[#allocation2 + $0xa40] sm:$0xff]
    %v998 = vld [vmem:[#allocation2 + $0xa48] sm:$0xff]
    %v999 = vld [vmem:[#allocation2 + $0xa50] sm:$0xff]
    %v1000 = vld [vmem:[#allocation2 + $0xa58] sm:$0xff]
    %v1001 = vld [vmem:[#allocation2 + $0xa60] sm:$0xff]
    %v1002 = vld [vmem:[#allocation2 + $0xa68] sm:$0xff]
    %v1003 = vld [vmem:[#allocation2 + $0xa70] sm:$0xff]
    %v1004 = vld [vmem:[#allocation2 + $0xa78] sm:$0xff]
    %v1005 = vld [vmem:[#allocation2 + $0xa80] sm:$0xff]
    %v1006 = vld [vmem:[#allocation2 + $0xa88] sm:$0xff]
    %v1007 = vld [vmem:[#allocation2 + $0xa90] sm:$0xff]
    %v1008 = vld [vmem:[#allocation2 + $0xa98] sm:$0xff]
    %v1009 = vld [vmem:[#allocation2 + $0xaa0] sm:$0xff]
    %v1010 = vld [vmem:[#allocation2 + $0xaa8] sm:$0xff]
    %v1011 = vld [vmem:[#allocation2 + $0xab0] sm:$0xff]
    %v1012 = vld [vmem:[#allocation2 + $0xab8] sm:$0xff]
    %v1013 = vld [vmem:[#allocation2 + $0xac0] sm:$0xff]
    %v1014 = vld [vmem:[#allocation2 + $0xac8] sm:$0xff]
    %v1015 = vld [vmem:[#allocation2 + $0xad0] sm:$0xff]
    %v1016 = vld [vmem:[#allocation2 + $0xad8] sm:$0xff]
    %v1017 = vld [vmem:[#allocation2 + $0xae0] sm:$0xff]
    %v1018 = vld [vmem:[#allocation2 + $0xae8] sm:$0xff]
    %v1019 = vld [vmem:[#allocation2 + $0xaf0] sm:$0xff]
    %v1020 = vld [vmem:[#allocation2 + $0xaf8] sm:$0xff]
    %v1021 = vld [vmem:[#allocation2 + $0xb00] sm:$0xff]
    %v1022 = vld [vmem:[#allocation2 + $0xb08] sm:$0xff]
    %v1023 = vld [vmem:[#allocation2 + $0xb10] sm:$0xff]
    %v1024 = vld [vmem:[#allocation2 + $0xb18] sm:$0xff]
    %v1025 = vld [vmem:[#allocation2 + $0xb20] sm:$0xff]
    %v1026 = vld [vmem:[#allocation2 + $0xb28] sm:$0xff]
    %v1027 = vld [vmem:[#allocation2 + $0xb30] sm:$0xff]
    %v1028 = vld [vmem:[#allocation2 + $0xb38] sm:$0xff]
    %v1029 = vld [vmem:[#allocation2 + $0xb40] sm:$0xff]
    %v1030 = vld [vmem:[#allocation2 + $0xb48] sm:$0xff]
    %v1031 = vld [vmem:[#allocation2 + $0xb50] sm:$0xff]
    %v1032 = vld [vmem:[#allocation2 + $0xb58] sm:$0xff]
    %v1033 = vld [vmem:[#allocation2 + $0xb60] sm:$0xff]
    %v1034 = vld [vmem:[#allocation2 + $0xb68] sm:$0xff]
    %v1035 = vld [vmem:[#allocation2 + $0xb70] sm:$0xff]
    %v1036 = vld [vmem:[#allocation2 + $0xb78] sm:$0xff]
    %v1037 = vld [vmem:[#allocation2 + $0xb80] sm:$0xff]
    %v1038 = vld [vmem:[#allocation2 + $0xb88] sm:$0xff]
    %v1039 = vld [vmem:[#allocation2 + $0xb90] sm:$0xff]
    %v1040 = vld [vmem:[#allocation2 + $0xb98] sm:$0xff]
    %v1041 = vld [vmem:[#allocation2 + $0xba0] sm:$0xff]
    %v1042 = vld [vmem:[#allocation2 + $0xba8] sm:$0xff]
    %v1043 = vld [vmem:[#allocation2 + $0xbb0] sm:$0xff]
    %v1044 = vld [vmem:[#allocation2 + $0xbb8] sm:$0xff]
    %v1045 = vld [vmem:[#allocation2 + $0xbc0] sm:$0xff]
    %v1046 = vld [vmem:[#allocation2 + $0xbc8] sm:$0xff]
    %v1047 = vld [vmem:[#allocation2 + $0xbd0] sm:$0xff]
    %v1048 = vld [vmem:[#allocation2 + $0xbd8] sm:$0xff]
    %v1049 = vld [vmem:[#allocation2 + $0xbe0] sm:$0xff]
    %v1050 = vld [vmem:[#allocation2 + $0xbe8] sm:$0xff]
    %v1051 = vld [vmem:[#allocation2 + $0xbf0] sm:$0xff]
    %v1052 = vld [vmem:[#allocation2 + $0xbf8] sm:$0xff]
    %v1053 = vld [vmem:[#allocation2 + $0xc00] sm:$0xff]
    %v1054 = vld [vmem:[#allocation2 + $0xc08] sm:$0xff]
    %v1055 = vld [vmem:[#allocation2 + $0xc10] sm:$0xff]
    %v1056 = vld [vmem:[#allocation2 + $0xc18] sm:$0xff]
    %v1057 = vld [vmem:[#allocation2 + $0xc20] sm:$0xff]
    %v1058 = vld [vmem:[#allocation2 + $0xc28] sm:$0xff]
    %v1059 = vld [vmem:[#allocation2 + $0xc30] sm:$0xff]
    %v1060 = vld [vmem:[#allocation2 + $0xc38] sm:$0xff]
    %v1061 = vld [vmem:[#allocation2 + $0xc40] sm:$0xff]
    %v1062 = vld [vmem:[#allocation2 + $0xc48] sm:$0xff]
    %v1063 = vld [vmem:[#allocation2 + $0xc50] sm:$0xff]
    %v1064 = vld [vmem:[#allocation2 + $0xc58] sm:$0xff]
    %v1065 = vld [vmem:[#allocation2 + $0xc60] sm:$0xff]
    %v1066 = vld [vmem:[#allocation2 + $0xc68] sm:$0xff]
    %v1067 = vld [vmem:[#allocation2 + $0xc70] sm:$0xff]
    %v1068 = vld [vmem:[#allocation2 + $0xc78] sm:$0xff]
    %v1069 = vld [vmem:[#allocation2 + $0xc80] sm:$0xff]
    %v1070 = vld [vmem:[#allocation2 + $0xc88] sm:$0xff]
    %v1071 = vld [vmem:[#allocation2 + $0xc90] sm:$0xff]
    %v1072 = vld [vmem:[#allocation2 + $0xc98] sm:$0xff]
    %v1073 = vld [vmem:[#allocation2 + $0xca0] sm:$0xff]
    %v1074 = vld [vmem:[#allocation2 + $0xca8] sm:$0xff]
    %v1075 = vld [vmem:[#allocation2 + $0xcb0] sm:$0xff]
    %v1076 = vld [vmem:[#allocation2 + $0xcb8] sm:$0xff]
    %v1077 = vld [vmem:[#allocation2 + $0xcc0] sm:$0xff]
    %v1078 = vld [vmem:[#allocation2 + $0xcc8] sm:$0xff]
    %v1079 = vld [vmem:[#allocation2 + $0xcd0] sm:$0xff]
    %v1080 = vld [vmem:[#allocation2 + $0xcd8] sm:$0xff]
    %v1081 = vld [vmem:[#allocation2 + $0xce0] sm:$0xff]
    %v1082 = vld [vmem:[#allocation2 + $0xce8] sm:$0xff]
    %v1083 = vld [vmem:[#allocation2 + $0xcf0] sm:$0xff]
    %v1084 = vld [vmem:[#allocation2 + $0xcf8] sm:$0xff]
    %v1085 = vld [vmem:[#allocation2 + $0xd00] sm:$0xff]
    %v1086 = vld [vmem:[#allocation2 + $0xd08] sm:$0xff]
    %v1087 = vld [vmem:[#allocation2 + $0xd10] sm:$0xff]
    %v1088 = vld [vmem:[#allocation2 + $0xd18] sm:$0xff]
    %v1089 = vld [vmem:[#allocation2 + $0xd20] sm:$0xff]
    %v1090 = vld [vmem:[#allocation2 + $0xd28] sm:$0xff]
    %v1091 = vld [vmem:[#allocation2 + $0xd30] sm:$0xff]
    %v1092 = vld [vmem:[#allocation2 + $0xd38] sm:$0xff]
    %v1093 = vld [vmem:[#allocation2 + $0xd40] sm:$0xff]
    %v1094 = vld [vmem:[#allocation2 + $0xd48] sm:$0xff]
    %v1095 = vld [vmem:[#allocation2 + $0xd50] sm:$0xff]
    %v1096 = vld [vmem:[#allocation2 + $0xd58] sm:$0xff]
    %v1097 = vld [vmem:[#allocation2 + $0xd60] sm:$0xff]
    %v1098 = vld [vmem:[#allocation2 + $0xd68] sm:$0xff]
    %v1099 = vld [vmem:[#allocation2 + $0xd70] sm:$0xff]
    %v1100 = vld [vmem:[#allocation2 + $0xd78] sm:$0xff]
    %v1101 = vld [vmem:[#allocation2 + $0xd80] sm:$0xff]
    %v1102 = vld [vmem:[#allocation2 + $0xd88] sm:$0xff]
    %v1103 = vld [vmem:[#allocation2 + $0xd90] sm:$0xff]
    %v1104 = vld [vmem:[#allocation2 + $0xd98] sm:$0xff]
    %v1105 = vld [vmem:[#allocation2 + $0xda0] sm:$0xff]
    %v1106 = vld [vmem:[#allocation2 + $0xda8] sm:$0xff]
    %v1107 = vld [vmem:[#allocation2 + $0xdb0] sm:$0xff]
    %v1108 = vld [vmem:[#allocation2 + $0xdb8] sm:$0xff]
    %v1109 = vld [vmem:[#allocation2 + $0xdc0] sm:$0xff]
    %v1110 = vld [vmem:[#allocation2 + $0xdc8] sm:$0xff]
    %v1111 = vld [vmem:[#allocation2 + $0xdd0] sm:$0xff]
    %v1112 = vld [vmem:[#allocation2 + $0xdd8] sm:$0xff]
    %v1113 = vld [vmem:[#allocation2 + $0xde0] sm:$0xff]
    %v1114 = vld [vmem:[#allocation2 + $0xde8] sm:$0xff]
    %v1115 = vld [vmem:[#allocation2 + $0xdf0] sm:$0xff]
    %v1116 = vld [vmem:[#allocation2 + $0xdf8] sm:$0xff]
    %v1117 = vld [vmem:[#allocation2 + $0xe00] sm:$0xff]
    %v1118 = vld [vmem:[#allocation2 + $0xe08] sm:$0xff]
    %v1119 = vld [vmem:[#allocation2 + $0xe10] sm:$0xff]
    %v1120 = vld [vmem:[#allocation2 + $0xe18] sm:$0xff]
    %v1121 = vld [vmem:[#allocation2 + $0xe20] sm:$0xff]
    %v1122 = vld [vmem:[#allocation2 + $0xe28] sm:$0xff]
    %v1123 = vld [vmem:[#allocation2 + $0xe30] sm:$0xff]
    %v1124 = vld [vmem:[#allocation2 + $0xe38] sm:$0xff]
    %v1125 = vld [vmem:[#allocation2 + $0xe40] sm:$0xff]
    %v1126 = vld [vmem:[#allocation2 + $0xe48] sm:$0xff]
    %v1127 = vld [vmem:[#allocation2 + $0xe50] sm:$0xff]
    %v1128 = vld [vmem:[#allocation2 + $0xe58] sm:$0xff]
    %v1129 = vld [vmem:[#allocation2 + $0xe60] sm:$0xff]
    %v1130 = vld [vmem:[#allocation2 + $0xe68] sm:$0xff]
    %v1131 = vld [vmem:[#allocation2 + $0xe70] sm:$0xff]
    %v1132 = vld [vmem:[#allocation2 + $0xe78] sm:$0xff]
    %v1133 = vld [vmem:[#allocation2 + $0xe80] sm:$0xff]
    %v1134 = vld [vmem:[#allocation2 + $0xe88] sm:$0xff]
    %v1135 = vld [vmem:[#allocation2 + $0xe90] sm:$0xff]
    %v1136 = vld [vmem:[#allocation2 + $0xe98] sm:$0xff]
    %v1137 = vld [vmem:[#allocation2 + $0xea0] sm:$0xff]
    %v1138 = vld [vmem:[#allocation2 + $0xea8] sm:$0xff]
    %v1139 = vld [vmem:[#allocation2 + $0xeb0] sm:$0xff]
    %v1140 = vld [vmem:[#allocation2 + $0xeb8] sm:$0xff]
    %v1141 = vld [vmem:[#allocation2 + $0xec0] sm:$0xff]
    %v1142 = vld [vmem:[#allocation2 + $0xec8] sm:$0xff]
    %v1143 = vld [vmem:[#allocation2 + $0xed0] sm:$0xff]
    %v1144 = vld [vmem:[#allocation2 + $0xed8] sm:$0xff]
    %v1145 = vld [vmem:[#allocation2 + $0xee0] sm:$0xff]
    %v1146 = vld [vmem:[#allocation2 + $0xee8] sm:$0xff]
    %v1147 = vld [vmem:[#allocation2 + $0xef0] sm:$0xff]
    %v1148 = vld [vmem:[#allocation2 + $0xef8] sm:$0xff]
    %v1149 = vld [vmem:[#allocation2 + $0xf00] sm:$0xff]
    %v1150 = vld [vmem:[#allocation2 + $0xf08] sm:$0xff]
    %v1151 = vld [vmem:[#allocation2 + $0xf10] sm:$0xff]
    %v1152 = vld [vmem:[#allocation2 + $0xf18] sm:$0xff]
    %v1153 = vld [vmem:[#allocation2 + $0xf20] sm:$0xff]
    %v1154 = vld [vmem:[#allocation2 + $0xf28] sm:$0xff]
    %v1155 = vld [vmem:[#allocation2 + $0xf30] sm:$0xff]
    %v1156 = vld [vmem:[#allocation2 + $0xf38] sm:$0xff]
    %v1157 = vld [vmem:[#allocation2 + $0xf40] sm:$0xff]
    %v1158 = vld [vmem:[#allocation2 + $0xf48] sm:$0xff]
    %v1159 = vld [vmem:[#allocation2 + $0xf50] sm:$0xff]
    %v1160 = vld [vmem:[#allocation2 + $0xf58] sm:$0xff]
    %v1161 = vld [vmem:[#allocation2 + $0xf60] sm:$0xff]
    %v1162 = vld [vmem:[#allocation2 + $0xf68] sm:$0xff]
    %v1163 = vld [vmem:[#allocation2 + $0xf70] sm:$0xff]
    %v1164 = vld [vmem:[#allocation2 + $0xf78] sm:$0xff]
    %v1165 = vld [vmem:[#allocation2 + $0xf80] sm:$0xff]
    %v1166 = vld [vmem:[#allocation2 + $0xf88] sm:$0xff]
    %v1167 = vld [vmem:[#allocation2 + $0xf90] sm:$0xff]
    %v1168 = vld [vmem:[#allocation2 + $0xf98] sm:$0xff]
    %v1169 = vld [vmem:[#allocation2 + $0xfa0] sm:$0xff]
    %v1170 = vld [vmem:[#allocation2 + $0xfa8] sm:$0xff]
    %v1171 = vld [vmem:[#allocation2 + $0xfb0] sm:$0xff]
    %v1172 = vld [vmem:[#allocation2 + $0xfb8] sm:$0xff]
    %v1173 = vld [vmem:[#allocation2 + $0xfc0] sm:$0xff]
    %v1174 = vld [vmem:[#allocation2 + $0xfc8] sm:$0xff]
    %v1175 = vld [vmem:[#allocation2 + $0xfd0] sm:$0xff]
    %v1176 = vld [vmem:[#allocation2 + $0xfd8] sm:$0xff]
    %v1177 = vld [vmem:[#allocation2 + $0xfe0] sm:$0xff]
    %v1178 = vld [vmem:[#allocation2 + $0xfe8] sm:$0xff]
    %v1179 = vld [vmem:[#allocation2 + $0xff0] sm:$0xff]
    %v1180 = vld [vmem:[#allocation2 + $0xff8] sm:$0xff]
    %v1181 = vld [vmem:[#allocation12] sm:$0xff]
    %v1183 = vlaneseq
    %v1184 = vshrl.u32 %v1183, 7
    %v1185 = vsub.s32 0, %v1184
    %v1186 = vrot.slane %v1181, %v1185
    %v1187 = vlaneseq
    %v1188 = vshrl.u32 %v1187, 7
    %v1189 = vsub.s32 1, %v1188
    %v1190 = vrot.slane %v1181, %v1189
    %v1191 = vlaneseq
    %v1192 = vshrl.u32 %v1191, 7
    %v1193 = vsub.s32 2, %v1192
    %v1194 = vrot.slane %v1181, %v1193
    %v1195 = vlaneseq
    %v1196 = vshrl.u32 %v1195, 7
    %v1197 = vsub.s32 3, %v1196
    %v1198 = vrot.slane %v1181, %v1197
    %v1199 = vlaneseq
    %v1200 = vshrl.u32 %v1199, 7
    %v1201 = vsub.s32 4, %v1200
    %v1202 = vrot.slane %v1181, %v1201
    %v1203 = vlaneseq
    %v1204 = vshrl.u32 %v1203, 7
    %v1205 = vsub.s32 5, %v1204
    %v1206 = vrot.slane %v1181, %v1205
    %v1207 = vlaneseq
    %v1208 = vshrl.u32 %v1207, 7
    %v1209 = vsub.s32 6, %v1208
    %v1210 = vrot.slane %v1181, %v1209
    %v1211 = vlaneseq
    %v1212 = vshrl.u32 %v1211, 7
    %v1213 = vsub.s32 7, %v1212
    %v1214 = vrot.slane %v1181, %v1213
    %1223 = vmatprep.subr.bf16.mxu0 %v670
    %1224 = vmatpush1.bf16.msra.mxu0 %v669
    %1225 = vmatprep.subr.bf16.mxu0 %v678
    %1226 = vmatpush1.bf16.msra.mxu0 %v677
    %1227 = vmatprep.subr.bf16.mxu0 %v686
    %1228 = vmatpush1.bf16.msra.mxu0 %v685
    %1229 = vmatprep.subr.bf16.mxu0 %v694
    %1230 = vmatpush1.bf16.msra.mxu0 %v693
    %1231 = vmatprep.subr.bf16.mxu0 %v702
    %1232 = vmatpush1.bf16.msra.mxu0 %v701
    %1233 = vmatprep.subr.bf16.mxu0 %v710
    %1234 = vmatpush1.bf16.msra.mxu0 %v709
    %1235 = vmatprep.subr.bf16.mxu0 %v718
    %1236 = vmatpush1.bf16.msra.mxu0 %v717
    %1237 = vmatprep.subr.bf16.mxu0 %v726
    %1238 = vmatpush1.bf16.msra.mxu0 %v725
    %1239 = vmatprep.subr.bf16.mxu0 %v734
    %1240 = vmatpush1.bf16.msra.mxu0 %v733
    %1241 = vmatprep.subr.bf16.mxu0 %v742
    %1242 = vmatpush1.bf16.msra.mxu0 %v741
    %1243 = vmatprep.subr.bf16.mxu0 %v750
    %1244 = vmatpush1.bf16.msra.mxu0 %v749
    %1245 = vmatprep.subr.bf16.mxu0 %v758
    %1246 = vmatpush1.bf16.msra.mxu0 %v757
    %1247 = vmatprep.subr.bf16.mxu0 %v766
    %1248 = vmatpush1.bf16.msra.mxu0 %v765
    %1249 = vmatprep.subr.bf16.mxu0 %v774
    %1250 = vmatpush1.bf16.msra.mxu0 %v773
    %1251 = vmatprep.subr.bf16.mxu0 %v782
    %1252 = vmatpush1.bf16.msra.mxu0 %v781
    %1253 = vmatprep.subr.bf16.mxu0 %v790
    %1254 = vmatpush1.bf16.msra.mxu0 %v789
    %1255 = vmatprep.mubr.bf16.mxu0 %v662
    %1256 = vmatmul.mubr.bf16.gmra.mrb[0].mxu0 %v661
    %v1257 = vpop.f32.mrb[0].mxu0
    %v1258 = vadd.f32 %v1186, %v1257
    %v1259 = vpop.f32.mrb[0].mxu0
    %v1260 = vadd.f32 %v1190, %v1259
    %v1261 = vpop.f32.mrb[0].mxu0
    %v1262 = vpop.f32.mrb[0].mxu0
    %1263 = vdwg.mxu0
    %1264 = vmatprep.subr.bf16.mxu0 %v798
    %1265 = vmatpush1.bf16.msra.mxu0 %v797
    %1266 = vmatprep.subr.bf16.mxu0 %v806
    %1267 = vmatpush1.bf16.msra.mxu0 %v805
    %1268 = vmatprep.subr.bf16.mxu0 %v814
    %1269 = vmatpush1.bf16.msra.mxu0 %v813
    %1270 = vmatprep.subr.bf16.mxu0 %v822
    %1271 = vmatpush1.bf16.msra.mxu0 %v821
    %1272 = vmatprep.subr.bf16.mxu0 %v830
    %1273 = vmatpush1.bf16.msra.mxu0 %v829
    %1274 = vmatprep.subr.bf16.mxu0 %v838
    %1275 = vmatpush1.bf16.msra.mxu0 %v837
    %1276 = vmatprep.subr.bf16.mxu0 %v846
    %1277 = vmatpush1.bf16.msra.mxu0 %v845
    %1278 = vmatprep.subr.bf16.mxu0 %v854
    %1279 = vmatpush1.bf16.msra.mxu0 %v853
    %1280 = vmatprep.subr.bf16.mxu0 %v862
    %1281 = vmatpush1.bf16.msra.mxu0 %v861
    %1282 = vmatprep.subr.bf16.mxu0 %v870
    %1283 = vmatpush1.bf16.msra.mxu0 %v869
    %1284 = vmatprep.subr.bf16.mxu0 %v878
    %1285 = vmatpush1.bf16.msra.mxu0 %v877
    %1286 = vmatprep.subr.bf16.mxu0 %v886
    %1287 = vmatpush1.bf16.msra.mxu0 %v885
    %1288 = vmatprep.subr.bf16.mxu0 %v894
    %1289 = vmatpush1.bf16.msra.mxu0 %v893
    %1290 = vmatprep.subr.bf16.mxu0 %v902
    %1291 = vmatpush1.bf16.msra.mxu0 %v901
    %1292 = vmatprep.subr.bf16.mxu0 %v910
    %1293 = vmatpush1.bf16.msra.mxu0 %v909
    %1294 = vmatprep.subr.bf16.mxu0 %v918
    %1295 = vmatpush1.bf16.msra.mxu0 %v917
    %1296 = vmatprep.mubr.bf16.mxu0 %v664
    %1297 = vmatmul.mubr.bf16.gmra.mrb[0].mxu0 %v663
    %v1298 = vpop.f32.mrb[0].mxu0
    %v1299 = vadd.f32 %v1258, %v1298
    %v1300 = vpop.f32.mrb[0].mxu0
    %v1301 = vadd.f32 %v1260, %v1300
    %v1302 = vpop.f32.mrb[0].mxu0
    %v1303 = vpop.f32.mrb[0].mxu0
    %1304 = vdwg.mxu0
    %1305 = vmatprep.subr.bf16.mxu0 %v926
    %1306 = vmatpush1.bf16.msra.mxu0 %v925
    %1307 = vmatprep.subr.bf16.mxu0 %v934
    %1308 = vmatpush1.bf16.msra.mxu0 %v933
    %1309 = vmatprep.subr.bf16.mxu0 %v942
    %1310 = vmatpush1.bf16.msra.mxu0 %v941
    %1311 = vmatprep.subr.bf16.mxu0 %v950
    %1312 = vmatpush1.bf16.msra.mxu0 %v949
    %1313 = vmatprep.subr.bf16.mxu0 %v958
    %1314 = vmatpush1.bf16.msra.mxu0 %v957
    %1315 = vmatprep.subr.bf16.mxu0 %v966
    %1316 = vmatpush1.bf16.msra.mxu0 %v965
    %1317 = vmatprep.subr.bf16.mxu0 %v974
    %1318 = vmatpush1.bf16.msra.mxu0 %v973
    %1319 = vmatprep.subr.bf16.mxu0 %v982
    %1320 = vmatpush1.bf16.msra.mxu0 %v981
    %1321 = vmatprep.subr.bf16.mxu0 %v990
    %1322 = vmatpush1.bf16.msra.mxu0 %v989
    %1323 = vmatprep.subr.bf16.mxu0 %v998
    %1324 = vmatpush1.bf16.msra.mxu0 %v997
    %1325 = vmatprep.subr.bf16.mxu0 %v1006
    %1326 = vmatpush1.bf16.msra.mxu0 %v1005
    %1327 = vmatprep.subr.bf16.mxu0 %v1014
    %1328 = vmatpush1.bf16.msra.mxu0 %v1013
    %1329 = vmatprep.subr.bf16.mxu0 %v1022
    %1330 = vmatpush1.bf16.msra.mxu0 %v1021
    %1331 = vmatprep.subr.bf16.mxu0 %v1030
    %1332 = vmatpush1.bf16.msra.mxu0 %v1029
    %1333 = vmatprep.subr.bf16.mxu0 %v1038
    %1334 = vmatpush1.bf16.msra.mxu0 %v1037
    %1335 = vmatprep.subr.bf16.mxu0 %v1046
    %1336 = vmatpush1.bf16.msra.mxu0 %v1045
    %1337 = vmatprep.mubr.bf16.mxu0 %v666
    %1338 = vmatmul.mubr.bf16.gmra.mrb[0].mxu0 %v665
    %v1339 = vpop.f32.mrb[0].mxu0
    %v1340 = vadd.f32 %v1299, %v1339
    %v1341 = vpop.f32.mrb[0].mxu0
    %v1342 = vadd.f32 %v1301, %v1341
    %v1343 = vpop.f32.mrb[0].mxu0
    %v1344 = vpop.f32.mrb[0].mxu0
    %1345 = vdwg.mxu0
    %1346 = vmatprep.subr.bf16.mxu0 %v1054
    %1347 = vmatpush1.bf16.msra.mxu0 %v1053
    %1348 = vmatprep.subr.bf16.mxu0 %v1062
    %1349 = vmatpush1.bf16.msra.mxu0 %v1061
    %1350 = vmatprep.subr.bf16.mxu0 %v1070
    %1351 = vmatpush1.bf16.msra.mxu0 %v1069
    %1352 = vmatprep.subr.bf16.mxu0 %v1078
    %1353 = vmatpush1.bf16.msra.mxu0 %v1077
    %1354 = vmatprep.subr.bf16.mxu0 %v1086
    %1355 = vmatpush1.bf16.msra.mxu0 %v1085
    %1356 = vmatprep.subr.bf16.mxu0 %v1094
    %1357 = vmatpush1.bf16.msra.mxu0 %v1093
    %1358 = vmatprep.subr.bf16.mxu0 %v1102
    %1359 = vmatpush1.bf16.msra.mxu0 %v1101
    %1360 = vmatprep.subr.bf16.mxu0 %v1110
    %1361 = vmatpush1.bf16.msra.mxu0 %v1109
    %1362 = vmatprep.subr.bf16.mxu0 %v1118
    %1363 = vmatpush1.bf16.msra.mxu0 %v1117
    %1364 = vmatprep.subr.bf16.mxu0 %v1126
    %1365 = vmatpush1.bf16.msra.mxu0 %v1125
    %1366 = vmatprep.subr.bf16.mxu0 %v1134
    %1367 = vmatpush1.bf16.msra.mxu0 %v1133
    %1368 = vmatprep.subr.bf16.mxu0 %v1142
    %1369 = vmatpush1.bf16.msra.mxu0 %v1141
    %1370 = vmatprep.subr.bf16.mxu0 %v1150
    %1371 = vmatpush1.bf16.msra.mxu0 %v1149
    %1372 = vmatprep.subr.bf16.mxu0 %v1158
    %1373 = vmatpush1.bf16.msra.mxu0 %v1157
    %1374 = vmatprep.subr.bf16.mxu0 %v1166
    %1375 = vmatpush1.bf16.msra.mxu0 %v1165
    %1376 = vmatprep.subr.bf16.mxu0 %v1174
    %1377 = vmatpush1.bf16.msra.mxu0 %v1173
    %1378 = vmatprep.mubr.bf16.mxu0 %v668
    %1379 = vmatmul.mubr.bf16.gmra.mrb[0].mxu0 %v667
    %v1380 = vpop.f32.mrb[0].mxu0
    %v1381 = vadd.f32 %v1340, %v1380
    %v1382 = vpop.f32.mrb[0].mxu0
    %v1383 = vadd.f32 %v1342, %v1382
    %v1384 = vpop.f32.mrb[0].mxu0
    %v1385 = vpop.f32.mrb[0].mxu0
    %1386 = vdwg.mxu0
    %1387 = vmatprep.subr.bf16.mxu0 %v672
    %1388 = vmatpush1.bf16.msra.mxu0 %v671
    %1389 = vmatprep.subr.bf16.mxu0 %v680
    %1390 = vmatpush1.bf16.msra.mxu0 %v679
    %1391 = vmatprep.subr.bf16.mxu0 %v688
    %1392 = vmatpush1.bf16.msra.mxu0 %v687
    %1393 = vmatprep.subr.bf16.mxu0 %v696
    %1394 = vmatpush1.bf16.msra.mxu0 %v695
    %1395 = vmatprep.subr.bf16.mxu0 %v704
    %1396 = vmatpush1.bf16.msra.mxu0 %v703
    %1397 = vmatprep.subr.bf16.mxu0 %v712
    %1398 = vmatpush1.bf16.msra.mxu0 %v711
    %1399 = vmatprep.subr.bf16.mxu0 %v720
    %1400 = vmatpush1.bf16.msra.mxu0 %v719
    %1401 = vmatprep.subr.bf16.mxu0 %v728
    %1402 = vmatpush1.bf16.msra.mxu0 %v727
    %1403 = vmatprep.subr.bf16.mxu0 %v736
    %1404 = vmatpush1.bf16.msra.mxu0 %v735
    %1405 = vmatprep.subr.bf16.mxu0 %v744
    %1406 = vmatpush1.bf16.msra.mxu0 %v743
    %1407 = vmatprep.subr.bf16.mxu0 %v752
    %1408 = vmatpush1.bf16.msra.mxu0 %v751
    %1409 = vmatprep.subr.bf16.mxu0 %v760
    %1410 = vmatpush1.bf16.msra.mxu0 %v759
    %1411 = vmatprep.subr.bf16.mxu0 %v768
    %1412 = vmatpush1.bf16.msra.mxu0 %v767
    %1413 = vmatprep.subr.bf16.mxu0 %v776
    %1414 = vmatpush1.bf16.msra.mxu0 %v775
    %1415 = vmatprep.subr.bf16.mxu0 %v784
    %1416 = vmatpush1.bf16.msra.mxu0 %v783
    %1417 = vmatprep.subr.bf16.mxu0 %v792
    %1418 = vmatpush1.bf16.msra.mxu0 %v791
    %1419 = vmatprep.mubr.bf16.mxu0 %v662
    %1420 = vmatmul.mubr.bf16.gmra.mrb[0].mxu0 %v661
    %v1421 = vpop.f32.mrb[0].mxu0
    %v1422 = vadd.f32 %v1194, %v1421
    %v1423 = vpop.f32.mrb[0].mxu0
    %v1424 = vadd.f32 %v1198, %v1423
    %v1425 = vpop.f32.mrb[0].mxu0
    %v1426 = vpop.f32.mrb[0].mxu0
    %1427 = vdwg.mxu0
    %1428 = vmatprep.subr.bf16.mxu0 %v800
    %1429 = vmatpush1.bf16.msra.mxu0 %v799
    %1430 = vmatprep.subr.bf16.mxu0 %v808
    %1431 = vmatpush1.bf16.msra.mxu0 %v807
    %1432 = vmatprep.subr.bf16.mxu0 %v816
    %1433 = vmatpush1.bf16.msra.mxu0 %v815
    %1434 = vmatprep.subr.bf16.mxu0 %v824
    %1435 = vmatpush1.bf16.msra.mxu0 %v823
    %1436 = vmatprep.subr.bf16.mxu0 %v832
    %1437 = vmatpush1.bf16.msra.mxu0 %v831
    %1438 = vmatprep.subr.bf16.mxu0 %v840
    %1439 = vmatpush1.bf16.msra.mxu0 %v839
    %1440 = vmatprep.subr.bf16.mxu0 %v848
    %1441 = vmatpush1.bf16.msra.mxu0 %v847
    %1442 = vmatprep.subr.bf16.mxu0 %v856
    %1443 = vmatpush1.bf16.msra.mxu0 %v855
    %1444 = vmatprep.subr.bf16.mxu0 %v864
    %1445 = vmatpush1.bf16.msra.mxu0 %v863
    %1446 = vmatprep.subr.bf16.mxu0 %v872
    %1447 = vmatpush1.bf16.msra.mxu0 %v871
    %1448 = vmatprep.subr.bf16.mxu0 %v880
    %1449 = vmatpush1.bf16.msra.mxu0 %v879
    %1450 = vmatprep.subr.bf16.mxu0 %v888
    %1451 = vmatpush1.bf16.msra.mxu0 %v887
    %1452 = vmatprep.subr.bf16.mxu0 %v896
    %1453 = vmatpush1.bf16.msra.mxu0 %v895
    %1454 = vmatprep.subr.bf16.mxu0 %v904
    %1455 = vmatpush1.bf16.msra.mxu0 %v903
    %1456 = vmatprep.subr.bf16.mxu0 %v912
    %1457 = vmatpush1.bf16.msra.mxu0 %v911
    %1458 = vmatprep.subr.bf16.mxu0 %v920
    %1459 = vmatpush1.bf16.msra.mxu0 %v919
    %1460 = vmatprep.mubr.bf16.mxu0 %v664
    %1461 = vmatmul.mubr.bf16.gmra.mrb[0].mxu0 %v663
    %v1462 = vpop.f32.mrb[0].mxu0
    %v1463 = vadd.f32 %v1422, %v1462
    %v1464 = vpop.f32.mrb[0].mxu0
    %v1465 = vadd.f32 %v1424, %v1464
    %v1466 = vpop.f32.mrb[0].mxu0
    %v1467 = vpop.f32.mrb[0].mxu0
    %1468 = vdwg.mxu0
    %1469 = vmatprep.subr.bf16.mxu0 %v928
    %1470 = vmatpush1.bf16.msra.mxu0 %v927
    %1471 = vmatprep.subr.bf16.mxu0 %v936
    %1472 = vmatpush1.bf16.msra.mxu0 %v935
    %1473 = vmatprep.subr.bf16.mxu0 %v944
    %1474 = vmatpush1.bf16.msra.mxu0 %v943
    %1475 = vmatprep.subr.bf16.mxu0 %v952
    %1476 = vmatpush1.bf16.msra.mxu0 %v951
    %1477 = vmatprep.subr.bf16.mxu0 %v960
    %1478 = vmatpush1.bf16.msra.mxu0 %v959
    %1479 = vmatprep.subr.bf16.mxu0 %v968
    %1480 = vmatpush1.bf16.msra.mxu0 %v967
    %1481 = vmatprep.subr.bf16.mxu0 %v976
    %1482 = vmatpush1.bf16.msra.mxu0 %v975
    %1483 = vmatprep.subr.bf16.mxu0 %v984
    %1484 = vmatpush1.bf16.msra.mxu0 %v983
    %1485 = vmatprep.subr.bf16.mxu0 %v992
    %1486 = vmatpush1.bf16.msra.mxu0 %v991
    %1487 = vmatprep.subr.bf16.mxu0 %v1000
    %1488 = vmatpush1.bf16.msra.mxu0 %v999
    %1489 = vmatprep.subr.bf16.mxu0 %v1008
    %1490 = vmatpush1.bf16.msra.mxu0 %v1007
    %1491 = vmatprep.subr.bf16.mxu0 %v1016
    %1492 = vmatpush1.bf16.msra.mxu0 %v1015
    %1493 = vmatprep.subr.bf16.mxu0 %v1024
    %1494 = vmatpush1.bf16.msra.mxu0 %v1023
    %1495 = vmatprep.subr.bf16.mxu0 %v1032
    %1496 = vmatpush1.bf16.msra.mxu0 %v1031
    %1497 = vmatprep.subr.bf16.mxu0 %v1040
    %1498 = vmatpush1.bf16.msra.mxu0 %v1039
    %1499 = vmatprep.subr.bf16.mxu0 %v1048
    %1500 = vmatpush1.bf16.msra.mxu0 %v1047
    %1501 = vmatprep.mubr.bf16.mxu0 %v666
    %1502 = vmatmul.mubr.bf16.gmra.mrb[0].mxu0 %v665
    %v1503 = vpop.f32.mrb[0].mxu0
    %v1504 = vadd.f32 %v1463, %v1503
    %v1505 = vpop.f32.mrb[0].mxu0
    %v1506 = vadd.f32 %v1465, %v1505
    %v1507 = vpop.f32.mrb[0].mxu0
    %v1508 = vpop.f32.mrb[0].mxu0
    %1509 = vdwg.mxu0
    %1510 = vmatprep.subr.bf16.mxu0 %v1056
    %1511 = vmatpush1.bf16.msra.mxu0 %v1055
    %1512 = vmatprep.subr.bf16.mxu0 %v1064
    %1513 = vmatpush1.bf16.msra.mxu0 %v1063
    %1514 = vmatprep.subr.bf16.mxu0 %v1072
    %1515 = vmatpush1.bf16.msra.mxu0 %v1071
    %1516 = vmatprep.subr.bf16.mxu0 %v1080
    %1517 = vmatpush1.bf16.msra.mxu0 %v1079
    %1518 = vmatprep.subr.bf16.mxu0 %v1088
    %1519 = vmatpush1.bf16.msra.mxu0 %v1087
    %1520 = vmatprep.subr.bf16.mxu0 %v1096
    %1521 = vmatpush1.bf16.msra.mxu0 %v1095
    %1522 = vmatprep.subr.bf16.mxu0 %v1104
    %1523 = vmatpush1.bf16.msra.mxu0 %v1103
    %1524 = vmatprep.subr.bf16.mxu0 %v1112
    %1525 = vmatpush1.bf16.msra.mxu0 %v1111
    %1526 = vmatprep.subr.bf16.mxu0 %v1120
    %1527 = vmatpush1.bf16.msra.mxu0 %v1119
    %1528 = vmatprep.subr.bf16.mxu0 %v1128
    %1529 = vmatpush1.bf16.msra.mxu0 %v1127
    %1530 = vmatprep.subr.bf16.mxu0 %v1136
    %1531 = vmatpush1.bf16.msra.mxu0 %v1135
    %1532 = vmatprep.subr.bf16.mxu0 %v1144
    %1533 = vmatpush1.bf16.msra.mxu0 %v1143
    %1534 = vmatprep.subr.bf16.mxu0 %v1152
    %1535 = vmatpush1.bf16.msra.mxu0 %v1151
    %1536 = vmatprep.subr.bf16.mxu0 %v1160
    %1537 = vmatpush1.bf16.msra.mxu0 %v1159
    %1538 = vmatprep.subr.bf16.mxu0 %v1168
    %1539 = vmatpush1.bf16.msra.mxu0 %v1167
    %1540 = vmatprep.subr.bf16.mxu0 %v1176
    %1541 = vmatpush1.bf16.msra.mxu0 %v1175
    %1542 = vmatprep.mubr.bf16.mxu0 %v668
    %1543 = vmatmul.mubr.bf16.gmra.mrb[0].mxu0 %v667
    %v1544 = vpop.f32.mrb[0].mxu0
    %v1545 = vadd.f32 %v1504, %v1544
    %v1546 = vpop.f32.mrb[0].mxu0
    %v1547 = vadd.f32 %v1506, %v1546
    %v1548 = vpop.f32.mrb[0].mxu0
    %v1549 = vpop.f32.mrb[0].mxu0
    %1550 = vdwg.mxu0
    %1551 = vmatprep.subr.bf16.mxu0 %v674
    %1552 = vmatpush1.bf16.msra.mxu0 %v673
    %1553 = vmatprep.subr.bf16.mxu0 %v682
    %1554 = vmatpush1.bf16.msra.mxu0 %v681
    %1555 = vmatprep.subr.bf16.mxu0 %v690
    %1556 = vmatpush1.bf16.msra.mxu0 %v689
    %1557 = vmatprep.subr.bf16.mxu0 %v698
    %1558 = vmatpush1.bf16.msra.mxu0 %v697
    %1559 = vmatprep.subr.bf16.mxu0 %v706
    %1560 = vmatpush1.bf16.msra.mxu0 %v705
    %1561 = vmatprep.subr.bf16.mxu0 %v714
    %1562 = vmatpush1.bf16.msra.mxu0 %v713
    %1563 = vmatprep.subr.bf16.mxu0 %v722
    %1564 = vmatpush1.bf16.msra.mxu0 %v721
    %1565 = vmatprep.subr.bf16.mxu0 %v730
    %1566 = vmatpush1.bf16.msra.mxu0 %v729
    %1567 = vmatprep.subr.bf16.mxu0 %v738
    %1568 = vmatpush1.bf16.msra.mxu0 %v737
    %1569 = vmatprep.subr.bf16.mxu0 %v746
    %1570 = vmatpush1.bf16.msra.mxu0 %v745
    %1571 = vmatprep.subr.bf16.mxu0 %v754
    %1572 = vmatpush1.bf16.msra.mxu0 %v753
    %1573 = vmatprep.subr.bf16.mxu0 %v762
    %1574 = vmatpush1.bf16.msra.mxu0 %v761
    %1575 = vmatprep.subr.bf16.mxu0 %v770
    %1576 = vmatpush1.bf16.msra.mxu0 %v769
    %1577 = vmatprep.subr.bf16.mxu0 %v778
    %1578 = vmatpush1.bf16.msra.mxu0 %v777
    %1579 = vmatprep.subr.bf16.mxu0 %v786
    %1580 = vmatpush1.bf16.msra.mxu0 %v785
    %1581 = vmatprep.subr.bf16.mxu0 %v794
    %1582 = vmatpush1.bf16.msra.mxu0 %v793
    %1583 = vmatprep.mubr.bf16.mxu0 %v662
    %1584 = vmatmul.mubr.bf16.gmra.mrb[0].mxu0 %v661
    %v1585 = vpop.f32.mrb[0].mxu0
    %v1586 = vadd.f32 %v1202, %v1585
    %v1587 = vpop.f32.mrb[0].mxu0
    %v1588 = vadd.f32 %v1206, %v1587
    %v1589 = vpop.f32.mrb[0].mxu0
    %v1590 = vpop.f32.mrb[0].mxu0
    %1591 = vdwg.mxu0
    %1592 = vmatprep.subr.bf16.mxu0 %v802
    %1593 = vmatpush1.bf16.msra.mxu0 %v801
    %1594 = vmatprep.subr.bf16.mxu0 %v810
    %1595 = vmatpush1.bf16.msra.mxu0 %v809
    %1596 = vmatprep.subr.bf16.mxu0 %v818
    %1597 = vmatpush1.bf16.msra.mxu0 %v817
    %1598 = vmatprep.subr.bf16.mxu0 %v826
    %1599 = vmatpush1.bf16.msra.mxu0 %v825
    %1600 = vmatprep.subr.bf16.mxu0 %v834
    %1601 = vmatpush1.bf16.msra.mxu0 %v833
    %1602 = vmatprep.subr.bf16.mxu0 %v842
    %1603 = vmatpush1.bf16.msra.mxu0 %v841
    %1604 = vmatprep.subr.bf16.mxu0 %v850
    %1605 = vmatpush1.bf16.msra.mxu0 %v849
    %1606 = vmatprep.subr.bf16.mxu0 %v858
    %1607 = vmatpush1.bf16.msra.mxu0 %v857
    %1608 = vmatprep.subr.bf16.mxu0 %v866
    %1609 = vmatpush1.bf16.msra.mxu0 %v865
    %1610 = vmatprep.subr.bf16.mxu0 %v874
    %1611 = vmatpush1.bf16.msra.mxu0 %v873
    %1612 = vmatprep.subr.bf16.mxu0 %v882
    %1613 = vmatpush1.bf16.msra.mxu0 %v881
    %1614 = vmatprep.subr.bf16.mxu0 %v890
    %1615 = vmatpush1.bf16.msra.mxu0 %v889
    %1616 = vmatprep.subr.bf16.mxu0 %v898
    %1617 = vmatpush1.bf16.msra.mxu0 %v897
    %1618 = vmatprep.subr.bf16.mxu0 %v906
    %1619 = vmatpush1.bf16.msra.mxu0 %v905
    %1620 = vmatprep.subr.bf16.mxu0 %v914
    %1621 = vmatpush1.bf16.msra.mxu0 %v913
    %1622 = vmatprep.subr.bf16.mxu0 %v922
    %1623 = vmatpush1.bf16.msra.mxu0 %v921
    %1624 = vmatprep.mubr.bf16.mxu0 %v664
    %1625 = vmatmul.mubr.bf16.gmra.mrb[0].mxu0 %v663
    %v1626 = vpop.f32.mrb[0].mxu0
    %v1627 = vadd.f32 %v1586, %v1626
    %v1628 = vpop.f32.mrb[0].mxu0
    %v1629 = vadd.f32 %v1588, %v1628
    %v1630 = vpop.f32.mrb[0].mxu0
    %v1631 = vpop.f32.mrb[0].mxu0
    %1632 = vdwg.mxu0
    %1633 = vmatprep.subr.bf16.mxu0 %v930
    %1634 = vmatpush1.bf16.msra.mxu0 %v929
    %1635 = vmatprep.subr.bf16.mxu0 %v938
    %1636 = vmatpush1.bf16.msra.mxu0 %v937
    %1637 = vmatprep.subr.bf16.mxu0 %v946
    %1638 = vmatpush1.bf16.msra.mxu0 %v945
    %1639 = vmatprep.subr.bf16.mxu0 %v954
    %1640 = vmatpush1.bf16.msra.mxu0 %v953
    %1641 = vmatprep.subr.bf16.mxu0 %v962
    %1642 = vmatpush1.bf16.msra.mxu0 %v961
    %1643 = vmatprep.subr.bf16.mxu0 %v970
    %1644 = vmatpush1.bf16.msra.mxu0 %v969
    %1645 = vmatprep.subr.bf16.mxu0 %v978
    %1646 = vmatpush1.bf16.msra.mxu0 %v977
    %1647 = vmatprep.subr.bf16.mxu0 %v986
    %1648 = vmatpush1.bf16.msra.mxu0 %v985
    %1649 = vmatprep.subr.bf16.mxu0 %v994
    %1650 = vmatpush1.bf16.msra.mxu0 %v993
    %1651 = vmatprep.subr.bf16.mxu0 %v1002
    %1652 = vmatpush1.bf16.msra.mxu0 %v1001
    %1653 = vmatprep.subr.bf16.mxu0 %v1010
    %1654 = vmatpush1.bf16.msra.mxu0 %v1009
    %1655 = vmatprep.subr.bf16.mxu0 %v1018
    %1656 = vmatpush1.bf16.msra.mxu0 %v1017
    %1657 = vmatprep.subr.bf16.mxu0 %v1026
    %1658 = vmatpush1.bf16.msra.mxu0 %v1025
    %1659 = vmatprep.subr.bf16.mxu0 %v1034
    %1660 = vmatpush1.bf16.msra.mxu0 %v1033
    %1661 = vmatprep.subr.bf16.mxu0 %v1042
    %1662 = vmatpush1.bf16.msra.mxu0 %v1041
    %1663 = vmatprep.subr.bf16.mxu0 %v1050
    %1664 = vmatpush1.bf16.msra.mxu0 %v1049
    %1665 = vmatprep.mubr.bf16.mxu0 %v666
    %1666 = vmatmul.mubr.bf16.gmra.mrb[0].mxu0 %v665
    %v1667 = vpop.f32.mrb[0].mxu0
    %v1668 = vadd.f32 %v1627, %v1667
    %v1669 = vpop.f32.mrb[0].mxu0
    %v1670 = vadd.f32 %v1629, %v1669
    %v1671 = vpop.f32.mrb[0].mxu0
    %v1672 = vpop.f32.mrb[0].mxu0
    %1673 = vdwg.mxu0
    %1674 = vmatprep.subr.bf16.mxu0 %v1058
    %1675 = vmatpush1.bf16.msra.mxu0 %v1057
    %1676 = vmatprep.subr.bf16.mxu0 %v1066
    %1677 = vmatpush1.bf16.msra.mxu0 %v1065
    %1678 = vmatprep.subr.bf16.mxu0 %v1074
    %1679 = vmatpush1.bf16.msra.mxu0 %v1073
    %1680 = vmatprep.subr.bf16.mxu0 %v1082
    %1681 = vmatpush1.bf16.msra.mxu0 %v1081
    %1682 = vmatprep.subr.bf16.mxu0 %v1090
    %1683 = vmatpush1.bf16.msra.mxu0 %v1089
    %1684 = vmatprep.subr.bf16.mxu0 %v1098
    %1685 = vmatpush1.bf16.msra.mxu0 %v1097
    %1686 = vmatprep.subr.bf16.mxu0 %v1106
    %1687 = vmatpush1.bf16.msra.mxu0 %v1105
    %1688 = vmatprep.subr.bf16.mxu0 %v1114
    %1689 = vmatpush1.bf16.msra.mxu0 %v1113
    %1690 = vmatprep.subr.bf16.mxu0 %v1122
    %1691 = vmatpush1.bf16.msra.mxu0 %v1121
    %1692 = vmatprep.subr.bf16.mxu0 %v1130
    %1693 = vmatpush1.bf16.msra.mxu0 %v1129
    %1694 = vmatprep.subr.bf16.mxu0 %v1138
    %1695 = vmatpush1.bf16.msra.mxu0 %v1137
    %1696 = vmatprep.subr.bf16.mxu0 %v1146
    %1697 = vmatpush1.bf16.msra.mxu0 %v1145
    %1698 = vmatprep.subr.bf16.mxu0 %v1154
    %1699 = vmatpush1.bf16.msra.mxu0 %v1153
    %1700 = vmatprep.subr.bf16.mxu0 %v1162
    %1701 = vmatpush1.bf16.msra.mxu0 %v1161
    %1702 = vmatprep.subr.bf16.mxu0 %v1170
    %1703 = vmatpush1.bf16.msra.mxu0 %v1169
    %1704 = vmatprep.subr.bf16.mxu0 %v1178
    %1705 = vmatpush1.bf16.msra.mxu0 %v1177
    %1706 = vmatprep.mubr.bf16.mxu0 %v668
    %1707 = vmatmul.mubr.bf16.gmra.mrb[0].mxu0 %v667
    %v1708 = vpop.f32.mrb[0].mxu0
    %v1709 = vadd.f32 %v1668, %v1708
    %v1710 = vpop.f32.mrb[0].mxu0
    %v1711 = vadd.f32 %v1670, %v1710
    %v1712 = vpop.f32.mrb[0].mxu0
    %v1713 = vpop.f32.mrb[0].mxu0
    %1714 = vdwg.mxu0
    %1715 = vmatprep.subr.bf16.mxu0 %v676
    %1716 = vmatpush1.bf16.msra.mxu0 %v675
    %1717 = vmatprep.subr.bf16.mxu0 %v684
    %1718 = vmatpush1.bf16.msra.mxu0 %v683
    %1719 = vmatprep.subr.bf16.mxu0 %v692
    %1720 = vmatpush1.bf16.msra.mxu0 %v691
    %1721 = vmatprep.subr.bf16.mxu0 %v700
    %1722 = vmatpush1.bf16.msra.mxu0 %v699
    %1723 = vmatprep.subr.bf16.mxu0 %v708
    %1724 = vmatpush1.bf16.msra.mxu0 %v707
    %1725 = vmatprep.subr.bf16.mxu0 %v716
    %1726 = vmatpush1.bf16.msra.mxu0 %v715
    %1727 = vmatprep.subr.bf16.mxu0 %v724
    %1728 = vmatpush1.bf16.msra.mxu0 %v723
    %1729 = vmatprep.subr.bf16.mxu0 %v732
    %1730 = vmatpush1.bf16.msra.mxu0 %v731
    %1731 = vmatprep.subr.bf16.mxu0 %v740
    %1732 = vmatpush1.bf16.msra.mxu0 %v739
    %1733 = vmatprep.subr.bf16.mxu0 %v748
    %1734 = vmatpush1.bf16.msra.mxu0 %v747
    %1735 = vmatprep.subr.bf16.mxu0 %v756
    %1736 = vmatpush1.bf16.msra.mxu0 %v755
    %1737 = vmatprep.subr.bf16.mxu0 %v764
    %1738 = vmatpush1.bf16.msra.mxu0 %v763
    %1739 = vmatprep.subr.bf16.mxu0 %v772
    %1740 = vmatpush1.bf16.msra.mxu0 %v771
    %1741 = vmatprep.subr.bf16.mxu0 %v780
    %1742 = vmatpush1.bf16.msra.mxu0 %v779
    %1743 = vmatprep.subr.bf16.mxu0 %v788
    %1744 = vmatpush1.bf16.msra.mxu0 %v787
    %1745 = vmatprep.subr.bf16.mxu0 %v796
    %1746 = vmatpush1.bf16.msra.mxu0 %v795
    %1747 = vmatprep.mubr.bf16.mxu0 %v662
    %1748 = vmatmul.mubr.bf16.gmra.mrb[0].mxu0 %v661
    %v1749 = vpop.f32.mrb[0].mxu0
    %v1750 = vadd.f32 %v1210, %v1749
    %v1751 = vpop.f32.mrb[0].mxu0
    %v1752 = vadd.f32 %v1214, %v1751
    %v1753 = vpop.f32.mrb[0].mxu0
    %v1754 = vpop.f32.mrb[0].mxu0
    %1755 = vdwg.mxu0
    %1756 = vmatprep.subr.bf16.mxu0 %v804
    %1757 = vmatpush1.bf16.msra.mxu0 %v803
    %1758 = vmatprep.subr.bf16.mxu0 %v812
    %1759 = vmatpush1.bf16.msra.mxu0 %v811
    %1760 = vmatprep.subr.bf16.mxu0 %v820
    %1761 = vmatpush1.bf16.msra.mxu0 %v819
    %1762 = vmatprep.subr.bf16.mxu0 %v828
    %1763 = vmatpush1.bf16.msra.mxu0 %v827
    %1764 = vmatprep.subr.bf16.mxu0 %v836
    %1765 = vmatpush1.bf16.msra.mxu0 %v835
    %1766 = vmatprep.subr.bf16.mxu0 %v844
    %1767 = vmatpush1.bf16.msra.mxu0 %v843
    %1768 = vmatprep.subr.bf16.mxu0 %v852
    %1769 = vmatpush1.bf16.msra.mxu0 %v851
    %1770 = vmatprep.subr.bf16.mxu0 %v860
    %1771 = vmatpush1.bf16.msra.mxu0 %v859
    %1772 = vmatprep.subr.bf16.mxu0 %v868
    %1773 = vmatpush1.bf16.msra.mxu0 %v867
    %1774 = vmatprep.subr.bf16.mxu0 %v876
    %1775 = vmatpush1.bf16.msra.mxu0 %v875
    %1776 = vmatprep.subr.bf16.mxu0 %v884
    %1777 = vmatpush1.bf16.msra.mxu0 %v883
    %1778 = vmatprep.subr.bf16.mxu0 %v892
    %1779 = vmatpush1.bf16.msra.mxu0 %v891
    %1780 = vmatprep.subr.bf16.mxu0 %v900
    %1781 = vmatpush1.bf16.msra.mxu0 %v899
    %1782 = vmatprep.subr.bf16.mxu0 %v908
    %1783 = vmatpush1.bf16.msra.mxu0 %v907
    %1784 = vmatprep.subr.bf16.mxu0 %v916
    %1785 = vmatpush1.bf16.msra.mxu0 %v915
    %1786 = vmatprep.subr.bf16.mxu0 %v924
    %1787 = vmatpush1.bf16.msra.mxu0 %v923
    %1788 = vmatprep.mubr.bf16.mxu0 %v664
    %1789 = vmatmul.mubr.bf16.gmra.mrb[0].mxu0 %v663
    %v1790 = vpop.f32.mrb[0].mxu0
    %v1791 = vadd.f32 %v1750, %v1790
    %v1792 = vpop.f32.mrb[0].mxu0
    %v1793 = vadd.f32 %v1752, %v1792
    %v1794 = vpop.f32.mrb[0].mxu0
    %v1795 = vpop.f32.mrb[0].mxu0
    %1796 = vdwg.mxu0
    %1797 = vmatprep.subr.bf16.mxu0 %v932
    %1798 = vmatpush1.bf16.msra.mxu0 %v931
    %1799 = vmatprep.subr.bf16.mxu0 %v940
    %1800 = vmatpush1.bf16.msra.mxu0 %v939
    %1801 = vmatprep.subr.bf16.mxu0 %v948
    %1802 = vmatpush1.bf16.msra.mxu0 %v947
    %1803 = vmatprep.subr.bf16.mxu0 %v956
    %1804 = vmatpush1.bf16.msra.mxu0 %v955
    %1805 = vmatprep.subr.bf16.mxu0 %v964
    %1806 = vmatpush1.bf16.msra.mxu0 %v963
    %1807 = vmatprep.subr.bf16.mxu0 %v972
    %1808 = vmatpush1.bf16.msra.mxu0 %v971
    %1809 = vmatprep.subr.bf16.mxu0 %v980
    %1810 = vmatpush1.bf16.msra.mxu0 %v979
    %1811 = vmatprep.subr.bf16.mxu0 %v988
    %1812 = vmatpush1.bf16.msra.mxu0 %v987
    %1813 = vmatprep.subr.bf16.mxu0 %v996
    %1814 = vmatpush1.bf16.msra.mxu0 %v995
    %1815 = vmatprep.subr.bf16.mxu0 %v1004
    %1816 = vmatpush1.bf16.msra.mxu0 %v1003
    %1817 = vmatprep.subr.bf16.mxu0 %v1012
    %1818 = vmatpush1.bf16.msra.mxu0 %v1011
    %1819 = vmatprep.subr.bf16.mxu0 %v1020
    %1820 = vmatpush1.bf16.msra.mxu0 %v1019
    %1821 = vmatprep.subr.bf16.mxu0 %v1028
    %1822 = vmatpush1.bf16.msra.mxu0 %v1027
    %1823 = vmatprep.subr.bf16.mxu0 %v1036
    %1824 = vmatpush1.bf16.msra.mxu0 %v1035
    %1825 = vmatprep.subr.bf16.mxu0 %v1044
    %1826 = vmatpush1.bf16.msra.mxu0 %v1043
    %1827 = vmatprep.subr.bf16.mxu0 %v1052
    %1828 = vmatpush1.bf16.msra.mxu0 %v1051
    %1829 = vmatprep.mubr.bf16.mxu0 %v666
    %1830 = vmatmul.mubr.bf16.gmra.mrb[0].mxu0 %v665
    %v1831 = vpop.f32.mrb[0].mxu0
    %v1832 = vadd.f32 %v1791, %v1831
    %v1833 = vpop.f32.mrb[0].mxu0
    %v1834 = vadd.f32 %v1793, %v1833
    %v1835 = vpop.f32.mrb[0].mxu0
    %v1836 = vpop.f32.mrb[0].mxu0
    %1837 = vdwg.mxu0
    %1838 = vmatprep.subr.bf16.mxu0 %v1060
    %1839 = vmatpush1.bf16.msra.mxu0 %v1059
    %1840 = vmatprep.subr.bf16.mxu0 %v1068
    %1841 = vmatpush1.bf16.msra.mxu0 %v1067
    %1842 = vmatprep.subr.bf16.mxu0 %v1076
    %1843 = vmatpush1.bf16.msra.mxu0 %v1075
    %1844 = vmatprep.subr.bf16.mxu0 %v1084
    %1845 = vmatpush1.bf16.msra.mxu0 %v1083
    %1846 = vmatprep.subr.bf16.mxu0 %v1092
    %1847 = vmatpush1.bf16.msra.mxu0 %v1091
    %1848 = vmatprep.subr.bf16.mxu0 %v1100
    %1849 = vmatpush1.bf16.msra.mxu0 %v1099
    %1850 = vmatprep.subr.bf16.mxu0 %v1108
    %1851 = vmatpush1.bf16.msra.mxu0 %v1107
    %1852 = vmatprep.subr.bf16.mxu0 %v1116
    %1853 = vmatpush1.bf16.msra.mxu0 %v1115
    %1854 = vmatprep.subr.bf16.mxu0 %v1124
    %1855 = vmatpush1.bf16.msra.mxu0 %v1123
    %1856 = vmatprep.subr.bf16.mxu0 %v1132
    %1857 = vmatpush1.bf16.msra.mxu0 %v1131
    %1858 = vmatprep.subr.bf16.mxu0 %v1140
    %1859 = vmatpush1.bf16.msra.mxu0 %v1139
    %1860 = vmatprep.subr.bf16.mxu0 %v1148
    %1861 = vmatpush1.bf16.msra.mxu0 %v1147
    %1862 = vmatprep.subr.bf16.mxu0 %v1156
    %1863 = vmatpush1.bf16.msra.mxu0 %v1155
    %1864 = vmatprep.subr.bf16.mxu0 %v1164
    %1865 = vmatpush1.bf16.msra.mxu0 %v1163
    %1866 = vmatprep.subr.bf16.mxu0 %v1172
    %1867 = vmatpush1.bf16.msra.mxu0 %v1171
    %1868 = vmatprep.subr.bf16.mxu0 %v1180
    %1869 = vmatpush1.bf16.msra.mxu0 %v1179
    %1870 = vmatprep.mubr.bf16.mxu0 %v668
    %1871 = vmatmul.mubr.bf16.gmra.mrb[0].mxu0 %v667
    %v1872 = vpop.f32.mrb[0].mxu0
    %v1873 = vadd.f32 %v1832, %v1872
    %v1874 = vpop.f32.mrb[0].mxu0
    %v1875 = vadd.f32 %v1834, %v1874
    %v1876 = vpop.f32.mrb[0].mxu0
    %v1877 = vpop.f32.mrb[0].mxu0
    %1878 = vdwg.mxu0
    %vm1879 = vcmp.gt.f32.partialorder %v1381, 0.0
    %vm1880 = vcmp.gt.f32.partialorder %v1383, 0.0
    %vm1881 = vcmp.gt.f32.partialorder %v1545, 0.0
    %vm1882 = vcmp.gt.f32.partialorder %v1547, 0.0
    %vm1883 = vcmp.gt.f32.partialorder %v1709, 0.0
    %vm1884 = vcmp.gt.f32.partialorder %v1711, 0.0
    %vm1885 = vcmp.gt.f32.partialorder %v1873, 0.0
    %vm1886 = vcmp.gt.f32.partialorder %v1875, 0.0
    %v1887 = vmul.f32 %v1381, 0.2
    %v1888 = vmul.f32 %v1383, 0.2
    %v1889 = vmul.f32 %v1545, 0.2
    %v1890 = vmul.f32 %v1547, 0.2
    %v1891 = vmul.f32 %v1709, 0.2
    %v1892 = vmul.f32 %v1711, 0.2
    %v1893 = vmul.f32 %v1873, 0.2
    %v1894 = vmul.f32 %v1875, 0.2
    %v1895 = vsel %vm1879, %v1381, %v1887
    %v1896 = vsel %vm1880, %v1383, %v1888
    %v1897 = vsel %vm1881, %v1545, %v1889
    %v1898 = vsel %vm1882, %v1547, %v1890
    %v1899 = vsel %vm1883, %v1709, %v1891
    %v1900 = vsel %vm1884, %v1711, %v1892
    %v1901 = vsel %vm1885, %v1873, %v1893
    %v1902 = vsel %vm1886, %v1875, %v1894
    %s1903 = sshll.u32 %s658, 4
    %1904 = dma.done %s135, %s1903
    %v1905 = vpack.c.bf16 %v1895, %v1895
    %v1906 = vpack.c.bf16 %v1896, %v1896
    %v1907 = vpack.c.bf16 %v1897, %v1897
    %v1908 = vpack.c.bf16 %v1898, %v1898
    %v1909 = vpack.c.bf16 %v1899, %v1899
    %v1910 = vpack.c.bf16 %v1900, %v1900
    %v1911 = vpack.c.bf16 %v1901, %v1901
    %v1912 = vpack.c.bf16 %v1902, %v1902
    %v1913 = vld [vmem:[#allocation3] sm:$0xff]
    %v1914 = vld [vmem:[#allocation3 + $0x8] sm:$0xff]
    %v1915 = vld [vmem:[#allocation3 + $0x10] sm:$0xff]
    %v1916 = vld [vmem:[#allocation3 + $0x18] sm:$0xff]
    %v1917 = vld [vmem:[#allocation3 + $0x20] sm:$0xff]
    %v1918 = vld [vmem:[#allocation3 + $0x28] sm:$0xff]
    %v1919 = vld [vmem:[#allocation3 + $0x30] sm:$0xff]
    %v1920 = vld [vmem:[#allocation3 + $0x38] sm:$0xff]
    %v1921 = vld [vmem:[#allocation3 + $0x40] sm:$0xff]
    %v1922 = vld [vmem:[#allocation3 + $0x48] sm:$0xff]
    %v1923 = vld [vmem:[#allocation3 + $0x50] sm:$0xff]
    %v1924 = vld [vmem:[#allocation3 + $0x58] sm:$0xff]
    %v1925 = vld [vmem:[#allocation3 + $0x60] sm:$0xff]
    %v1926 = vld [vmem:[#allocation3 + $0x68] sm:$0xff]
    %v1927 = vld [vmem:[#allocation3 + $0x70] sm:$0xff]
    %v1928 = vld [vmem:[#allocation3 + $0x78] sm:$0xff]
    %v1929 = vld [vmem:[#allocation3 + $0x80] sm:$0xff]
    %v1930 = vld [vmem:[#allocation3 + $0x88] sm:$0xff]
    %v1931 = vld [vmem:[#allocation3 + $0x90] sm:$0xff]
    %v1932 = vld [vmem:[#allocation3 + $0x98] sm:$0xff]
    %v1933 = vld [vmem:[#allocation3 + $0xa0] sm:$0xff]
    %v1934 = vld [vmem:[#allocation3 + $0xa8] sm:$0xff]
    %v1935 = vld [vmem:[#allocation3 + $0xb0] sm:$0xff]
    %v1936 = vld [vmem:[#allocation3 + $0xb8] sm:$0xff]
    %v1937 = vld [vmem:[#allocation3 + $0xc0] sm:$0xff]
    %v1938 = vld [vmem:[#allocation3 + $0xc8] sm:$0xff]
    %v1939 = vld [vmem:[#allocation3 + $0xd0] sm:$0xff]
    %v1940 = vld [vmem:[#allocation3 + $0xd8] sm:$0xff]
    %v1941 = vld [vmem:[#allocation3 + $0xe0] sm:$0xff]
    %v1942 = vld [vmem:[#allocation3 + $0xe8] sm:$0xff]
    %v1943 = vld [vmem:[#allocation3 + $0xf0] sm:$0xff]
    %v1944 = vld [vmem:[#allocation3 + $0xf8] sm:$0xff]
    %v1945 = vld [vmem:[#allocation3 + $0x100] sm:$0xff]
    %v1946 = vld [vmem:[#allocation3 + $0x108] sm:$0xff]
    %v1947 = vld [vmem:[#allocation3 + $0x110] sm:$0xff]
    %v1948 = vld [vmem:[#allocation3 + $0x118] sm:$0xff]
    %v1949 = vld [vmem:[#allocation3 + $0x120] sm:$0xff]
    %v1950 = vld [vmem:[#allocation3 + $0x128] sm:$0xff]
    %v1951 = vld [vmem:[#allocation3 + $0x130] sm:$0xff]
    %v1952 = vld [vmem:[#allocation3 + $0x138] sm:$0xff]
    %v1953 = vld [vmem:[#allocation3 + $0x140] sm:$0xff]
    %v1954 = vld [vmem:[#allocation3 + $0x148] sm:$0xff]
    %v1955 = vld [vmem:[#allocation3 + $0x150] sm:$0xff]
    %v1956 = vld [vmem:[#allocation3 + $0x158] sm:$0xff]
    %v1957 = vld [vmem:[#allocation3 + $0x160] sm:$0xff]
    %v1958 = vld [vmem:[#allocation3 + $0x168] sm:$0xff]
    %v1959 = vld [vmem:[#allocation3 + $0x170] sm:$0xff]
    %v1960 = vld [vmem:[#allocation3 + $0x178] sm:$0xff]
    %v1961 = vld [vmem:[#allocation3 + $0x180] sm:$0xff]
    %v1962 = vld [vmem:[#allocation3 + $0x188] sm:$0xff]
    %v1963 = vld [vmem:[#allocation3 + $0x190] sm:$0xff]
    %v1964 = vld [vmem:[#allocation3 + $0x198] sm:$0xff]
    %v1965 = vld [vmem:[#allocation3 + $0x1a0] sm:$0xff]
    %v1966 = vld [vmem:[#allocation3 + $0x1a8] sm:$0xff]
    %v1967 = vld [vmem:[#allocation3 + $0x1b0] sm:$0xff]
    %v1968 = vld [vmem:[#allocation3 + $0x1b8] sm:$0xff]
    %v1969 = vld [vmem:[#allocation3 + $0x1c0] sm:$0xff]
    %v1970 = vld [vmem:[#allocation3 + $0x1c8] sm:$0xff]
    %v1971 = vld [vmem:[#allocation3 + $0x1d0] sm:$0xff]
    %v1972 = vld [vmem:[#allocation3 + $0x1d8] sm:$0xff]
    %v1973 = vld [vmem:[#allocation3 + $0x1e0] sm:$0xff]
    %v1974 = vld [vmem:[#allocation3 + $0x1e8] sm:$0xff]
    %v1975 = vld [vmem:[#allocation3 + $0x1f0] sm:$0xff]
    %v1976 = vld [vmem:[#allocation3 + $0x1f8] sm:$0xff]
    %v1977 = vld [vmem:[#allocation3 + $0x200] sm:$0xff]
    %v1978 = vld [vmem:[#allocation3 + $0x208] sm:$0xff]
    %v1979 = vld [vmem:[#allocation3 + $0x210] sm:$0xff]
    %v1980 = vld [vmem:[#allocation3 + $0x218] sm:$0xff]
    %v1981 = vld [vmem:[#allocation3 + $0x220] sm:$0xff]
    %v1982 = vld [vmem:[#allocation3 + $0x228] sm:$0xff]
    %v1983 = vld [vmem:[#allocation3 + $0x230] sm:$0xff]
    %v1984 = vld [vmem:[#allocation3 + $0x238] sm:$0xff]
    %v1985 = vld [vmem:[#allocation3 + $0x240] sm:$0xff]
    %v1986 = vld [vmem:[#allocation3 + $0x248] sm:$0xff]
    %v1987 = vld [vmem:[#allocation3 + $0x250] sm:$0xff]
    %v1988 = vld [vmem:[#allocation3 + $0x258] sm:$0xff]
    %v1989 = vld [vmem:[#allocation3 + $0x260] sm:$0xff]
    %v1990 = vld [vmem:[#allocation3 + $0x268] sm:$0xff]
    %v1991 = vld [vmem:[#allocation3 + $0x270] sm:$0xff]
    %v1992 = vld [vmem:[#allocation3 + $0x278] sm:$0xff]
    %v1993 = vld [vmem:[#allocation3 + $0x280] sm:$0xff]
    %v1994 = vld [vmem:[#allocation3 + $0x288] sm:$0xff]
    %v1995 = vld [vmem:[#allocation3 + $0x290] sm:$0xff]
    %v1996 = vld [vmem:[#allocation3 + $0x298] sm:$0xff]
    %v1997 = vld [vmem:[#allocation3 + $0x2a0] sm:$0xff]
    %v1998 = vld [vmem:[#allocation3 + $0x2a8] sm:$0xff]
    %v1999 = vld [vmem:[#allocation3 + $0x2b0] sm:$0xff]
    %v2000 = vld [vmem:[#allocation3 + $0x2b8] sm:$0xff]
    %v2001 = vld [vmem:[#allocation3 + $0x2c0] sm:$0xff]
    %v2002 = vld [vmem:[#allocation3 + $0x2c8] sm:$0xff]
    %v2003 = vld [vmem:[#allocation3 + $0x2d0] sm:$0xff]
    %v2004 = vld [vmem:[#allocation3 + $0x2d8] sm:$0xff]
    %v2005 = vld [vmem:[#allocation3 + $0x2e0] sm:$0xff]
    %v2006 = vld [vmem:[#allocation3 + $0x2e8] sm:$0xff]
    %v2007 = vld [vmem:[#allocation3 + $0x2f0] sm:$0xff]
    %v2008 = vld [vmem:[#allocation3 + $0x2f8] sm:$0xff]
    %v2009 = vld [vmem:[#allocation3 + $0x300] sm:$0xff]
    %v2010 = vld [vmem:[#allocation3 + $0x308] sm:$0xff]
    %v2011 = vld [vmem:[#allocation3 + $0x310] sm:$0xff]
    %v2012 = vld [vmem:[#allocation3 + $0x318] sm:$0xff]
    %v2013 = vld [vmem:[#allocation3 + $0x320] sm:$0xff]
    %v2014 = vld [vmem:[#allocation3 + $0x328] sm:$0xff]
    %v2015 = vld [vmem:[#allocation3 + $0x330] sm:$0xff]
    %v2016 = vld [vmem:[#allocation3 + $0x338] sm:$0xff]
    %v2017 = vld [vmem:[#allocation3 + $0x340] sm:$0xff]
    %v2018 = vld [vmem:[#allocation3 + $0x348] sm:$0xff]
    %v2019 = vld [vmem:[#allocation3 + $0x350] sm:$0xff]
    %v2020 = vld [vmem:[#allocation3 + $0x358] sm:$0xff]
    %v2021 = vld [vmem:[#allocation3 + $0x360] sm:$0xff]
    %v2022 = vld [vmem:[#allocation3 + $0x368] sm:$0xff]
    %v2023 = vld [vmem:[#allocation3 + $0x370] sm:$0xff]
    %v2024 = vld [vmem:[#allocation3 + $0x378] sm:$0xff]
    %v2025 = vld [vmem:[#allocation3 + $0x380] sm:$0xff]
    %v2026 = vld [vmem:[#allocation3 + $0x388] sm:$0xff]
    %v2027 = vld [vmem:[#allocation3 + $0x390] sm:$0xff]
    %v2028 = vld [vmem:[#allocation3 + $0x398] sm:$0xff]
    %v2029 = vld [vmem:[#allocation3 + $0x3a0] sm:$0xff]
    %v2030 = vld [vmem:[#allocation3 + $0x3a8] sm:$0xff]
    %v2031 = vld [vmem:[#allocation3 + $0x3b0] sm:$0xff]
    %v2032 = vld [vmem:[#allocation3 + $0x3b8] sm:$0xff]
    %v2033 = vld [vmem:[#allocation3 + $0x3c0] sm:$0xff]
    %v2034 = vld [vmem:[#allocation3 + $0x3c8] sm:$0xff]
    %v2035 = vld [vmem:[#allocation3 + $0x3d0] sm:$0xff]
    %v2036 = vld [vmem:[#allocation3 + $0x3d8] sm:$0xff]
    %v2037 = vld [vmem:[#allocation3 + $0x3e0] sm:$0xff]
    %v2038 = vld [vmem:[#allocation3 + $0x3e8] sm:$0xff]
    %v2039 = vld [vmem:[#allocation3 + $0x3f0] sm:$0xff]
    %v2040 = vld [vmem:[#allocation3 + $0x3f8] sm:$0xff]
    %v2041 = vld [vmem:[#allocation3 + $0x400] sm:$0xff]
    %v2042 = vld [vmem:[#allocation3 + $0x408] sm:$0xff]
    %v2043 = vld [vmem:[#allocation3 + $0x410] sm:$0xff]
    %v2044 = vld [vmem:[#allocation3 + $0x418] sm:$0xff]
    %v2045 = vld [vmem:[#allocation3 + $0x420] sm:$0xff]
    %v2046 = vld [vmem:[#allocation3 + $0x428] sm:$0xff]
    %v2047 = vld [vmem:[#allocation3 + $0x430] sm:$0xff]
    %v2048 = vld [vmem:[#allocation3 + $0x438] sm:$0xff]
    %v2049 = vld [vmem:[#allocation3 + $0x440] sm:$0xff]
    %v2050 = vld [vmem:[#allocation3 + $0x448] sm:$0xff]
    %v2051 = vld [vmem:[#allocation3 + $0x450] sm:$0xff]
    %v2052 = vld [vmem:[#allocation3 + $0x458] sm:$0xff]
    %v2053 = vld [vmem:[#allocation3 + $0x460] sm:$0xff]
    %v2054 = vld [vmem:[#allocation3 + $0x468] sm:$0xff]
    %v2055 = vld [vmem:[#allocation3 + $0x470] sm:$0xff]
    %v2056 = vld [vmem:[#allocation3 + $0x478] sm:$0xff]
    %v2057 = vld [vmem:[#allocation3 + $0x480] sm:$0xff]
    %v2058 = vld [vmem:[#allocation3 + $0x488] sm:$0xff]
    %v2059 = vld [vmem:[#allocation3 + $0x490] sm:$0xff]
    %v2060 = vld [vmem:[#allocation3 + $0x498] sm:$0xff]
    %v2061 = vld [vmem:[#allocation3 + $0x4a0] sm:$0xff]
    %v2062 = vld [vmem:[#allocation3 + $0x4a8] sm:$0xff]
    %v2063 = vld [vmem:[#allocation3 + $0x4b0] sm:$0xff]
    %v2064 = vld [vmem:[#allocation3 + $0x4b8] sm:$0xff]
    %v2065 = vld [vmem:[#allocation3 + $0x4c0] sm:$0xff]
    %v2066 = vld [vmem:[#allocation3 + $0x4c8] sm:$0xff]
    %v2067 = vld [vmem:[#allocation3 + $0x4d0] sm:$0xff]
    %v2068 = vld [vmem:[#allocation3 + $0x4d8] sm:$0xff]
    %v2069 = vld [vmem:[#allocation3 + $0x4e0] sm:$0xff]
    %v2070 = vld [vmem:[#allocation3 + $0x4e8] sm:$0xff]
    %v2071 = vld [vmem:[#allocation3 + $0x4f0] sm:$0xff]
    %v2072 = vld [vmem:[#allocation3 + $0x4f8] sm:$0xff]
    %v2073 = vld [vmem:[#allocation3 + $0x500] sm:$0xff]
    %v2074 = vld [vmem:[#allocation3 + $0x508] sm:$0xff]
    %v2075 = vld [vmem:[#allocation3 + $0x510] sm:$0xff]
    %v2076 = vld [vmem:[#allocation3 + $0x518] sm:$0xff]
    %v2077 = vld [vmem:[#allocation3 + $0x520] sm:$0xff]
    %v2078 = vld [vmem:[#allocation3 + $0x528] sm:$0xff]
    %v2079 = vld [vmem:[#allocation3 + $0x530] sm:$0xff]
    %v2080 = vld [vmem:[#allocation3 + $0x538] sm:$0xff]
    %v2081 = vld [vmem:[#allocation3 + $0x540] sm:$0xff]
    %v2082 = vld [vmem:[#allocation3 + $0x548] sm:$0xff]
    %v2083 = vld [vmem:[#allocation3 + $0x550] sm:$0xff]
    %v2084 = vld [vmem:[#allocation3 + $0x558] sm:$0xff]
    %v2085 = vld [vmem:[#allocation3 + $0x560] sm:$0xff]
    %v2086 = vld [vmem:[#allocation3 + $0x568] sm:$0xff]
    %v2087 = vld [vmem:[#allocation3 + $0x570] sm:$0xff]
    %v2088 = vld [vmem:[#allocation3 + $0x578] sm:$0xff]
    %v2089 = vld [vmem:[#allocation3 + $0x580] sm:$0xff]
    %v2090 = vld [vmem:[#allocation3 + $0x588] sm:$0xff]
    %v2091 = vld [vmem:[#allocation3 + $0x590] sm:$0xff]
    %v2092 = vld [vmem:[#allocation3 + $0x598] sm:$0xff]
    %v2093 = vld [vmem:[#allocation3 + $0x5a0] sm:$0xff]
    %v2094 = vld [vmem:[#allocation3 + $0x5a8] sm:$0xff]
    %v2095 = vld [vmem:[#allocation3 + $0x5b0] sm:$0xff]
    %v2096 = vld [vmem:[#allocation3 + $0x5b8] sm:$0xff]
    %v2097 = vld [vmem:[#allocation3 + $0x5c0] sm:$0xff]
    %v2098 = vld [vmem:[#allocation3 + $0x5c8] sm:$0xff]
    %v2099 = vld [vmem:[#allocation3 + $0x5d0] sm:$0xff]
    %v2100 = vld [vmem:[#allocation3 + $0x5d8] sm:$0xff]
    %v2101 = vld [vmem:[#allocation3 + $0x5e0] sm:$0xff]
    %v2102 = vld [vmem:[#allocation3 + $0x5e8] sm:$0xff]
    %v2103 = vld [vmem:[#allocation3 + $0x5f0] sm:$0xff]
    %v2104 = vld [vmem:[#allocation3 + $0x5f8] sm:$0xff]
    %v2105 = vld [vmem:[#allocation3 + $0x600] sm:$0xff]
    %v2106 = vld [vmem:[#allocation3 + $0x608] sm:$0xff]
    %v2107 = vld [vmem:[#allocation3 + $0x610] sm:$0xff]
    %v2108 = vld [vmem:[#allocation3 + $0x618] sm:$0xff]
    %v2109 = vld [vmem:[#allocation3 + $0x620] sm:$0xff]
    %v2110 = vld [vmem:[#allocation3 + $0x628] sm:$0xff]
    %v2111 = vld [vmem:[#allocation3 + $0x630] sm:$0xff]
    %v2112 = vld [vmem:[#allocation3 + $0x638] sm:$0xff]
    %v2113 = vld [vmem:[#allocation3 + $0x640] sm:$0xff]
    %v2114 = vld [vmem:[#allocation3 + $0x648] sm:$0xff]
    %v2115 = vld [vmem:[#allocation3 + $0x650] sm:$0xff]
    %v2116 = vld [vmem:[#allocation3 + $0x658] sm:$0xff]
    %v2117 = vld [vmem:[#allocation3 + $0x660] sm:$0xff]
    %v2118 = vld [vmem:[#allocation3 + $0x668] sm:$0xff]
    %v2119 = vld [vmem:[#allocation3 + $0x670] sm:$0xff]
    %v2120 = vld [vmem:[#allocation3 + $0x678] sm:$0xff]
    %v2121 = vld [vmem:[#allocation3 + $0x680] sm:$0xff]
    %v2122 = vld [vmem:[#allocation3 + $0x688] sm:$0xff]
    %v2123 = vld [vmem:[#allocation3 + $0x690] sm:$0xff]
    %v2124 = vld [vmem:[#allocation3 + $0x698] sm:$0xff]
    %v2125 = vld [vmem:[#allocation3 + $0x6a0] sm:$0xff]
    %v2126 = vld [vmem:[#allocation3 + $0x6a8] sm:$0xff]
    %v2127 = vld [vmem:[#allocation3 + $0x6b0] sm:$0xff]
    %v2128 = vld [vmem:[#allocation3 + $0x6b8] sm:$0xff]
    %v2129 = vld [vmem:[#allocation3 + $0x6c0] sm:$0xff]
    %v2130 = vld [vmem:[#allocation3 + $0x6c8] sm:$0xff]
    %v2131 = vld [vmem:[#allocation3 + $0x6d0] sm:$0xff]
    %v2132 = vld [vmem:[#allocation3 + $0x6d8] sm:$0xff]
    %v2133 = vld [vmem:[#allocation3 + $0x6e0] sm:$0xff]
    %v2134 = vld [vmem:[#allocation3 + $0x6e8] sm:$0xff]
    %v2135 = vld [vmem:[#allocation3 + $0x6f0] sm:$0xff]
    %v2136 = vld [vmem:[#allocation3 + $0x6f8] sm:$0xff]
    %v2137 = vld [vmem:[#allocation3 + $0x700] sm:$0xff]
    %v2138 = vld [vmem:[#allocation3 + $0x708] sm:$0xff]
    %v2139 = vld [vmem:[#allocation3 + $0x710] sm:$0xff]
    %v2140 = vld [vmem:[#allocation3 + $0x718] sm:$0xff]
    %v2141 = vld [vmem:[#allocation3 + $0x720] sm:$0xff]
    %v2142 = vld [vmem:[#allocation3 + $0x728] sm:$0xff]
    %v2143 = vld [vmem:[#allocation3 + $0x730] sm:$0xff]
    %v2144 = vld [vmem:[#allocation3 + $0x738] sm:$0xff]
    %v2145 = vld [vmem:[#allocation3 + $0x740] sm:$0xff]
    %v2146 = vld [vmem:[#allocation3 + $0x748] sm:$0xff]
    %v2147 = vld [vmem:[#allocation3 + $0x750] sm:$0xff]
    %v2148 = vld [vmem:[#allocation3 + $0x758] sm:$0xff]
    %v2149 = vld [vmem:[#allocation3 + $0x760] sm:$0xff]
    %v2150 = vld [vmem:[#allocation3 + $0x768] sm:$0xff]
    %v2151 = vld [vmem:[#allocation3 + $0x770] sm:$0xff]
    %v2152 = vld [vmem:[#allocation3 + $0x778] sm:$0xff]
    %v2153 = vld [vmem:[#allocation3 + $0x780] sm:$0xff]
    %v2154 = vld [vmem:[#allocation3 + $0x788] sm:$0xff]
    %v2155 = vld [vmem:[#allocation3 + $0x790] sm:$0xff]
    %v2156 = vld [vmem:[#allocation3 + $0x798] sm:$0xff]
    %v2157 = vld [vmem:[#allocation3 + $0x7a0] sm:$0xff]
    %v2158 = vld [vmem:[#allocation3 + $0x7a8] sm:$0xff]
    %v2159 = vld [vmem:[#allocation3 + $0x7b0] sm:$0xff]
    %v2160 = vld [vmem:[#allocation3 + $0x7b8] sm:$0xff]
    %v2161 = vld [vmem:[#allocation3 + $0x7c0] sm:$0xff]
    %v2162 = vld [vmem:[#allocation3 + $0x7c8] sm:$0xff]
    %v2163 = vld [vmem:[#allocation3 + $0x7d0] sm:$0xff]
    %v2164 = vld [vmem:[#allocation3 + $0x7d8] sm:$0xff]
    %v2165 = vld [vmem:[#allocation3 + $0x7e0] sm:$0xff]
    %v2166 = vld [vmem:[#allocation3 + $0x7e8] sm:$0xff]
    %v2167 = vld [vmem:[#allocation3 + $0x7f0] sm:$0xff]
    %v2168 = vld [vmem:[#allocation3 + $0x7f8] sm:$0xff]
    %v2169 = vld [vmem:[#allocation3 + $0x800] sm:$0xff]
    %v2170 = vld [vmem:[#allocation3 + $0x808] sm:$0xff]
    %v2171 = vld [vmem:[#allocation3 + $0x810] sm:$0xff]
    %v2172 = vld [vmem:[#allocation3 + $0x818] sm:$0xff]
    %v2173 = vld [vmem:[#allocation3 + $0x820] sm:$0xff]
    %v2174 = vld [vmem:[#allocation3 + $0x828] sm:$0xff]
    %v2175 = vld [vmem:[#allocation3 + $0x830] sm:$0xff]
    %v2176 = vld [vmem:[#allocation3 + $0x838] sm:$0xff]
    %v2177 = vld [vmem:[#allocation3 + $0x840] sm:$0xff]
    %v2178 = vld [vmem:[#allocation3 + $0x848] sm:$0xff]
    %v2179 = vld [vmem:[#allocation3 + $0x850] sm:$0xff]
    %v2180 = vld [vmem:[#allocation3 + $0x858] sm:$0xff]
    %v2181 = vld [vmem:[#allocation3 + $0x860] sm:$0xff]
    %v2182 = vld [vmem:[#allocation3 + $0x868] sm:$0xff]
    %v2183 = vld [vmem:[#allocation3 + $0x870] sm:$0xff]
    %v2184 = vld [vmem:[#allocation3 + $0x878] sm:$0xff]
    %v2185 = vld [vmem:[#allocation3 + $0x880] sm:$0xff]
    %v2186 = vld [vmem:[#allocation3 + $0x888] sm:$0xff]
    %v2187 = vld [vmem:[#allocation3 + $0x890] sm:$0xff]
    %v2188 = vld [vmem:[#allocation3 + $0x898] sm:$0xff]
    %v2189 = vld [vmem:[#allocation3 + $0x8a0] sm:$0xff]
    %v2190 = vld [vmem:[#allocation3 + $0x8a8] sm:$0xff]
    %v2191 = vld [vmem:[#allocation3 + $0x8b0] sm:$0xff]
    %v2192 = vld [vmem:[#allocation3 + $0x8b8] sm:$0xff]
    %v2193 = vld [vmem:[#allocation3 + $0x8c0] sm:$0xff]
    %v2194 = vld [vmem:[#allocation3 + $0x8c8] sm:$0xff]
    %v2195 = vld [vmem:[#allocation3 + $0x8d0] sm:$0xff]
    %v2196 = vld [vmem:[#allocation3 + $0x8d8] sm:$0xff]
    %v2197 = vld [vmem:[#allocation3 + $0x8e0] sm:$0xff]
    %v2198 = vld [vmem:[#allocation3 + $0x8e8] sm:$0xff]
    %v2199 = vld [vmem:[#allocation3 + $0x8f0] sm:$0xff]
    %v2200 = vld [vmem:[#allocation3 + $0x8f8] sm:$0xff]
    %v2201 = vld [vmem:[#allocation3 + $0x900] sm:$0xff]
    %v2202 = vld [vmem:[#allocation3 + $0x908] sm:$0xff]
    %v2203 = vld [vmem:[#allocation3 + $0x910] sm:$0xff]
    %v2204 = vld [vmem:[#allocation3 + $0x918] sm:$0xff]
    %v2205 = vld [vmem:[#allocation3 + $0x920] sm:$0xff]
    %v2206 = vld [vmem:[#allocation3 + $0x928] sm:$0xff]
    %v2207 = vld [vmem:[#allocation3 + $0x930] sm:$0xff]
    %v2208 = vld [vmem:[#allocation3 + $0x938] sm:$0xff]
    %v2209 = vld [vmem:[#allocation3 + $0x940] sm:$0xff]
    %v2210 = vld [vmem:[#allocation3 + $0x948] sm:$0xff]
    %v2211 = vld [vmem:[#allocation3 + $0x950] sm:$0xff]
    %v2212 = vld [vmem:[#allocation3 + $0x958] sm:$0xff]
    %v2213 = vld [vmem:[#allocation3 + $0x960] sm:$0xff]
    %v2214 = vld [vmem:[#allocation3 + $0x968] sm:$0xff]
    %v2215 = vld [vmem:[#allocation3 + $0x970] sm:$0xff]
    %v2216 = vld [vmem:[#allocation3 + $0x978] sm:$0xff]
    %v2217 = vld [vmem:[#allocation3 + $0x980] sm:$0xff]
    %v2218 = vld [vmem:[#allocation3 + $0x988] sm:$0xff]
    %v2219 = vld [vmem:[#allocation3 + $0x990] sm:$0xff]
    %v2220 = vld [vmem:[#allocation3 + $0x998] sm:$0xff]
    %v2221 = vld [vmem:[#allocation3 + $0x9a0] sm:$0xff]
    %v2222 = vld [vmem:[#allocation3 + $0x9a8] sm:$0xff]
    %v2223 = vld [vmem:[#allocation3 + $0x9b0] sm:$0xff]
    %v2224 = vld [vmem:[#allocation3 + $0x9b8] sm:$0xff]
    %v2225 = vld [vmem:[#allocation3 + $0x9c0] sm:$0xff]
    %v2226 = vld [vmem:[#allocation3 + $0x9c8] sm:$0xff]
    %v2227 = vld [vmem:[#allocation3 + $0x9d0] sm:$0xff]
    %v2228 = vld [vmem:[#allocation3 + $0x9d8] sm:$0xff]
    %v2229 = vld [vmem:[#allocation3 + $0x9e0] sm:$0xff]
    %v2230 = vld [vmem:[#allocation3 + $0x9e8] sm:$0xff]
    %v2231 = vld [vmem:[#allocation3 + $0x9f0] sm:$0xff]
    %v2232 = vld [vmem:[#allocation3 + $0x9f8] sm:$0xff]
    %v2233 = vld [vmem:[#allocation3 + $0xa00] sm:$0xff]
    %v2234 = vld [vmem:[#allocation3 + $0xa08] sm:$0xff]
    %v2235 = vld [vmem:[#allocation3 + $0xa10] sm:$0xff]
    %v2236 = vld [vmem:[#allocation3 + $0xa18] sm:$0xff]
    %v2237 = vld [vmem:[#allocation3 + $0xa20] sm:$0xff]
    %v2238 = vld [vmem:[#allocation3 + $0xa28] sm:$0xff]
    %v2239 = vld [vmem:[#allocation3 + $0xa30] sm:$0xff]
    %v2240 = vld [vmem:[#allocation3 + $0xa38] sm:$0xff]
    %v2241 = vld [vmem:[#allocation3 + $0xa40] sm:$0xff]
    %v2242 = vld [vmem:[#allocation3 + $0xa48] sm:$0xff]
    %v2243 = vld [vmem:[#allocation3 + $0xa50] sm:$0xff]
    %v2244 = vld [vmem:[#allocation3 + $0xa58] sm:$0xff]
    %v2245 = vld [vmem:[#allocation3 + $0xa60] sm:$0xff]
    %v2246 = vld [vmem:[#allocation3 + $0xa68] sm:$0xff]
    %v2247 = vld [vmem:[#allocation3 + $0xa70] sm:$0xff]
    %v2248 = vld [vmem:[#allocation3 + $0xa78] sm:$0xff]
    %v2249 = vld [vmem:[#allocation3 + $0xa80] sm:$0xff]
    %v2250 = vld [vmem:[#allocation3 + $0xa88] sm:$0xff]
    %v2251 = vld [vmem:[#allocation3 + $0xa90] sm:$0xff]
    %v2252 = vld [vmem:[#allocation3 + $0xa98] sm:$0xff]
    %v2253 = vld [vmem:[#allocation3 + $0xaa0] sm:$0xff]
    %v2254 = vld [vmem:[#allocation3 + $0xaa8] sm:$0xff]
    %v2255 = vld [vmem:[#allocation3 + $0xab0] sm:$0xff]
    %v2256 = vld [vmem:[#allocation3 + $0xab8] sm:$0xff]
    %v2257 = vld [vmem:[#allocation3 + $0xac0] sm:$0xff]
    %v2258 = vld [vmem:[#allocation3 + $0xac8] sm:$0xff]
    %v2259 = vld [vmem:[#allocation3 + $0xad0] sm:$0xff]
    %v2260 = vld [vmem:[#allocation3 + $0xad8] sm:$0xff]
    %v2261 = vld [vmem:[#allocation3 + $0xae0] sm:$0xff]
    %v2262 = vld [vmem:[#allocation3 + $0xae8] sm:$0xff]
    %v2263 = vld [vmem:[#allocation3 + $0xaf0] sm:$0xff]
    %v2264 = vld [vmem:[#allocation3 + $0xaf8] sm:$0xff]
    %v2265 = vld [vmem:[#allocation3 + $0xb00] sm:$0xff]
    %v2266 = vld [vmem:[#allocation3 + $0xb08] sm:$0xff]
    %v2267 = vld [vmem:[#allocation3 + $0xb10] sm:$0xff]
    %v2268 = vld [vmem:[#allocation3 + $0xb18] sm:$0xff]
    %v2269 = vld [vmem:[#allocation3 + $0xb20] sm:$0xff]
    %v2270 = vld [vmem:[#allocation3 + $0xb28] sm:$0xff]
    %v2271 = vld [vmem:[#allocation3 + $0xb30] sm:$0xff]
    %v2272 = vld [vmem:[#allocation3 + $0xb38] sm:$0xff]
    %v2273 = vld [vmem:[#allocation3 + $0xb40] sm:$0xff]
    %v2274 = vld [vmem:[#allocation3 + $0xb48] sm:$0xff]
    %v2275 = vld [vmem:[#allocation3 + $0xb50] sm:$0xff]
    %v2276 = vld [vmem:[#allocation3 + $0xb58] sm:$0xff]
    %v2277 = vld [vmem:[#allocation3 + $0xb60] sm:$0xff]
    %v2278 = vld [vmem:[#allocation3 + $0xb68] sm:$0xff]
    %v2279 = vld [vmem:[#allocation3 + $0xb70] sm:$0xff]
    %v2280 = vld [vmem:[#allocation3 + $0xb78] sm:$0xff]
    %v2281 = vld [vmem:[#allocation3 + $0xb80] sm:$0xff]
    %v2282 = vld [vmem:[#allocation3 + $0xb88] sm:$0xff]
    %v2283 = vld [vmem:[#allocation3 + $0xb90] sm:$0xff]
    %v2284 = vld [vmem:[#allocation3 + $0xb98] sm:$0xff]
    %v2285 = vld [vmem:[#allocation3 + $0xba0] sm:$0xff]
    %v2286 = vld [vmem:[#allocation3 + $0xba8] sm:$0xff]
    %v2287 = vld [vmem:[#allocation3 + $0xbb0] sm:$0xff]
    %v2288 = vld [vmem:[#allocation3 + $0xbb8] sm:$0xff]
    %v2289 = vld [vmem:[#allocation3 + $0xbc0] sm:$0xff]
    %v2290 = vld [vmem:[#allocation3 + $0xbc8] sm:$0xff]
    %v2291 = vld [vmem:[#allocation3 + $0xbd0] sm:$0xff]
    %v2292 = vld [vmem:[#allocation3 + $0xbd8] sm:$0xff]
    %v2293 = vld [vmem:[#allocation3 + $0xbe0] sm:$0xff]
    %v2294 = vld [vmem:[#allocation3 + $0xbe8] sm:$0xff]
    %v2295 = vld [vmem:[#allocation3 + $0xbf0] sm:$0xff]
    %v2296 = vld [vmem:[#allocation3 + $0xbf8] sm:$0xff]
    %v2297 = vld [vmem:[#allocation3 + $0xc00] sm:$0xff]
    %v2298 = vld [vmem:[#allocation3 + $0xc08] sm:$0xff]
    %v2299 = vld [vmem:[#allocation3 + $0xc10] sm:$0xff]
    %v2300 = vld [vmem:[#allocation3 + $0xc18] sm:$0xff]
    %v2301 = vld [vmem:[#allocation3 + $0xc20] sm:$0xff]
    %v2302 = vld [vmem:[#allocation3 + $0xc28] sm:$0xff]
    %v2303 = vld [vmem:[#allocation3 + $0xc30] sm:$0xff]
    %v2304 = vld [vmem:[#allocation3 + $0xc38] sm:$0xff]
    %v2305 = vld [vmem:[#allocation3 + $0xc40] sm:$0xff]
    %v2306 = vld [vmem:[#allocation3 + $0xc48] sm:$0xff]
    %v2307 = vld [vmem:[#allocation3 + $0xc50] sm:$0xff]
    %v2308 = vld [vmem:[#allocation3 + $0xc58] sm:$0xff]
    %v2309 = vld [vmem:[#allocation3 + $0xc60] sm:$0xff]
    %v2310 = vld [vmem:[#allocation3 + $0xc68] sm:$0xff]
    %v2311 = vld [vmem:[#allocation3 + $0xc70] sm:$0xff]
    %v2312 = vld [vmem:[#allocation3 + $0xc78] sm:$0xff]
    %v2313 = vld [vmem:[#allocation3 + $0xc80] sm:$0xff]
    %v2314 = vld [vmem:[#allocation3 + $0xc88] sm:$0xff]
    %v2315 = vld [vmem:[#allocation3 + $0xc90] sm:$0xff]
    %v2316 = vld [vmem:[#allocation3 + $0xc98] sm:$0xff]
    %v2317 = vld [vmem:[#allocation3 + $0xca0] sm:$0xff]
    %v2318 = vld [vmem:[#allocation3 + $0xca8] sm:$0xff]
    %v2319 = vld [vmem:[#allocation3 + $0xcb0] sm:$0xff]
    %v2320 = vld [vmem:[#allocation3 + $0xcb8] sm:$0xff]
    %v2321 = vld [vmem:[#allocation3 + $0xcc0] sm:$0xff]
    %v2322 = vld [vmem:[#allocation3 + $0xcc8] sm:$0xff]
    %v2323 = vld [vmem:[#allocation3 + $0xcd0] sm:$0xff]
    %v2324 = vld [vmem:[#allocation3 + $0xcd8] sm:$0xff]
    %v2325 = vld [vmem:[#allocation3 + $0xce0] sm:$0xff]
    %v2326 = vld [vmem:[#allocation3 + $0xce8] sm:$0xff]
    %v2327 = vld [vmem:[#allocation3 + $0xcf0] sm:$0xff]
    %v2328 = vld [vmem:[#allocation3 + $0xcf8] sm:$0xff]
    %v2329 = vld [vmem:[#allocation3 + $0xd00] sm:$0xff]
    %v2330 = vld [vmem:[#allocation3 + $0xd08] sm:$0xff]
    %v2331 = vld [vmem:[#allocation3 + $0xd10] sm:$0xff]
    %v2332 = vld [vmem:[#allocation3 + $0xd18] sm:$0xff]
    %v2333 = vld [vmem:[#allocation3 + $0xd20] sm:$0xff]
    %v2334 = vld [vmem:[#allocation3 + $0xd28] sm:$0xff]
    %v2335 = vld [vmem:[#allocation3 + $0xd30] sm:$0xff]
    %v2336 = vld [vmem:[#allocation3 + $0xd38] sm:$0xff]
    %v2337 = vld [vmem:[#allocation3 + $0xd40] sm:$0xff]
    %v2338 = vld [vmem:[#allocation3 + $0xd48] sm:$0xff]
    %v2339 = vld [vmem:[#allocation3 + $0xd50] sm:$0xff]
    %v2340 = vld [vmem:[#allocation3 + $0xd58] sm:$0xff]
    %v2341 = vld [vmem:[#allocation3 + $0xd60] sm:$0xff]
    %v2342 = vld [vmem:[#allocation3 + $0xd68] sm:$0xff]
    %v2343 = vld [vmem:[#allocation3 + $0xd70] sm:$0xff]
    %v2344 = vld [vmem:[#allocation3 + $0xd78] sm:$0xff]
    %v2345 = vld [vmem:[#allocation3 + $0xd80] sm:$0xff]
    %v2346 = vld [vmem:[#allocation3 + $0xd88] sm:$0xff]
    %v2347 = vld [vmem:[#allocation3 + $0xd90] sm:$0xff]
    %v2348 = vld [vmem:[#allocation3 + $0xd98] sm:$0xff]
    %v2349 = vld [vmem:[#allocation3 + $0xda0] sm:$0xff]
    %v2350 = vld [vmem:[#allocation3 + $0xda8] sm:$0xff]
    %v2351 = vld [vmem:[#allocation3 + $0xdb0] sm:$0xff]
    %v2352 = vld [vmem:[#allocation3 + $0xdb8] sm:$0xff]
    %v2353 = vld [vmem:[#allocation3 + $0xdc0] sm:$0xff]
    %v2354 = vld [vmem:[#allocation3 + $0xdc8] sm:$0xff]
    %v2355 = vld [vmem:[#allocation3 + $0xdd0] sm:$0xff]
    %v2356 = vld [vmem:[#allocation3 + $0xdd8] sm:$0xff]
    %v2357 = vld [vmem:[#allocation3 + $0xde0] sm:$0xff]
    %v2358 = vld [vmem:[#allocation3 + $0xde8] sm:$0xff]
    %v2359 = vld [vmem:[#allocation3 + $0xdf0] sm:$0xff]
    %v2360 = vld [vmem:[#allocation3 + $0xdf8] sm:$0xff]
    %v2361 = vld [vmem:[#allocation3 + $0xe00] sm:$0xff]
    %v2362 = vld [vmem:[#allocation3 + $0xe08] sm:$0xff]
    %v2363 = vld [vmem:[#allocation3 + $0xe10] sm:$0xff]
    %v2364 = vld [vmem:[#allocation3 + $0xe18] sm:$0xff]
    %v2365 = vld [vmem:[#allocation3 + $0xe20] sm:$0xff]
    %v2366 = vld [vmem:[#allocation3 + $0xe28] sm:$0xff]
    %v2367 = vld [vmem:[#allocation3 + $0xe30] sm:$0xff]
    %v2368 = vld [vmem:[#allocation3 + $0xe38] sm:$0xff]
    %v2369 = vld [vmem:[#allocation3 + $0xe40] sm:$0xff]
    %v2370 = vld [vmem:[#allocation3 + $0xe48] sm:$0xff]
    %v2371 = vld [vmem:[#allocation3 + $0xe50] sm:$0xff]
    %v2372 = vld [vmem:[#allocation3 + $0xe58] sm:$0xff]
    %v2373 = vld [vmem:[#allocation3 + $0xe60] sm:$0xff]
    %v2374 = vld [vmem:[#allocation3 + $0xe68] sm:$0xff]
    %v2375 = vld [vmem:[#allocation3 + $0xe70] sm:$0xff]
    %v2376 = vld [vmem:[#allocation3 + $0xe78] sm:$0xff]
    %v2377 = vld [vmem:[#allocation3 + $0xe80] sm:$0xff]
    %v2378 = vld [vmem:[#allocation3 + $0xe88] sm:$0xff]
    %v2379 = vld [vmem:[#allocation3 + $0xe90] sm:$0xff]
    %v2380 = vld [vmem:[#allocation3 + $0xe98] sm:$0xff]
    %v2381 = vld [vmem:[#allocation3 + $0xea0] sm:$0xff]
    %v2382 = vld [vmem:[#allocation3 + $0xea8] sm:$0xff]
    %v2383 = vld [vmem:[#allocation3 + $0xeb0] sm:$0xff]
    %v2384 = vld [vmem:[#allocation3 + $0xeb8] sm:$0xff]
    %v2385 = vld [vmem:[#allocation3 + $0xec0] sm:$0xff]
    %v2386 = vld [vmem:[#allocation3 + $0xec8] sm:$0xff]
    %v2387 = vld [vmem:[#allocation3 + $0xed0] sm:$0xff]
    %v2388 = vld [vmem:[#allocation3 + $0xed8] sm:$0xff]
    %v2389 = vld [vmem:[#allocation3 + $0xee0] sm:$0xff]
    %v2390 = vld [vmem:[#allocation3 + $0xee8] sm:$0xff]
    %v2391 = vld [vmem:[#allocation3 + $0xef0] sm:$0xff]
    %v2392 = vld [vmem:[#allocation3 + $0xef8] sm:$0xff]
    %v2393 = vld [vmem:[#allocation3 + $0xf00] sm:$0xff]
    %v2394 = vld [vmem:[#allocation3 + $0xf08] sm:$0xff]
    %v2395 = vld [vmem:[#allocation3 + $0xf10] sm:$0xff]
    %v2396 = vld [vmem:[#allocation3 + $0xf18] sm:$0xff]
    %v2397 = vld [vmem:[#allocation3 + $0xf20] sm:$0xff]
    %v2398 = vld [vmem:[#allocation3 + $0xf28] sm:$0xff]
    %v2399 = vld [vmem:[#allocation3 + $0xf30] sm:$0xff]
    %v2400 = vld [vmem:[#allocation3 + $0xf38] sm:$0xff]
    %v2401 = vld [vmem:[#allocation3 + $0xf40] sm:$0xff]
    %v2402 = vld [vmem:[#allocation3 + $0xf48] sm:$0xff]
    %v2403 = vld [vmem:[#allocation3 + $0xf50] sm:$0xff]
    %v2404 = vld [vmem:[#allocation3 + $0xf58] sm:$0xff]
    %v2405 = vld [vmem:[#allocation3 + $0xf60] sm:$0xff]
    %v2406 = vld [vmem:[#allocation3 + $0xf68] sm:$0xff]
    %v2407 = vld [vmem:[#allocation3 + $0xf70] sm:$0xff]
    %v2408 = vld [vmem:[#allocation3 + $0xf78] sm:$0xff]
    %v2409 = vld [vmem:[#allocation3 + $0xf80] sm:$0xff]
    %v2410 = vld [vmem:[#allocation3 + $0xf88] sm:$0xff]
    %v2411 = vld [vmem:[#allocation3 + $0xf90] sm:$0xff]
    %v2412 = vld [vmem:[#allocation3 + $0xf98] sm:$0xff]
    %v2413 = vld [vmem:[#allocation3 + $0xfa0] sm:$0xff]
    %v2414 = vld [vmem:[#allocation3 + $0xfa8] sm:$0xff]
    %v2415 = vld [vmem:[#allocation3 + $0xfb0] sm:$0xff]
    %v2416 = vld [vmem:[#allocation3 + $0xfb8] sm:$0xff]
    %v2417 = vld [vmem:[#allocation3 + $0xfc0] sm:$0xff]
    %v2418 = vld [vmem:[#allocation3 + $0xfc8] sm:$0xff]
    %v2419 = vld [vmem:[#allocation3 + $0xfd0] sm:$0xff]
    %v2420 = vld [vmem:[#allocation3 + $0xfd8] sm:$0xff]
    %v2421 = vld [vmem:[#allocation3 + $0xfe0] sm:$0xff]
    %v2422 = vld [vmem:[#allocation3 + $0xfe8] sm:$0xff]
    %v2423 = vld [vmem:[#allocation3 + $0xff0] sm:$0xff]
    %v2424 = vld [vmem:[#allocation3 + $0xff8] sm:$0xff]
    %v2425 = vld [vmem:[#allocation14] sm:$0xff]
    %v2427 = vlaneseq
    %v2428 = vshrl.u32 %v2427, 7
    %v2429 = vsub.s32 0, %v2428
    %v2430 = vrot.slane %v2425, %v2429
    %v2431 = vlaneseq
    %v2432 = vshrl.u32 %v2431, 7
    %v2433 = vsub.s32 1, %v2432
    %v2434 = vrot.slane %v2425, %v2433
    %v2435 = vlaneseq
    %v2436 = vshrl.u32 %v2435, 7
    %v2437 = vsub.s32 2, %v2436
    %v2438 = vrot.slane %v2425, %v2437
    %v2439 = vlaneseq
    %v2440 = vshrl.u32 %v2439, 7
    %v2441 = vsub.s32 3, %v2440
    %v2442 = vrot.slane %v2425, %v2441
    %v2443 = vlaneseq
    %v2444 = vshrl.u32 %v2443, 7
    %v2445 = vsub.s32 4, %v2444
    %v2446 = vrot.slane %v2425, %v2445
    %v2447 = vlaneseq
    %v2448 = vshrl.u32 %v2447, 7
    %v2449 = vsub.s32 5, %v2448
    %v2450 = vrot.slane %v2425, %v2449
    %v2451 = vlaneseq
    %v2452 = vshrl.u32 %v2451, 7
    %v2453 = vsub.s32 6, %v2452
    %v2454 = vrot.slane %v2425, %v2453
    %v2455 = vlaneseq
    %v2456 = vshrl.u32 %v2455, 7
    %v2457 = vsub.s32 7, %v2456
    %v2458 = vrot.slane %v2425, %v2457
    %2467 = vmatprep.subr.bf16.mxu0 %v1914
    %2468 = vmatpush1.bf16.msra.mxu0 %v1913
    %2469 = vmatprep.subr.bf16.mxu0 %v1922
    %2470 = vmatpush1.bf16.msra.mxu0 %v1921
    %2471 = vmatprep.subr.bf16.mxu0 %v1930
    %2472 = vmatpush1.bf16.msra.mxu0 %v1929
    %2473 = vmatprep.subr.bf16.mxu0 %v1938
    %2474 = vmatpush1.bf16.msra.mxu0 %v1937
    %2475 = vmatprep.subr.bf16.mxu0 %v1946
    %2476 = vmatpush1.bf16.msra.mxu0 %v1945
    %2477 = vmatprep.subr.bf16.mxu0 %v1954
    %2478 = vmatpush1.bf16.msra.mxu0 %v1953
    %2479 = vmatprep.subr.bf16.mxu0 %v1962
    %2480 = vmatpush1.bf16.msra.mxu0 %v1961
    %2481 = vmatprep.subr.bf16.mxu0 %v1970
    %2482 = vmatpush1.bf16.msra.mxu0 %v1969
    %2483 = vmatprep.subr.bf16.mxu0 %v1978
    %2484 = vmatpush1.bf16.msra.mxu0 %v1977
    %2485 = vmatprep.subr.bf16.mxu0 %v1986
    %2486 = vmatpush1.bf16.msra.mxu0 %v1985
    %2487 = vmatprep.subr.bf16.mxu0 %v1994
    %2488 = vmatpush1.bf16.msra.mxu0 %v1993
    %2489 = vmatprep.subr.bf16.mxu0 %v2002
    %2490 = vmatpush1.bf16.msra.mxu0 %v2001
    %2491 = vmatprep.subr.bf16.mxu0 %v2010
    %2492 = vmatpush1.bf16.msra.mxu0 %v2009
    %2493 = vmatprep.subr.bf16.mxu0 %v2018
    %2494 = vmatpush1.bf16.msra.mxu0 %v2017
    %2495 = vmatprep.subr.bf16.mxu0 %v2026
    %2496 = vmatpush1.bf16.msra.mxu0 %v2025
    %2497 = vmatprep.subr.bf16.mxu0 %v2034
    %2498 = vmatpush1.bf16.msra.mxu0 %v2033
    %2499 = vmatprep.mubr.bf16.mxu0 %v1906
    %2500 = vmatmul.mubr.bf16.gmra.mrb[0].mxu0 %v1905
    %v2501 = vpop.f32.mrb[0].mxu0
    %v2502 = vadd.f32 %v2430, %v2501
    %v2503 = vpop.f32.mrb[0].mxu0
    %v2504 = vadd.f32 %v2434, %v2503
    %v2505 = vpop.f32.mrb[0].mxu0
    %v2506 = vpop.f32.mrb[0].mxu0
    %2507 = vdwg.mxu0
    %2508 = vmatprep.subr.bf16.mxu0 %v2042
    %2509 = vmatpush1.bf16.msra.mxu0 %v2041
    %2510 = vmatprep.subr.bf16.mxu0 %v2050
    %2511 = vmatpush1.bf16.msra.mxu0 %v2049
    %2512 = vmatprep.subr.bf16.mxu0 %v2058
    %2513 = vmatpush1.bf16.msra.mxu0 %v2057
    %2514 = vmatprep.subr.bf16.mxu0 %v2066
    %2515 = vmatpush1.bf16.msra.mxu0 %v2065
    %2516 = vmatprep.subr.bf16.mxu0 %v2074
    %2517 = vmatpush1.bf16.msra.mxu0 %v2073
    %2518 = vmatprep.subr.bf16.mxu0 %v2082
    %2519 = vmatpush1.bf16.msra.mxu0 %v2081
    %2520 = vmatprep.subr.bf16.mxu0 %v2090
    %2521 = vmatpush1.bf16.msra.mxu0 %v2089
    %2522 = vmatprep.subr.bf16.mxu0 %v2098
    %2523 = vmatpush1.bf16.msra.mxu0 %v2097
    %2524 = vmatprep.subr.bf16.mxu0 %v2106
    %2525 = vmatpush1.bf16.msra.mxu0 %v2105
    %2526 = vmatprep.subr.bf16.mxu0 %v2114
    %2527 = vmatpush1.bf16.msra.mxu0 %v2113
    %2528 = vmatprep.subr.bf16.mxu0 %v2122
    %2529 = vmatpush1.bf16.msra.mxu0 %v2121
    %2530 = vmatprep.subr.bf16.mxu0 %v2130
    %2531 = vmatpush1.bf16.msra.mxu0 %v2129
    %2532 = vmatprep.subr.bf16.mxu0 %v2138
    %2533 = vmatpush1.bf16.msra.mxu0 %v2137
    %2534 = vmatprep.subr.bf16.mxu0 %v2146
    %2535 = vmatpush1.bf16.msra.mxu0 %v2145
    %2536 = vmatprep.subr.bf16.mxu0 %v2154
    %2537 = vmatpush1.bf16.msra.mxu0 %v2153
    %2538 = vmatprep.subr.bf16.mxu0 %v2162
    %2539 = vmatpush1.bf16.msra.mxu0 %v2161
    %2540 = vmatprep.mubr.bf16.mxu0 %v1908
    %2541 = vmatmul.mubr.bf16.gmra.mrb[0].mxu0 %v1907
    %v2542 = vpop.f32.mrb[0].mxu0
    %v2543 = vadd.f32 %v2502, %v2542
    %v2544 = vpop.f32.mrb[0].mxu0
    %v2545 = vadd.f32 %v2504, %v2544
    %v2546 = vpop.f32.mrb[0].mxu0
    %v2547 = vpop.f32.mrb[0].mxu0
    %2548 = vdwg.mxu0
    %2549 = vmatprep.subr.bf16.mxu0 %v2170
    %2550 = vmatpush1.bf16.msra.mxu0 %v2169
    %2551 = vmatprep.subr.bf16.mxu0 %v2178
    %2552 = vmatpush1.bf16.msra.mxu0 %v2177
    %2553 = vmatprep.subr.bf16.mxu0 %v2186
    %2554 = vmatpush1.bf16.msra.mxu0 %v2185
    %2555 = vmatprep.subr.bf16.mxu0 %v2194
    %2556 = vmatpush1.bf16.msra.mxu0 %v2193
    %2557 = vmatprep.subr.bf16.mxu0 %v2202
    %2558 = vmatpush1.bf16.msra.mxu0 %v2201
    %2559 = vmatprep.subr.bf16.mxu0 %v2210
    %2560 = vmatpush1.bf16.msra.mxu0 %v2209
    %2561 = vmatprep.subr.bf16.mxu0 %v2218
    %2562 = vmatpush1.bf16.msra.mxu0 %v2217
    %2563 = vmatprep.subr.bf16.mxu0 %v2226
    %2564 = vmatpush1.bf16.msra.mxu0 %v2225
    %2565 = vmatprep.subr.bf16.mxu0 %v2234
    %2566 = vmatpush1.bf16.msra.mxu0 %v2233
    %2567 = vmatprep.subr.bf16.mxu0 %v2242
    %2568 = vmatpush1.bf16.msra.mxu0 %v2241
    %2569 = vmatprep.subr.bf16.mxu0 %v2250
    %2570 = vmatpush1.bf16.msra.mxu0 %v2249
    %2571 = vmatprep.subr.bf16.mxu0 %v2258
    %2572 = vmatpush1.bf16.msra.mxu0 %v2257
    %2573 = vmatprep.subr.bf16.mxu0 %v2266
    %2574 = vmatpush1.bf16.msra.mxu0 %v2265
    %2575 = vmatprep.subr.bf16.mxu0 %v2274
    %2576 = vmatpush1.bf16.msra.mxu0 %v2273
    %2577 = vmatprep.subr.bf16.mxu0 %v2282
    %2578 = vmatpush1.bf16.msra.mxu0 %v2281
    %2579 = vmatprep.subr.bf16.mxu0 %v2290
    %2580 = vmatpush1.bf16.msra.mxu0 %v2289
    %2581 = vmatprep.mubr.bf16.mxu0 %v1910
    %2582 = vmatmul.mubr.bf16.gmra.mrb[0].mxu0 %v1909
    %v2583 = vpop.f32.mrb[0].mxu0
    %v2584 = vadd.f32 %v2543, %v2583
    %v2585 = vpop.f32.mrb[0].mxu0
    %v2586 = vadd.f32 %v2545, %v2585
    %v2587 = vpop.f32.mrb[0].mxu0
    %v2588 = vpop.f32.mrb[0].mxu0
    %2589 = vdwg.mxu0
    %2590 = vmatprep.subr.bf16.mxu0 %v2298
    %2591 = vmatpush1.bf16.msra.mxu0 %v2297
    %2592 = vmatprep.subr.bf16.mxu0 %v2306
    %2593 = vmatpush1.bf16.msra.mxu0 %v2305
    %2594 = vmatprep.subr.bf16.mxu0 %v2314
    %2595 = vmatpush1.bf16.msra.mxu0 %v2313
    %2596 = vmatprep.subr.bf16.mxu0 %v2322
    %2597 = vmatpush1.bf16.msra.mxu0 %v2321
    %2598 = vmatprep.subr.bf16.mxu0 %v2330
    %2599 = vmatpush1.bf16.msra.mxu0 %v2329
    %2600 = vmatprep.subr.bf16.mxu0 %v2338
    %2601 = vmatpush1.bf16.msra.mxu0 %v2337
    %2602 = vmatprep.subr.bf16.mxu0 %v2346
    %2603 = vmatpush1.bf16.msra.mxu0 %v2345
    %2604 = vmatprep.subr.bf16.mxu0 %v2354
    %2605 = vmatpush1.bf16.msra.mxu0 %v2353
    %2606 = vmatprep.subr.bf16.mxu0 %v2362
    %2607 = vmatpush1.bf16.msra.mxu0 %v2361
    %2608 = vmatprep.subr.bf16.mxu0 %v2370
    %2609 = vmatpush1.bf16.msra.mxu0 %v2369
    %2610 = vmatprep.subr.bf16.mxu0 %v2378
    %2611 = vmatpush1.bf16.msra.mxu0 %v2377
    %2612 = vmatprep.subr.bf16.mxu0 %v2386
    %2613 = vmatpush1.bf16.msra.mxu0 %v2385
    %2614 = vmatprep.subr.bf16.mxu0 %v2394
    %2615 = vmatpush1.bf16.msra.mxu0 %v2393
    %2616 = vmatprep.subr.bf16.mxu0 %v2402
    %2617 = vmatpush1.bf16.msra.mxu0 %v2401
    %2618 = vmatprep.subr.bf16.mxu0 %v2410
    %2619 = vmatpush1.bf16.msra.mxu0 %v2409
    %2620 = vmatprep.subr.bf16.mxu0 %v2418
    %2621 = vmatpush1.bf16.msra.mxu0 %v2417
    %2622 = vmatprep.mubr.bf16.mxu0 %v1912
    %2623 = vmatmul.mubr.bf16.gmra.mrb[0].mxu0 %v1911
    %v2624 = vpop.f32.mrb[0].mxu0
    %v2625 = vadd.f32 %v2584, %v2624
    %v2626 = vpop.f32.mrb[0].mxu0
    %v2627 = vadd.f32 %v2586, %v2626
    %v2628 = vpop.f32.mrb[0].mxu0
    %v2629 = vpop.f32.mrb[0].mxu0
    %2630 = vdwg.mxu0
    %2631 = vmatprep.subr.bf16.mxu0 %v1916
    %2632 = vmatpush1.bf16.msra.mxu0 %v1915
    %2633 = vmatprep.subr.bf16.mxu0 %v1924
    %2634 = vmatpush1.bf16.msra.mxu0 %v1923
    %2635 = vmatprep.subr.bf16.mxu0 %v1932
    %2636 = vmatpush1.bf16.msra.mxu0 %v1931
    %2637 = vmatprep.subr.bf16.mxu0 %v1940
    %2638 = vmatpush1.bf16.msra.mxu0 %v1939
    %2639 = vmatprep.subr.bf16.mxu0 %v1948
    %2640 = vmatpush1.bf16.msra.mxu0 %v1947
    %2641 = vmatprep.subr.bf16.mxu0 %v1956
    %2642 = vmatpush1.bf16.msra.mxu0 %v1955
    %2643 = vmatprep.subr.bf16.mxu0 %v1964
    %2644 = vmatpush1.bf16.msra.mxu0 %v1963
    %2645 = vmatprep.subr.bf16.mxu0 %v1972
    %2646 = vmatpush1.bf16.msra.mxu0 %v1971
    %2647 = vmatprep.subr.bf16.mxu0 %v1980
    %2648 = vmatpush1.bf16.msra.mxu0 %v1979
    %2649 = vmatprep.subr.bf16.mxu0 %v1988
    %2650 = vmatpush1.bf16.msra.mxu0 %v1987
    %2651 = vmatprep.subr.bf16.mxu0 %v1996
    %2652 = vmatpush1.bf16.msra.mxu0 %v1995
    %2653 = vmatprep.subr.bf16.mxu0 %v2004
    %2654 = vmatpush1.bf16.msra.mxu0 %v2003
    %2655 = vmatprep.subr.bf16.mxu0 %v2012
    %2656 = vmatpush1.bf16.msra.mxu0 %v2011
    %2657 = vmatprep.subr.bf16.mxu0 %v2020
    %2658 = vmatpush1.bf16.msra.mxu0 %v2019
    %2659 = vmatprep.subr.bf16.mxu0 %v2028
    %2660 = vmatpush1.bf16.msra.mxu0 %v2027
    %2661 = vmatprep.subr.bf16.mxu0 %v2036
    %2662 = vmatpush1.bf16.msra.mxu0 %v2035
    %2663 = vmatprep.mubr.bf16.mxu0 %v1906
    %2664 = vmatmul.mubr.bf16.gmra.mrb[0].mxu0 %v1905
    %v2665 = vpop.f32.mrb[0].mxu0
    %v2666 = vadd.f32 %v2438, %v2665
    %v2667 = vpop.f32.mrb[0].mxu0
    %v2668 = vadd.f32 %v2442, %v2667
    %v2669 = vpop.f32.mrb[0].mxu0
    %v2670 = vpop.f32.mrb[0].mxu0
    %2671 = vdwg.mxu0
    %2672 = vmatprep.subr.bf16.mxu0 %v2044
    %2673 = vmatpush1.bf16.msra.mxu0 %v2043
    %2674 = vmatprep.subr.bf16.mxu0 %v2052
    %2675 = vmatpush1.bf16.msra.mxu0 %v2051
    %2676 = vmatprep.subr.bf16.mxu0 %v2060
    %2677 = vmatpush1.bf16.msra.mxu0 %v2059
    %2678 = vmatprep.subr.bf16.mxu0 %v2068
    %2679 = vmatpush1.bf16.msra.mxu0 %v2067
    %2680 = vmatprep.subr.bf16.mxu0 %v2076
    %2681 = vmatpush1.bf16.msra.mxu0 %v2075
    %2682 = vmatprep.subr.bf16.mxu0 %v2084
    %2683 = vmatpush1.bf16.msra.mxu0 %v2083
    %2684 = vmatprep.subr.bf16.mxu0 %v2092
    %2685 = vmatpush1.bf16.msra.mxu0 %v2091
    %2686 = vmatprep.subr.bf16.mxu0 %v2100
    %2687 = vmatpush1.bf16.msra.mxu0 %v2099
    %2688 = vmatprep.subr.bf16.mxu0 %v2108
    %2689 = vmatpush1.bf16.msra.mxu0 %v2107
    %2690 = vmatprep.subr.bf16.mxu0 %v2116
    %2691 = vmatpush1.bf16.msra.mxu0 %v2115
    %2692 = vmatprep.subr.bf16.mxu0 %v2124
    %2693 = vmatpush1.bf16.msra.mxu0 %v2123
    %2694 = vmatprep.subr.bf16.mxu0 %v2132
    %2695 = vmatpush1.bf16.msra.mxu0 %v2131
    %2696 = vmatprep.subr.bf16.mxu0 %v2140
    %2697 = vmatpush1.bf16.msra.mxu0 %v2139
    %2698 = vmatprep.subr.bf16.mxu0 %v2148
    %2699 = vmatpush1.bf16.msra.mxu0 %v2147
    %2700 = vmatprep.subr.bf16.mxu0 %v2156
    %2701 = vmatpush1.bf16.msra.mxu0 %v2155
    %2702 = vmatprep.subr.bf16.mxu0 %v2164
    %2703 = vmatpush1.bf16.msra.mxu0 %v2163
    %2704 = vmatprep.mubr.bf16.mxu0 %v1908
    %2705 = vmatmul.mubr.bf16.gmra.mrb[0].mxu0 %v1907
    %v2706 = vpop.f32.mrb[0].mxu0
    %v2707 = vadd.f32 %v2666, %v2706
    %v2708 = vpop.f32.mrb[0].mxu0
    %v2709 = vadd.f32 %v2668, %v2708
    %v2710 = vpop.f32.mrb[0].mxu0
    %v2711 = vpop.f32.mrb[0].mxu0
    %2712 = vdwg.mxu0
    %2713 = vmatprep.subr.bf16.mxu0 %v2172
    %2714 = vmatpush1.bf16.msra.mxu0 %v2171
    %2715 = vmatprep.subr.bf16.mxu0 %v2180
    %2716 = vmatpush1.bf16.msra.mxu0 %v2179
    %2717 = vmatprep.subr.bf16.mxu0 %v2188
    %2718 = vmatpush1.bf16.msra.mxu0 %v2187
    %2719 = vmatprep.subr.bf16.mxu0 %v2196
    %2720 = vmatpush1.bf16.msra.mxu0 %v2195
    %2721 = vmatprep.subr.bf16.mxu0 %v2204
    %2722 = vmatpush1.bf16.msra.mxu0 %v2203
    %2723 = vmatprep.subr.bf16.mxu0 %v2212
    %2724 = vmatpush1.bf16.msra.mxu0 %v2211
    %2725 = vmatprep.subr.bf16.mxu0 %v2220
    %2726 = vmatpush1.bf16.msra.mxu0 %v2219
    %2727 = vmatprep.subr.bf16.mxu0 %v2228
    %2728 = vmatpush1.bf16.msra.mxu0 %v2227
    %2729 = vmatprep.subr.bf16.mxu0 %v2236
    %2730 = vmatpush1.bf16.msra.mxu0 %v2235
    %2731 = vmatprep.subr.bf16.mxu0 %v2244
    %2732 = vmatpush1.bf16.msra.mxu0 %v2243
    %2733 = vmatprep.subr.bf16.mxu0 %v2252
    %2734 = vmatpush1.bf16.msra.mxu0 %v2251
    %2735 = vmatprep.subr.bf16.mxu0 %v2260
    %2736 = vmatpush1.bf16.msra.mxu0 %v2259
    %2737 = vmatprep.subr.bf16.mxu0 %v2268
    %2738 = vmatpush1.bf16.msra.mxu0 %v2267
    %2739 = vmatprep.subr.bf16.mxu0 %v2276
    %2740 = vmatpush1.bf16.msra.mxu0 %v2275
    %2741 = vmatprep.subr.bf16.mxu0 %v2284
    %2742 = vmatpush1.bf16.msra.mxu0 %v2283
    %2743 = vmatprep.subr.bf16.mxu0 %v2292
    %2744 = vmatpush1.bf16.msra.mxu0 %v2291
    %2745 = vmatprep.mubr.bf16.mxu0 %v1910
    %2746 = vmatmul.mubr.bf16.gmra.mrb[0].mxu0 %v1909
    %v2747 = vpop.f32.mrb[0].mxu0
    %v2748 = vadd.f32 %v2707, %v2747
    %v2749 = vpop.f32.mrb[0].mxu0
    %v2750 = vadd.f32 %v2709, %v2749
    %v2751 = vpop.f32.mrb[0].mxu0
    %v2752 = vpop.f32.mrb[0].mxu0
    %2753 = vdwg.mxu0
    %2754 = vmatprep.subr.bf16.mxu0 %v2300
    %2755 = vmatpush1.bf16.msra.mxu0 %v2299
    %2756 = vmatprep.subr.bf16.mxu0 %v2308
    %2757 = vmatpush1.bf16.msra.mxu0 %v2307
    %2758 = vmatprep.subr.bf16.mxu0 %v2316
    %2759 = vmatpush1.bf16.msra.mxu0 %v2315
    %2760 = vmatprep.subr.bf16.mxu0 %v2324
    %2761 = vmatpush1.bf16.msra.mxu0 %v2323
    %2762 = vmatprep.subr.bf16.mxu0 %v2332
    %2763 = vmatpush1.bf16.msra.mxu0 %v2331
    %2764 = vmatprep.subr.bf16.mxu0 %v2340
    %2765 = vmatpush1.bf16.msra.mxu0 %v2339
    %2766 = vmatprep.subr.bf16.mxu0 %v2348
    %2767 = vmatpush1.bf16.msra.mxu0 %v2347
    %2768 = vmatprep.subr.bf16.mxu0 %v2356
    %2769 = vmatpush1.bf16.msra.mxu0 %v2355
    %2770 = vmatprep.subr.bf16.mxu0 %v2364
    %2771 = vmatpush1.bf16.msra.mxu0 %v2363
    %2772 = vmatprep.subr.bf16.mxu0 %v2372
    %2773 = vmatpush1.bf16.msra.mxu0 %v2371
    %2774 = vmatprep.subr.bf16.mxu0 %v2380
    %2775 = vmatpush1.bf16.msra.mxu0 %v2379
    %2776 = vmatprep.subr.bf16.mxu0 %v2388
    %2777 = vmatpush1.bf16.msra.mxu0 %v2387
    %2778 = vmatprep.subr.bf16.mxu0 %v2396
    %2779 = vmatpush1.bf16.msra.mxu0 %v2395
    %2780 = vmatprep.subr.bf16.mxu0 %v2404
    %2781 = vmatpush1.bf16.msra.mxu0 %v2403
    %2782 = vmatprep.subr.bf16.mxu0 %v2412
    %2783 = vmatpush1.bf16.msra.mxu0 %v2411
    %2784 = vmatprep.subr.bf16.mxu0 %v2420
    %2785 = vmatpush1.bf16.msra.mxu0 %v2419
    %2786 = vmatprep.mubr.bf16.mxu0 %v1912
    %2787 = vmatmul.mubr.bf16.gmra.mrb[0].mxu0 %v1911
    %v2788 = vpop.f32.mrb[0].mxu0
    %v2789 = vadd.f32 %v2748, %v2788
    %v2790 = vpop.f32.mrb[0].mxu0
    %v2791 = vadd.f32 %v2750, %v2790
    %v2792 = vpop.f32.mrb[0].mxu0
    %v2793 = vpop.f32.mrb[0].mxu0
    %2794 = vdwg.mxu0
    %2795 = vmatprep.subr.bf16.mxu0 %v1918
    %2796 = vmatpush1.bf16.msra.mxu0 %v1917
    %2797 = vmatprep.subr.bf16.mxu0 %v1926
    %2798 = vmatpush1.bf16.msra.mxu0 %v1925
    %2799 = vmatprep.subr.bf16.mxu0 %v1934
    %2800 = vmatpush1.bf16.msra.mxu0 %v1933
    %2801 = vmatprep.subr.bf16.mxu0 %v1942
    %2802 = vmatpush1.bf16.msra.mxu0 %v1941
    %2803 = vmatprep.subr.bf16.mxu0 %v1950
    %2804 = vmatpush1.bf16.msra.mxu0 %v1949
    %2805 = vmatprep.subr.bf16.mxu0 %v1958
    %2806 = vmatpush1.bf16.msra.mxu0 %v1957
    %2807 = vmatprep.subr.bf16.mxu0 %v1966
    %2808 = vmatpush1.bf16.msra.mxu0 %v1965
    %2809 = vmatprep.subr.bf16.mxu0 %v1974
    %2810 = vmatpush1.bf16.msra.mxu0 %v1973
    %2811 = vmatprep.subr.bf16.mxu0 %v1982
    %2812 = vmatpush1.bf16.msra.mxu0 %v1981
    %2813 = vmatprep.subr.bf16.mxu0 %v1990
    %2814 = vmatpush1.bf16.msra.mxu0 %v1989
    %2815 = vmatprep.subr.bf16.mxu0 %v1998
    %2816 = vmatpush1.bf16.msra.mxu0 %v1997
    %2817 = vmatprep.subr.bf16.mxu0 %v2006
    %2818 = vmatpush1.bf16.msra.mxu0 %v2005
    %2819 = vmatprep.subr.bf16.mxu0 %v2014
    %2820 = vmatpush1.bf16.msra.mxu0 %v2013
    %2821 = vmatprep.subr.bf16.mxu0 %v2022
    %2822 = vmatpush1.bf16.msra.mxu0 %v2021
    %2823 = vmatprep.subr.bf16.mxu0 %v2030
    %2824 = vmatpush1.bf16.msra.mxu0 %v2029
    %2825 = vmatprep.subr.bf16.mxu0 %v2038
    %2826 = vmatpush1.bf16.msra.mxu0 %v2037
    %2827 = vmatprep.mubr.bf16.mxu0 %v1906
    %2828 = vmatmul.mubr.bf16.gmra.mrb[0].mxu0 %v1905
    %v2829 = vpop.f32.mrb[0].mxu0
    %v2830 = vadd.f32 %v2446, %v2829
    %v2831 = vpop.f32.mrb[0].mxu0
    %v2832 = vadd.f32 %v2450, %v2831
    %v2833 = vpop.f32.mrb[0].mxu0
    %v2834 = vpop.f32.mrb[0].mxu0
    %2835 = vdwg.mxu0
    %2836 = vmatprep.subr.bf16.mxu0 %v2046
    %2837 = vmatpush1.bf16.msra.mxu0 %v2045
    %2838 = vmatprep.subr.bf16.mxu0 %v2054
    %2839 = vmatpush1.bf16.msra.mxu0 %v2053
    %2840 = vmatprep.subr.bf16.mxu0 %v2062
    %2841 = vmatpush1.bf16.msra.mxu0 %v2061
    %2842 = vmatprep.subr.bf16.mxu0 %v2070
    %2843 = vmatpush1.bf16.msra.mxu0 %v2069
    %2844 = vmatprep.subr.bf16.mxu0 %v2078
    %2845 = vmatpush1.bf16.msra.mxu0 %v2077
    %2846 = vmatprep.subr.bf16.mxu0 %v2086
    %2847 = vmatpush1.bf16.msra.mxu0 %v2085
    %2848 = vmatprep.subr.bf16.mxu0 %v2094
    %2849 = vmatpush1.bf16.msra.mxu0 %v2093
    %2850 = vmatprep.subr.bf16.mxu0 %v2102
    %2851 = vmatpush1.bf16.msra.mxu0 %v2101
    %2852 = vmatprep.subr.bf16.mxu0 %v2110
    %2853 = vmatpush1.bf16.msra.mxu0 %v2109
    %2854 = vmatprep.subr.bf16.mxu0 %v2118
    %2855 = vmatpush1.bf16.msra.mxu0 %v2117
    %2856 = vmatprep.subr.bf16.mxu0 %v2126
    %2857 = vmatpush1.bf16.msra.mxu0 %v2125
    %2858 = vmatprep.subr.bf16.mxu0 %v2134
    %2859 = vmatpush1.bf16.msra.mxu0 %v2133
    %2860 = vmatprep.subr.bf16.mxu0 %v2142
    %2861 = vmatpush1.bf16.msra.mxu0 %v2141
    %2862 = vmatprep.subr.bf16.mxu0 %v2150
    %2863 = vmatpush1.bf16.msra.mxu0 %v2149
    %2864 = vmatprep.subr.bf16.mxu0 %v2158
    %2865 = vmatpush1.bf16.msra.mxu0 %v2157
    %2866 = vmatprep.subr.bf16.mxu0 %v2166
    %2867 = vmatpush1.bf16.msra.mxu0 %v2165
    %2868 = vmatprep.mubr.bf16.mxu0 %v1908
    %2869 = vmatmul.mubr.bf16.gmra.mrb[0].mxu0 %v1907
    %v2870 = vpop.f32.mrb[0].mxu0
    %v2871 = vadd.f32 %v2830, %v2870
    %v2872 = vpop.f32.mrb[0].mxu0
    %v2873 = vadd.f32 %v2832, %v2872
    %v2874 = vpop.f32.mrb[0].mxu0
    %v2875 = vpop.f32.mrb[0].mxu0
    %2876 = vdwg.mxu0
    %2877 = vmatprep.subr.bf16.mxu0 %v2174
    %2878 = vmatpush1.bf16.msra.mxu0 %v2173
    %2879 = vmatprep.subr.bf16.mxu0 %v2182
    %2880 = vmatpush1.bf16.msra.mxu0 %v2181
    %2881 = vmatprep.subr.bf16.mxu0 %v2190
    %2882 = vmatpush1.bf16.msra.mxu0 %v2189
    %2883 = vmatprep.subr.bf16.mxu0 %v2198
    %2884 = vmatpush1.bf16.msra.mxu0 %v2197
    %2885 = vmatprep.subr.bf16.mxu0 %v2206
    %2886 = vmatpush1.bf16.msra.mxu0 %v2205
    %2887 = vmatprep.subr.bf16.mxu0 %v2214
    %2888 = vmatpush1.bf16.msra.mxu0 %v2213
    %2889 = vmatprep.subr.bf16.mxu0 %v2222
    %2890 = vmatpush1.bf16.msra.mxu0 %v2221
    %2891 = vmatprep.subr.bf16.mxu0 %v2230
    %2892 = vmatpush1.bf16.msra.mxu0 %v2229
    %2893 = vmatprep.subr.bf16.mxu0 %v2238
    %2894 = vmatpush1.bf16.msra.mxu0 %v2237
    %2895 = vmatprep.subr.bf16.mxu0 %v2246
    %2896 = vmatpush1.bf16.msra.mxu0 %v2245
    %2897 = vmatprep.subr.bf16.mxu0 %v2254
    %2898 = vmatpush1.bf16.msra.mxu0 %v2253
    %2899 = vmatprep.subr.bf16.mxu0 %v2262
    %2900 = vmatpush1.bf16.msra.mxu0 %v2261
    %2901 = vmatprep.subr.bf16.mxu0 %v2270
    %2902 = vmatpush1.bf16.msra.mxu0 %v2269
    %2903 = vmatprep.subr.bf16.mxu0 %v2278
    %2904 = vmatpush1.bf16.msra.mxu0 %v2277
    %2905 = vmatprep.subr.bf16.mxu0 %v2286
    %2906 = vmatpush1.bf16.msra.mxu0 %v2285
    %2907 = vmatprep.subr.bf16.mxu0 %v2294
    %2908 = vmatpush1.bf16.msra.mxu0 %v2293
    %2909 = vmatprep.mubr.bf16.mxu0 %v1910
    %2910 = vmatmul.mubr.bf16.gmra.mrb[0].mxu0 %v1909
    %v2911 = vpop.f32.mrb[0].mxu0
    %v2912 = vadd.f32 %v2871, %v2911
    %v2913 = vpop.f32.mrb[0].mxu0
    %v2914 = vadd.f32 %v2873, %v2913
    %v2915 = vpop.f32.mrb[0].mxu0
    %v2916 = vpop.f32.mrb[0].mxu0
    %2917 = vdwg.mxu0
    %2918 = vmatprep.subr.bf16.mxu0 %v2302
    %2919 = vmatpush1.bf16.msra.mxu0 %v2301
    %2920 = vmatprep.subr.bf16.mxu0 %v2310
    %2921 = vmatpush1.bf16.msra.mxu0 %v2309
    %2922 = vmatprep.subr.bf16.mxu0 %v2318
    %2923 = vmatpush1.bf16.msra.mxu0 %v2317
    %2924 = vmatprep.subr.bf16.mxu0 %v2326
    %2925 = vmatpush1.bf16.msra.mxu0 %v2325
    %2926 = vmatprep.subr.bf16.mxu0 %v2334
    %2927 = vmatpush1.bf16.msra.mxu0 %v2333
    %2928 = vmatprep.subr.bf16.mxu0 %v2342
    %2929 = vmatpush1.bf16.msra.mxu0 %v2341
    %2930 = vmatprep.subr.bf16.mxu0 %v2350
    %2931 = vmatpush1.bf16.msra.mxu0 %v2349
    %2932 = vmatprep.subr.bf16.mxu0 %v2358
    %2933 = vmatpush1.bf16.msra.mxu0 %v2357
    %2934 = vmatprep.subr.bf16.mxu0 %v2366
    %2935 = vmatpush1.bf16.msra.mxu0 %v2365
    %2936 = vmatprep.subr.bf16.mxu0 %v2374
    %2937 = vmatpush1.bf16.msra.mxu0 %v2373
    %2938 = vmatprep.subr.bf16.mxu0 %v2382
    %2939 = vmatpush1.bf16.msra.mxu0 %v2381
    %2940 = vmatprep.subr.bf16.mxu0 %v2390
    %2941 = vmatpush1.bf16.msra.mxu0 %v2389
    %2942 = vmatprep.subr.bf16.mxu0 %v2398
    %2943 = vmatpush1.bf16.msra.mxu0 %v2397
    %2944 = vmatprep.subr.bf16.mxu0 %v2406
    %2945 = vmatpush1.bf16.msra.mxu0 %v2405
    %2946 = vmatprep.subr.bf16.mxu0 %v2414
    %2947 = vmatpush1.bf16.msra.mxu0 %v2413
    %2948 = vmatprep.subr.bf16.mxu0 %v2422
    %2949 = vmatpush1.bf16.msra.mxu0 %v2421
    %2950 = vmatprep.mubr.bf16.mxu0 %v1912
    %2951 = vmatmul.mubr.bf16.gmra.mrb[0].mxu0 %v1911
    %v2952 = vpop.f32.mrb[0].mxu0
    %v2953 = vadd.f32 %v2912, %v2952
    %v2954 = vpop.f32.mrb[0].mxu0
    %v2955 = vadd.f32 %v2914, %v2954
    %v2956 = vpop.f32.mrb[0].mxu0
    %v2957 = vpop.f32.mrb[0].mxu0
    %2958 = vdwg.mxu0
    %2959 = vmatprep.subr.bf16.mxu0 %v1920
    %2960 = vmatpush1.bf16.msra.mxu0 %v1919
    %2961 = vmatprep.subr.bf16.mxu0 %v1928
    %2962 = vmatpush1.bf16.msra.mxu0 %v1927
    %2963 = vmatprep.subr.bf16.mxu0 %v1936
    %2964 = vmatpush1.bf16.msra.mxu0 %v1935
    %2965 = vmatprep.subr.bf16.mxu0 %v1944
    %2966 = vmatpush1.bf16.msra.mxu0 %v1943
    %2967 = vmatprep.subr.bf16.mxu0 %v1952
    %2968 = vmatpush1.bf16.msra.mxu0 %v1951
    %2969 = vmatprep.subr.bf16.mxu0 %v1960
    %2970 = vmatpush1.bf16.msra.mxu0 %v1959
    %2971 = vmatprep.subr.bf16.mxu0 %v1968
    %2972 = vmatpush1.bf16.msra.mxu0 %v1967
    %2973 = vmatprep.subr.bf16.mxu0 %v1976
    %2974 = vmatpush1.bf16.msra.mxu0 %v1975
    %2975 = vmatprep.subr.bf16.mxu0 %v1984
    %2976 = vmatpush1.bf16.msra.mxu0 %v1983
    %2977 = vmatprep.subr.bf16.mxu0 %v1992
    %2978 = vmatpush1.bf16.msra.mxu0 %v1991
    %2979 = vmatprep.subr.bf16.mxu0 %v2000
    %2980 = vmatpush1.bf16.msra.mxu0 %v1999
    %2981 = vmatprep.subr.bf16.mxu0 %v2008
    %2982 = vmatpush1.bf16.msra.mxu0 %v2007
    %2983 = vmatprep.subr.bf16.mxu0 %v2016
    %2984 = vmatpush1.bf16.msra.mxu0 %v2015
    %2985 = vmatprep.subr.bf16.mxu0 %v2024
    %2986 = vmatpush1.bf16.msra.mxu0 %v2023
    %2987 = vmatprep.subr.bf16.mxu0 %v2032
    %2988 = vmatpush1.bf16.msra.mxu0 %v2031
    %2989 = vmatprep.subr.bf16.mxu0 %v2040
    %2990 = vmatpush1.bf16.msra.mxu0 %v2039
    %2991 = vmatprep.mubr.bf16.mxu0 %v1906
    %2992 = vmatmul.mubr.bf16.gmra.mrb[0].mxu0 %v1905
    %v2993 = vpop.f32.mrb[0].mxu0
    %v2994 = vadd.f32 %v2454, %v2993
    %v2995 = vpop.f32.mrb[0].mxu0
    %v2996 = vadd.f32 %v2458, %v2995
    %v2997 = vpop.f32.mrb[0].mxu0
    %v2998 = vpop.f32.mrb[0].mxu0
    %2999 = vdwg.mxu0
    %3000 = vmatprep.subr.bf16.mxu0 %v2048
    %3001 = vmatpush1.bf16.msra.mxu0 %v2047
    %3002 = vmatprep.subr.bf16.mxu0 %v2056
    %3003 = vmatpush1.bf16.msra.mxu0 %v2055
    %3004 = vmatprep.subr.bf16.mxu0 %v2064
    %3005 = vmatpush1.bf16.msra.mxu0 %v2063
    %3006 = vmatprep.subr.bf16.mxu0 %v2072
    %3007 = vmatpush1.bf16.msra.mxu0 %v2071
    %3008 = vmatprep.subr.bf16.mxu0 %v2080
    %3009 = vmatpush1.bf16.msra.mxu0 %v2079
    %3010 = vmatprep.subr.bf16.mxu0 %v2088
    %3011 = vmatpush1.bf16.msra.mxu0 %v2087
    %3012 = vmatprep.subr.bf16.mxu0 %v2096
    %3013 = vmatpush1.bf16.msra.mxu0 %v2095
    %3014 = vmatprep.subr.bf16.mxu0 %v2104
    %3015 = vmatpush1.bf16.msra.mxu0 %v2103
    %3016 = vmatprep.subr.bf16.mxu0 %v2112
    %3017 = vmatpush1.bf16.msra.mxu0 %v2111
    %3018 = vmatprep.subr.bf16.mxu0 %v2120
    %3019 = vmatpush1.bf16.msra.mxu0 %v2119
    %3020 = vmatprep.subr.bf16.mxu0 %v2128
    %3021 = vmatpush1.bf16.msra.mxu0 %v2127
    %3022 = vmatprep.subr.bf16.mxu0 %v2136
    %3023 = vmatpush1.bf16.msra.mxu0 %v2135
    %3024 = vmatprep.subr.bf16.mxu0 %v2144
    %3025 = vmatpush1.bf16.msra.mxu0 %v2143
    %3026 = vmatprep.subr.bf16.mxu0 %v2152
    %3027 = vmatpush1.bf16.msra.mxu0 %v2151
    %3028 = vmatprep.subr.bf16.mxu0 %v2160
    %3029 = vmatpush1.bf16.msra.mxu0 %v2159
    %3030 = vmatprep.subr.bf16.mxu0 %v2168
    %3031 = vmatpush1.bf16.msra.mxu0 %v2167
    %3032 = vmatprep.mubr.bf16.mxu0 %v1908
    %3033 = vmatmul.mubr.bf16.gmra.mrb[0].mxu0 %v1907
    %v3034 = vpop.f32.mrb[0].mxu0
    %v3035 = vadd.f32 %v2994, %v3034
    %v3036 = vpop.f32.mrb[0].mxu0
    %v3037 = vadd.f32 %v2996, %v3036
    %v3038 = vpop.f32.mrb[0].mxu0
    %v3039 = vpop.f32.mrb[0].mxu0
    %3040 = vdwg.mxu0
    %3041 = vmatprep.subr.bf16.mxu0 %v2176
    %3042 = vmatpush1.bf16.msra.mxu0 %v2175
    %3043 = vmatprep.subr.bf16.mxu0 %v2184
    %3044 = vmatpush1.bf16.msra.mxu0 %v2183
    %3045 = vmatprep.subr.bf16.mxu0 %v2192
    %3046 = vmatpush1.bf16.msra.mxu0 %v2191
    %3047 = vmatprep.subr.bf16.mxu0 %v2200
    %3048 = vmatpush1.bf16.msra.mxu0 %v2199
    %3049 = vmatprep.subr.bf16.mxu0 %v2208
    %3050 = vmatpush1.bf16.msra.mxu0 %v2207
    %3051 = vmatprep.subr.bf16.mxu0 %v2216
    %3052 = vmatpush1.bf16.msra.mxu0 %v2215
    %3053 = vmatprep.subr.bf16.mxu0 %v2224
    %3054 = vmatpush1.bf16.msra.mxu0 %v2223
    %3055 = vmatprep.subr.bf16.mxu0 %v2232
    %3056 = vmatpush1.bf16.msra.mxu0 %v2231
    %3057 = vmatprep.subr.bf16.mxu0 %v2240
    %3058 = vmatpush1.bf16.msra.mxu0 %v2239
    %3059 = vmatprep.subr.bf16.mxu0 %v2248
    %3060 = vmatpush1.bf16.msra.mxu0 %v2247
    %3061 = vmatprep.subr.bf16.mxu0 %v2256
    %3062 = vmatpush1.bf16.msra.mxu0 %v2255
    %3063 = vmatprep.subr.bf16.mxu0 %v2264
    %3064 = vmatpush1.bf16.msra.mxu0 %v2263
    %3065 = vmatprep.subr.bf16.mxu0 %v2272
    %3066 = vmatpush1.bf16.msra.mxu0 %v2271
    %3067 = vmatprep.subr.bf16.mxu0 %v2280
    %3068 = vmatpush1.bf16.msra.mxu0 %v2279
    %3069 = vmatprep.subr.bf16.mxu0 %v2288
    %3070 = vmatpush1.bf16.msra.mxu0 %v2287
    %3071 = vmatprep.subr.bf16.mxu0 %v2296
    %3072 = vmatpush1.bf16.msra.mxu0 %v2295
    %3073 = vmatprep.mubr.bf16.mxu0 %v1910
    %3074 = vmatmul.mubr.bf16.gmra.mrb[0].mxu0 %v1909
    %v3075 = vpop.f32.mrb[0].mxu0
    %v3076 = vadd.f32 %v3035, %v3075
    %v3077 = vpop.f32.mrb[0].mxu0
    %v3078 = vadd.f32 %v3037, %v3077
    %v3079 = vpop.f32.mrb[0].mxu0
    %v3080 = vpop.f32.mrb[0].mxu0
    %3081 = vdwg.mxu0
    %3082 = vmatprep.subr.bf16.mxu0 %v2304
    %3083 = vmatpush1.bf16.msra.mxu0 %v2303
    %3084 = vmatprep.subr.bf16.mxu0 %v2312
    %3085 = vmatpush1.bf16.msra.mxu0 %v2311
    %3086 = vmatprep.subr.bf16.mxu0 %v2320
    %3087 = vmatpush1.bf16.msra.mxu0 %v2319
    %3088 = vmatprep.subr.bf16.mxu0 %v2328
    %3089 = vmatpush1.bf16.msra.mxu0 %v2327
    %3090 = vmatprep.subr.bf16.mxu0 %v2336
    %3091 = vmatpush1.bf16.msra.mxu0 %v2335
    %3092 = vmatprep.subr.bf16.mxu0 %v2344
    %3093 = vmatpush1.bf16.msra.mxu0 %v2343
    %3094 = vmatprep.subr.bf16.mxu0 %v2352
    %3095 = vmatpush1.bf16.msra.mxu0 %v2351
    %3096 = vmatprep.subr.bf16.mxu0 %v2360
    %3097 = vmatpush1.bf16.msra.mxu0 %v2359
    %3098 = vmatprep.subr.bf16.mxu0 %v2368
    %3099 = vmatpush1.bf16.msra.mxu0 %v2367
    %3100 = vmatprep.subr.bf16.mxu0 %v2376
    %3101 = vmatpush1.bf16.msra.mxu0 %v2375
    %3102 = vmatprep.subr.bf16.mxu0 %v2384
    %3103 = vmatpush1.bf16.msra.mxu0 %v2383
    %3104 = vmatprep.subr.bf16.mxu0 %v2392
    %3105 = vmatpush1.bf16.msra.mxu0 %v2391
    %3106 = vmatprep.subr.bf16.mxu0 %v2400
    %3107 = vmatpush1.bf16.msra.mxu0 %v2399
    %3108 = vmatprep.subr.bf16.mxu0 %v2408
    %3109 = vmatpush1.bf16.msra.mxu0 %v2407
    %3110 = vmatprep.subr.bf16.mxu0 %v2416
    %3111 = vmatpush1.bf16.msra.mxu0 %v2415
    %3112 = vmatprep.subr.bf16.mxu0 %v2424
    %3113 = vmatpush1.bf16.msra.mxu0 %v2423
    %3114 = vmatprep.mubr.bf16.mxu0 %v1912
    %3115 = vmatmul.mubr.bf16.gmra.mrb[0].mxu0 %v1911
    %v3116 = vpop.f32.mrb[0].mxu0
    %v3117 = vadd.f32 %v3076, %v3116
    %v3118 = vpop.f32.mrb[0].mxu0
    %v3119 = vadd.f32 %v3078, %v3118
    %v3120 = vpop.f32.mrb[0].mxu0
    %v3121 = vpop.f32.mrb[0].mxu0
    %3122 = vdwg.mxu0
    %vm3123 = vcmp.gt.f32.partialorder %v2625, 0.0
    %vm3124 = vcmp.gt.f32.partialorder %v2627, 0.0
    %vm3125 = vcmp.gt.f32.partialorder %v2789, 0.0
    %vm3126 = vcmp.gt.f32.partialorder %v2791, 0.0
    %vm3127 = vcmp.gt.f32.partialorder %v2953, 0.0
    %vm3128 = vcmp.gt.f32.partialorder %v2955, 0.0
    %vm3129 = vcmp.gt.f32.partialorder %v3117, 0.0
    %vm3130 = vcmp.gt.f32.partialorder %v3119, 0.0
    %v3131 = vmul.f32 %v2625, 0.2
    %v3132 = vmul.f32 %v2627, 0.2
    %v3133 = vmul.f32 %v2789, 0.2
    %v3134 = vmul.f32 %v2791, 0.2
    %v3135 = vmul.f32 %v2953, 0.2
    %v3136 = vmul.f32 %v2955, 0.2
    %v3137 = vmul.f32 %v3117, 0.2
    %v3138 = vmul.f32 %v3119, 0.2
    %v3139 = vsel %vm3123, %v2625, %v3131
    %v3140 = vsel %vm3124, %v2627, %v3132
    %v3141 = vsel %vm3125, %v2789, %v3133
    %v3142 = vsel %vm3126, %v2791, %v3134
    %v3143 = vsel %vm3127, %v2953, %v3135
    %v3144 = vsel %vm3128, %v2955, %v3136
    %v3145 = vsel %vm3129, %v3117, %v3137
    %v3146 = vsel %vm3130, %v3119, %v3138
    %s3147 = smul.u32 %s657, 1
    %s3148 = sshll.u32 %s3147, 4
    %3149 = dma.done %s170, %s3148
    %v3150 = vpack.c.bf16 %v3139, %v3139
    %v3151 = vpack.c.bf16 %v3140, %v3140
    %v3152 = vpack.c.bf16 %v3141, %v3141
    %v3153 = vpack.c.bf16 %v3142, %v3142
    %v3154 = vpack.c.bf16 %v3143, %v3143
    %v3155 = vpack.c.bf16 %v3144, %v3144
    %v3156 = vpack.c.bf16 %v3145, %v3145
    %v3157 = vpack.c.bf16 %v3146, %v3146
    %v3158 = vld [vmem:[#allocation4] sm:$0xff]
    %v3159 = vld [vmem:[#allocation4 + $0x8] sm:$0xff]
    %v3160 = vld [vmem:[#allocation4 + $0x10] sm:$0xff]
    %v3161 = vld [vmem:[#allocation4 + $0x18] sm:$0xff]
    %v3162 = vld [vmem:[#allocation4 + $0x20] sm:$0xff]
    %v3163 = vld [vmem:[#allocation4 + $0x28] sm:$0xff]
    %v3164 = vld [vmem:[#allocation4 + $0x30] sm:$0xff]
    %v3165 = vld [vmem:[#allocation4 + $0x38] sm:$0xff]
    %v3166 = vld [vmem:[#allocation4 + $0x40] sm:$0xff]
    %v3167 = vld [vmem:[#allocation4 + $0x48] sm:$0xff]
    %v3168 = vld [vmem:[#allocation4 + $0x50] sm:$0xff]
    %v3169 = vld [vmem:[#allocation4 + $0x58] sm:$0xff]
    %v3170 = vld [vmem:[#allocation4 + $0x60] sm:$0xff]
    %v3171 = vld [vmem:[#allocation4 + $0x68] sm:$0xff]
    %v3172 = vld [vmem:[#allocation4 + $0x70] sm:$0xff]
    %v3173 = vld [vmem:[#allocation4 + $0x78] sm:$0xff]
    %v3174 = vld [vmem:[#allocation4 + $0x80] sm:$0xff]
    %v3175 = vld [vmem:[#allocation4 + $0x88] sm:$0xff]
    %v3176 = vld [vmem:[#allocation4 + $0x90] sm:$0xff]
    %v3177 = vld [vmem:[#allocation4 + $0x98] sm:$0xff]
    %v3178 = vld [vmem:[#allocation4 + $0xa0] sm:$0xff]
    %v3179 = vld [vmem:[#allocation4 + $0xa8] sm:$0xff]
    %v3180 = vld [vmem:[#allocation4 + $0xb0] sm:$0xff]
    %v3181 = vld [vmem:[#allocation4 + $0xb8] sm:$0xff]
    %v3182 = vld [vmem:[#allocation4 + $0xc0] sm:$0xff]
    %v3183 = vld [vmem:[#allocation4 + $0xc8] sm:$0xff]
    %v3184 = vld [vmem:[#allocation4 + $0xd0] sm:$0xff]
    %v3185 = vld [vmem:[#allocation4 + $0xd8] sm:$0xff]
    %v3186 = vld [vmem:[#allocation4 + $0xe0] sm:$0xff]
    %v3187 = vld [vmem:[#allocation4 + $0xe8] sm:$0xff]
    %v3188 = vld [vmem:[#allocation4 + $0xf0] sm:$0xff]
    %v3189 = vld [vmem:[#allocation4 + $0xf8] sm:$0xff]
    %v3190 = vld [vmem:[#allocation4 + $0x100] sm:$0xff]
    %v3191 = vld [vmem:[#allocation4 + $0x108] sm:$0xff]
    %v3192 = vld [vmem:[#allocation4 + $0x110] sm:$0xff]
    %v3193 = vld [vmem:[#allocation4 + $0x118] sm:$0xff]
    %v3194 = vld [vmem:[#allocation4 + $0x120] sm:$0xff]
    %v3195 = vld [vmem:[#allocation4 + $0x128] sm:$0xff]
    %v3196 = vld [vmem:[#allocation4 + $0x130] sm:$0xff]
    %v3197 = vld [vmem:[#allocation4 + $0x138] sm:$0xff]
    %v3198 = vld [vmem:[#allocation4 + $0x140] sm:$0xff]
    %v3199 = vld [vmem:[#allocation4 + $0x148] sm:$0xff]
    %v3200 = vld [vmem:[#allocation4 + $0x150] sm:$0xff]
    %v3201 = vld [vmem:[#allocation4 + $0x158] sm:$0xff]
    %v3202 = vld [vmem:[#allocation4 + $0x160] sm:$0xff]
    %v3203 = vld [vmem:[#allocation4 + $0x168] sm:$0xff]
    %v3204 = vld [vmem:[#allocation4 + $0x170] sm:$0xff]
    %v3205 = vld [vmem:[#allocation4 + $0x178] sm:$0xff]
    %v3206 = vld [vmem:[#allocation4 + $0x180] sm:$0xff]
    %v3207 = vld [vmem:[#allocation4 + $0x188] sm:$0xff]
    %v3208 = vld [vmem:[#allocation4 + $0x190] sm:$0xff]
    %v3209 = vld [vmem:[#allocation4 + $0x198] sm:$0xff]
    %v3210 = vld [vmem:[#allocation4 + $0x1a0] sm:$0xff]
    %v3211 = vld [vmem:[#allocation4 + $0x1a8] sm:$0xff]
    %v3212 = vld [vmem:[#allocation4 + $0x1b0] sm:$0xff]
    %v3213 = vld [vmem:[#allocation4 + $0x1b8] sm:$0xff]
    %v3214 = vld [vmem:[#allocation4 + $0x1c0] sm:$0xff]
    %v3215 = vld [vmem:[#allocation4 + $0x1c8] sm:$0xff]
    %v3216 = vld [vmem:[#allocation4 + $0x1d0] sm:$0xff]
    %v3217 = vld [vmem:[#allocation4 + $0x1d8] sm:$0xff]
    %v3218 = vld [vmem:[#allocation4 + $0x1e0] sm:$0xff]
    %v3219 = vld [vmem:[#allocation4 + $0x1e8] sm:$0xff]
    %v3220 = vld [vmem:[#allocation4 + $0x1f0] sm:$0xff]
    %v3221 = vld [vmem:[#allocation4 + $0x1f8] sm:$0xff]
    %v3222 = vld [vmem:[#allocation15] sm:$0x1]
    %v3224 = vlaneseq
    %v3225 = vshrl.u32 %v3224, 7
    %v3226 = vsub.s32 0, %v3225
    %v3227 = vrot.slane %v3222, %v3226
    %3229 = vmatprep.subr.bf16.mxu0 0
    %3230 = vmatpush1.bf16.msra.mxu0 %v3158
    %3231 = vmatprep.subr.bf16.mxu0 0
    %3232 = vmatpush1.bf16.msra.mxu0 %v3159
    %3233 = vmatprep.subr.bf16.mxu0 0
    %3234 = vmatpush1.bf16.msra.mxu0 %v3160
    %3235 = vmatprep.subr.bf16.mxu0 0
    %3236 = vmatpush1.bf16.msra.mxu0 %v3161
    %3237 = vmatprep.subr.bf16.mxu0 0
    %3238 = vmatpush1.bf16.msra.mxu0 %v3162
    %3239 = vmatprep.subr.bf16.mxu0 0
    %3240 = vmatpush1.bf16.msra.mxu0 %v3163
    %3241 = vmatprep.subr.bf16.mxu0 0
    %3242 = vmatpush1.bf16.msra.mxu0 %v3164
    %3243 = vmatprep.subr.bf16.mxu0 0
    %3244 = vmatpush1.bf16.msra.mxu0 %v3165
    %3245 = vmatprep.subr.bf16.mxu0 0
    %3246 = vmatpush1.bf16.msra.mxu0 %v3166
    %3247 = vmatprep.subr.bf16.mxu0 0
    %3248 = vmatpush1.bf16.msra.mxu0 %v3167
    %3249 = vmatprep.subr.bf16.mxu0 0
    %3250 = vmatpush1.bf16.msra.mxu0 %v3168
    %3251 = vmatprep.subr.bf16.mxu0 0
    %3252 = vmatpush1.bf16.msra.mxu0 %v3169
    %3253 = vmatprep.subr.bf16.mxu0 0
    %3254 = vmatpush1.bf16.msra.mxu0 %v3170
    %3255 = vmatprep.subr.bf16.mxu0 0
    %3256 = vmatpush1.bf16.msra.mxu0 %v3171
    %3257 = vmatprep.subr.bf16.mxu0 0
    %3258 = vmatpush1.bf16.msra.mxu0 %v3172
    %3259 = vmatprep.subr.bf16.mxu0 0
    %3260 = vmatpush1.bf16.msra.mxu0 %v3173
    %3261 = vmatprep.mubr.bf16.mxu0 %v3151
    %3262 = vmatmul.mubr.bf16.gmra.mrb[0].mxu0 %v3150
    %v3263 = vpop.f32.mrb[0].mxu0
    %v3264 = vadd.f32 %v3227, %v3263
    %v3265 = vpop.f32.mrb[0].mxu0
    %v3266 = vpop.f32.mrb[0].mxu0
    %v3267 = vpop.f32.mrb[0].mxu0
    %3268 = vdwg.mxu0
    %3269 = vmatprep.subr.bf16.mxu0 0
    %3270 = vmatpush1.bf16.msra.mxu0 %v3174
    %3271 = vmatprep.subr.bf16.mxu0 0
    %3272 = vmatpush1.bf16.msra.mxu0 %v3175
    %3273 = vmatprep.subr.bf16.mxu0 0
    %3274 = vmatpush1.bf16.msra.mxu0 %v3176
    %3275 = vmatprep.subr.bf16.mxu0 0
    %3276 = vmatpush1.bf16.msra.mxu0 %v3177
    %3277 = vmatprep.subr.bf16.mxu0 0
    %3278 = vmatpush1.bf16.msra.mxu0 %v3178
    %3279 = vmatprep.subr.bf16.mxu0 0
    %3280 = vmatpush1.bf16.msra.mxu0 %v3179
    %3281 = vmatprep.subr.bf16.mxu0 0
    %3282 = vmatpush1.bf16.msra.mxu0 %v3180
    %3283 = vmatprep.subr.bf16.mxu0 0
    %3284 = vmatpush1.bf16.msra.mxu0 %v3181
    %3285 = vmatprep.subr.bf16.mxu0 0
    %3286 = vmatpush1.bf16.msra.mxu0 %v3182
    %3287 = vmatprep.subr.bf16.mxu0 0
    %3288 = vmatpush1.bf16.msra.mxu0 %v3183
    %3289 = vmatprep.subr.bf16.mxu0 0
    %3290 = vmatpush1.bf16.msra.mxu0 %v3184
    %3291 = vmatprep.subr.bf16.mxu0 0
    %3292 = vmatpush1.bf16.msra.mxu0 %v3185
    %3293 = vmatprep.subr.bf16.mxu0 0
    %3294 = vmatpush1.bf16.msra.mxu0 %v3186
    %3295 = vmatprep.subr.bf16.mxu0 0
    %3296 = vmatpush1.bf16.msra.mxu0 %v3187
    %3297 = vmatprep.subr.bf16.mxu0 0
    %3298 = vmatpush1.bf16.msra.mxu0 %v3188
    %3299 = vmatprep.subr.bf16.mxu0 0
    %3300 = vmatpush1.bf16.msra.mxu0 %v3189
    %3301 = vmatprep.mubr.bf16.mxu0 %v3153
    %3302 = vmatmul.mubr.bf16.gmra.mrb[0].mxu0 %v3152
    %v3303 = vpop.f32.mrb[0].mxu0
    %v3304 = vadd.f32 %v3264, %v3303
    %v3305 = vpop.f32.mrb[0].mxu0
    %v3306 = vpop.f32.mrb[0].mxu0
    %v3307 = vpop.f32.mrb[0].mxu0
    %3308 = vdwg.mxu0
    %3309 = vmatprep.subr.bf16.mxu0 0
    %3310 = vmatpush1.bf16.msra.mxu0 %v3190
    %3311 = vmatprep.subr.bf16.mxu0 0
    %3312 = vmatpush1.bf16.msra.mxu0 %v3191
    %3313 = vmatprep.subr.bf16.mxu0 0
    %3314 = vmatpush1.bf16.msra.mxu0 %v3192
    %3315 = vmatprep.subr.bf16.mxu0 0
    %3316 = vmatpush1.bf16.msra.mxu0 %v3193
    %3317 = vmatprep.subr.bf16.mxu0 0
    %3318 = vmatpush1.bf16.msra.mxu0 %v3194
    %3319 = vmatprep.subr.bf16.mxu0 0
    %3320 = vmatpush1.bf16.msra.mxu0 %v3195
    %3321 = vmatprep.subr.bf16.mxu0 0
    %3322 = vmatpush1.bf16.msra.mxu0 %v3196
    %3323 = vmatprep.subr.bf16.mxu0 0
    %3324 = vmatpush1.bf16.msra.mxu0 %v3197
    %3325 = vmatprep.subr.bf16.mxu0 0
    %3326 = vmatpush1.bf16.msra.mxu0 %v3198
    %3327 = vmatprep.subr.bf16.mxu0 0
    %3328 = vmatpush1.bf16.msra.mxu0 %v3199
    %3329 = vmatprep.subr.bf16.mxu0 0
    %3330 = vmatpush1.bf16.msra.mxu0 %v3200
    %3331 = vmatprep.subr.bf16.mxu0 0
    %3332 = vmatpush1.bf16.msra.mxu0 %v3201
    %3333 = vmatprep.subr.bf16.mxu0 0
    %3334 = vmatpush1.bf16.msra.mxu0 %v3202
    %3335 = vmatprep.subr.bf16.mxu0 0
    %3336 = vmatpush1.bf16.msra.mxu0 %v3203
    %3337 = vmatprep.subr.bf16.mxu0 0
    %3338 = vmatpush1.bf16.msra.mxu0 %v3204
    %3339 = vmatprep.subr.bf16.mxu0 0
    %3340 = vmatpush1.bf16.msra.mxu0 %v3205
    %3341 = vmatprep.mubr.bf16.mxu0 %v3155
    %3342 = vmatmul.mubr.bf16.gmra.mrb[0].mxu0 %v3154
    %v3343 = vpop.f32.mrb[0].mxu0
    %v3344 = vadd.f32 %v3304, %v3343
    %v3345 = vpop.f32.mrb[0].mxu0
    %v3346 = vpop.f32.mrb[0].mxu0
    %v3347 = vpop.f32.mrb[0].mxu0
    %3348 = vdwg.mxu0
    %3349 = vmatprep.subr.bf16.mxu0 0
    %3350 = vmatpush1.bf16.msra.mxu0 %v3206
    %3351 = vmatprep.subr.bf16.mxu0 0
    %3352 = vmatpush1.bf16.msra.mxu0 %v3207
    %3353 = vmatprep.subr.bf16.mxu0 0
    %3354 = vmatpush1.bf16.msra.mxu0 %v3208
    %3355 = vmatprep.subr.bf16.mxu0 0
    %3356 = vmatpush1.bf16.msra.mxu0 %v3209
    %3357 = vmatprep.subr.bf16.mxu0 0
    %3358 = vmatpush1.bf16.msra.mxu0 %v3210
    %3359 = vmatprep.subr.bf16.mxu0 0
    %3360 = vmatpush1.bf16.msra.mxu0 %v3211
    %3361 = vmatprep.subr.bf16.mxu0 0
    %3362 = vmatpush1.bf16.msra.mxu0 %v3212
    %3363 = vmatprep.subr.bf16.mxu0 0
    %3364 = vmatpush1.bf16.msra.mxu0 %v3213
    %3365 = vmatprep.subr.bf16.mxu0 0
    %3366 = vmatpush1.bf16.msra.mxu0 %v3214
    %3367 = vmatprep.subr.bf16.mxu0 0
    %3368 = vmatpush1.bf16.msra.mxu0 %v3215
    %3369 = vmatprep.subr.bf16.mxu0 0
    %3370 = vmatpush1.bf16.msra.mxu0 %v3216
    %3371 = vmatprep.subr.bf16.mxu0 0
    %3372 = vmatpush1.bf16.msra.mxu0 %v3217
    %3373 = vmatprep.subr.bf16.mxu0 0
    %3374 = vmatpush1.bf16.msra.mxu0 %v3218
    %3375 = vmatprep.subr.bf16.mxu0 0
    %3376 = vmatpush1.bf16.msra.mxu0 %v3219
    %3377 = vmatprep.subr.bf16.mxu0 0
    %3378 = vmatpush1.bf16.msra.mxu0 %v3220
    %3379 = vmatprep.subr.bf16.mxu0 0
    %3380 = vmatpush1.bf16.msra.mxu0 %v3221
    %3381 = vmatprep.mubr.bf16.mxu0 %v3157
    %3382 = vmatmul.mubr.bf16.gmra.mrb[0].mxu0 %v3156
    %v3383 = vpop.f32.mrb[0].mxu0
    %v3384 = vadd.f32 %v3344, %v3383
    %v3385 = vpop.f32.mrb[0].mxu0
    %v3386 = vpop.f32.mrb[0].mxu0
    %v3387 = vpop.f32.mrb[0].mxu0
    %3388 = vdwg.mxu0
    %v3389 = vsub.f32 0.0, %v3384
    %v3390 = vmul.f32 %v3389, 1.442695
    %v3391 = vpow.pop %v3390
    %v3392 = vadd.f32 %v3391, 1.0
    %v3393 = vrcp.pop %v3392
    %v3394 = vmul.f32 1.0, %v3393
    %3395 = vst [vmem:[#allocation17] sm:$0xff] %v3394
    // Predicated region
    $region54: #{tpu_custom_call.1} parent=1 // pred_check
      _
    $region55: #{tpu_custom_call.1} parent=1 // pred_check_branch
      %3397 = sbr.rel (0) target = $region57
    $region56: #{tpu_custom_call.1} parent=1 // pred_region
      %s3399 = ssub.s32 128, 128
      %3400 = vsyncadd [#allocation8], %s3399
      %s3402 = sshll.u32 [#allocation17], 4
      %s3403 = int_to_ptr.vmem [resolvable:$true] %s3402
      %3405 = dma.vmem_to_hbm [thread:$0]  %s3403, 128, %s9, [#allocation8]
    $region57: #{tpu_custom_call.1} parent=1 // pred_fallthru
      _
    // Predicated region
    $region58: #{tpu_custom_call.1} parent=1 // pred_check
      _
    $region59: #{tpu_custom_call.1} parent=1 // pred_check_branch
      %3407 = sbr.rel (0) target = $region61
    $region60: #{tpu_custom_call.1} parent=1 // pred_region
      %3408 = dma.done [#allocation8], 128
    $region61: #{tpu_custom_call.1} parent=1 // pred_fallthru
      _
    %3409 = vsyncpa [#allocation7], 1
    %3410 = vsyncpa [#allocation10], 1
    %3411 = vsyncpa [#allocation13], 1
    %3412 = vsyncpa [#allocation16], 1
    %3413 = vsyncpa [#allocation8], 1
  %3414 = vsyncmov [#allocation5]
  %s3415 = vpop.sfrf %3414
  %p3416 = scmp.eq.s32.totalorder %s3415, 0
  %p3417 = pneg %p3416
  %3419 = shalt.err (%p3417)
  %s3420 = scalar_lea.sflag [#allocation5], 1
  %3421 = vsyncmov %s3420
  %s3422 = vpop.sfrf %3421
  %p3423 = scmp.eq.s32.totalorder %s3422, 0
  %p3424 = pneg %p3423
  %3426 = shalt.err (%p3424)
  %s3427 = scalar_lea.sflag [#allocation5], 2
  %3428 = vsyncmov %s3427
  %s3429 = vpop.sfrf %3428
  %p3430 = scmp.eq.s32.totalorder %s3429, 0
  %p3431 = pneg %p3430
  %3433 = shalt.err (%p3431)

</llo_original>
